<compile_context>
chip_gen: v7x
topology: tpu7x:2x2x1
jax: 0.10.0
libtpu: 0.0.40
codegen_flags: <defaults>
</compile_context>

<pallas_src>
import functools

import numpy as np
import jax
import jax.numpy as jnp
from jax.experimental import pallas as pl
from jax.experimental.pallas import tpu as pltpu


def _ceil_to(x, m):
    return ((x + m - 1) // m) * m


# ---------------------------------------------------------------------------
# Fused forward kernel: conv1 + conv2 + conv3 + FC + (pi | value) head.
# One grid step processes `tb` images; every intermediate stays in VMEM.
# ---------------------------------------------------------------------------
def _fused_forward_kernel(x1_ref, w1_ref, b1_ref, w2_ref, b2_ref,
                          w3_ref, b3_ref, wfc_ref, bfc_ref, wh_ref, bh_ref,
                          out_ref, h1_scr, patch_scr, cat3_scr,
                          *, tb, c1, c2, k2, s2, oh2, ow2, n_act):
    f32 = jnp.float32
    bf16 = jnp.bfloat16
    slab = k2 * c1                       # lanes per conv2 tap-row (= 128 default)

    # ---- conv1: one big MXU matmul for the whole block ----------------------
    # x1 rows are ordered (conv1_output_row, image); the banded wide weight
    # already produces the output with (ow1*c1) dense lanes, so the result can
    # be stored as-is and conv2's gather below is plain contiguous slab copies.
    z1 = jnp.dot(x1_ref[...], w1_ref[...], preferred_element_type=f32) + b1_ref[...]
    h1_scr[...] = jnp.maximum(z1, 0.0)   # [oh1*tb, ow1*c1] f32

    # ---- conv2: oh2*ow2 output positions, k2 aligned slab copies each -------
    # cat3 (concatenation of all conv2 outputs) is exactly conv3's 1x1-output
    # im2col patch, so conv3 is a single matmul afterwards.
    for r in range(oh2):
        for c in range(ow2):
            lane0 = s2 * c * c1
            for i in range(k2):
                row0 = (s2 * r + i) * tb
                patch_scr[:, i * slab:(i + 1) * slab] = (
                    h1_scr[row0:row0 + tb, lane0:lane0 + slab].astype(bf16))
            z2 = (jnp.dot(patch_scr[...], w2_ref[...],
                          preferred_element_type=f32) + b2_ref[...])
            p = r * ow2 + c
            cat3_scr[:, p * c2:(p + 1) * c2] = jnp.maximum(z2, 0.0).astype(bf16)

    # ---- conv3 (1x1 spatial) + fully-connected hidden layer ------------------
    z3 = (jnp.dot(cat3_scr[...], w3_ref[...], preferred_element_type=f32)
          + b3_ref[...])
    h3 = jnp.maximum(z3, 0.0).astype(bf16)                     # [tb, c3]
    z4 = jnp.dot(h3, wfc_ref[...], preferred_element_type=f32) + bfc_ref[...]
    h4 = jnp.maximum(z4, 0.0).astype(bf16)                     # [tb, fc]

    # ---- fused pi/value head: one matmul, masked softmax, ONE 128-lane store -
    zh = jnp.dot(h4, wh_ref[...], preferred_element_type=f32) + bh_ref[...]
    lane = jax.lax.broadcasted_iota(jnp.int32, zh.shape, 1)
    is_pi = lane < n_act
    masked = jnp.where(is_pi, zh, -jnp.inf)
    m = jnp.max(masked, axis=-1, keepdims=True)
    e = jnp.exp(masked - m)                                    # exp(-inf) == 0
    denom = jnp.sum(e, axis=-1, keepdims=True)
    pi = e * pl.reciprocal(denom, approx=True)
    out_ref[...] = jnp.where(is_pi, pi,
                             jnp.where(lane == n_act, zh, 0.0))


# ---------------------------------------------------------------------------
# XLA-side glue: parameter init / packing, forward wrapper, pure-JAX reference.
# ---------------------------------------------------------------------------
def _im2col(x_nhwc, k, s):
    """Valid (no padding) patches.  Row order = (image, out_r, out_c);
    column order = (kh, kw, cin).  Used only by the pure-JAX reference."""
    n, h, w, c = x_nhwc.shape
    oh = (h - k) // s + 1
    ow = (w - k) // s + 1
    cols = []
    for i in range(k):
        for j in range(k):
            cols.append(x_nhwc[:, i:i + s * (oh - 1) + 1:s,
                               j:j + s * (ow - 1) + 1:s, :])
    patches = jnp.stack(cols, axis=3)                  # [n, oh, ow, k*k, c]
    return patches.reshape(n * oh * ow, k * k * c), oh, ow


def init_params(key, image_shape=(3, 36, 36), output_size=16, fc_size=512,
                channels=(32, 64, 64), kernel_sizes=(8, 4, 3), strides=(4, 2, 1)):
    c_in, h, w = image_shape
    cs = [c_in] + list(channels)
    keys = jax.random.split(key, 2 * len(channels) + 6)
    ki = 0
    params = {"conv": []}
    oh, ow = h, w
    for cin, cout, k, s in zip(cs[:-1], cs[1:], kernel_sizes, strides):
        fan_in = cin * k * k
        bound = 1.0 / np.sqrt(fan_in)
        wgt = jax.random.uniform(keys[ki], (k, k, cin, cout), jnp.float32,
                                 -bound, bound); ki += 1
        bia = jax.random.uniform(keys[ki], (cout,), jnp.float32,
                                 -bound, bound); ki += 1
        params["conv"].append({"w": wgt, "b": bia, "k": k, "s": s})
        oh = (oh - k) // s + 1
        ow = (ow - k) // s + 1
    conv_out = channels[-1] * oh * ow

    def _lin(kw_, kb_, fin, fout):
        bnd = 1.0 / np.sqrt(fin)
        return (jax.random.uniform(kw_, (fin, fout), jnp.float32, -bnd, bnd),
                jax.random.uniform(kb_, (fout,), jnp.float32, -bnd, bnd))

    params["fc_w"], params["fc_b"] = _lin(keys[ki], keys[ki + 1], conv_out, fc_size); ki += 2
    params["pi_w"], params["pi_b"] = _lin(keys[ki], keys[ki + 1], fc_size, output_size); ki += 2
    params["v_w"], params["v_b"] = _lin(keys[ki], keys[ki + 1], fc_size, 1); ki += 2
    return params


def pack_params(params, image_shape=(3, 36, 36)):
    """One-time offline weight prep for the fused kernel:
      * expand conv1 into a banded [k1*W*C, ow1*c1] weight (kh-only-duplicated
        input rows) with the 1/255 input scaling folded in,
      * flatten conv2/conv3 weights in (kh, kw, cin) order,
      * merge the pi/value heads into one 128-lane-wide matmul,
      * cast MXU operands to bf16 (biases stay f32)."""
    conv = params["conv"]
    c_in, H, W = image_shape
    c1 = conv[0]["w"].shape[-1]
    c2 = conv[1]["w"].shape[-1]
    c3 = conv[2]["w"].shape[-1]
    k1, s1 = conv[0]["k"], conv[0]["s"]
    k2, s2 = conv[1]["k"], conv[1]["s"]
    k3, s3 = conv[2]["k"], conv[2]["s"]
    oh1 = (H - k1) // s1 + 1
    ow1 = (W - k1) // s1 + 1
    K1w = k1 * W * c_in

    w1 = np.asarray(conv[0]["w"], np.float32) * (1.0 / 255.0)   # fold 1/255
    w1big = np.zeros((K1w, ow1 * c1), np.float32)
    for oc in range(ow1):
        for kh in range(k1):
            for kw in range(k1):
                row0 = kh * (W * c_in) + (s1 * oc + kw) * c_in
                w1big[row0:row0 + c_in, oc * c1:(oc + 1) * c1] = w1[kh, kw, :, :]
    b1big = np.tile(np.asarray(conv[0]["b"], np.float32), ow1).reshape(1, ow1 * c1)

    fc = params["fc_w"].shape[1]
    n_act = params["pi_w"].shape[1]
    hpad = _ceil_to(n_act + 1, 128)
    wh = jnp.concatenate(
        [params["pi_w"], params["v_w"],
         jnp.zeros((fc, hpad - n_act - 1), jnp.float32)], axis=1).astype(jnp.bfloat16)
    bh = jnp.concatenate(
        [params["pi_b"], params["v_b"],
         jnp.zeros((hpad - n_act - 1,), jnp.float32)]).reshape(1, hpad)

    return {
        "w1big": jnp.asarray(w1big, jnp.bfloat16),
        "b1big": jnp.asarray(b1big, jnp.float32),
        "w2f": conv[1]["w"].reshape(-1, c2).astype(jnp.bfloat16),
        "b2": conv[1]["b"].reshape(1, c2).astype(jnp.float32),
        "w3f": conv[2]["w"].reshape(-1, c3).astype(jnp.bfloat16),
        "b3": conv[2]["b"].reshape(1, c3).astype(jnp.float32),
        "wfc": params["fc_w"].astype(jnp.bfloat16),
        "bfc": params["fc_b"].reshape(1, fc).astype(jnp.float32),
        "wh": wh,
        "bh": bh.astype(jnp.float32),
        "meta": {"image_shape": (c_in, H, W),
                 "k1": k1, "s1": s1, "k2": k2, "s2": s2, "k3": k3, "s3": s3,
                 "c1": c1, "c2": c2, "c3": c3, "fc": fc,
                 "oh1": oh1, "ow1": ow1, "K1w": K1w,
                 "n_act": n_act, "hpad": hpad},
    }


def _pick_tb(n, block_images):
    """Images per grid step: multiple of 8, <= block_images, and (when n > 8)
    small enough to give >= 2 grid steps (pipelining + v7x megacore)."""
    tb = max(8, min(_ceil_to(block_images, 8), _ceil_to(max(n, 1), 8)))
    if n > 8 and _ceil_to(n, tb) // tb < 2:
        tb = max(8, _ceil_to((n + 1) // 2, 8))
    return tb


def treechop_forward(packed, observation_pov, *, block_images=128):
    """observation_pov: uint8/float NCHW image with optional leading dims
    ([C,H,W], [B,C,H,W] or [T,B,C,H,W]).  Returns (pi, v) with leading dims
    restored, matching the PyTorch forward."""
    meta = packed["meta"]
    k1, s1 = meta["k1"], meta["s1"]
    k2, s2, k3 = meta["k2"], meta["s2"], meta["k3"]
    c1, c2, c3 = meta["c1"], meta["c2"], meta["c3"]
    fc, n_act, hpad = meta["fc"], meta["n_act"], meta["hpad"]
    oh1, ow1, K1w = meta["oh1"], meta["ow1"], meta["K1w"]

    # Pixel values are integers in [0, 255]: exact in bf16.  The 1/255
    # normalization is folded into the conv1 weights (see pack_params).
    img = observation_pov.astype(jnp.bfloat16)
    lead_shape = img.shape[:-3]
    cin, h, w = img.shape[-3:]
    assert (cin, h, w) == tuple(meta["image_shape"]), \
        "packed params were built for a different image shape"
    x = img.reshape((-1, cin, h, w)).transpose(0, 2, 3, 1)       # NHWC
    n = x.shape[0]

    oh2 = (oh1 - k2) // s2 + 1
    ow2 = (ow1 - k2) // s2 + 1
    assert oh2 == k3 and ow2 == k3, (
        "fused kernel assumes the final conv reduces the spatial dims to 1x1")

    tb = _pick_tb(n, block_images)
    n_pad = _ceil_to(n, tb)
    nb = n_pad // tb
    x = jnp.pad(x, ((0, n_pad - n), (0, 0), (0, 0), (0, 0)))

    # kh-only-duplicated conv1 input: one row per (image, conv1 output row)
    # holding the k1 raw image rows it reads (full width, all channels).
    rows = jnp.stack([x[:, s1 * r:s1 * r + k1, :, :].reshape(n_pad, K1w)
                      for r in range(oh1)], axis=1)              # [n_pad, oh1, K1w]
    # Within each grid block, order rows as (conv1_row, image) so the conv1
    # matmul output lands directly in conv2's gather-friendly layout.
    x1 = (rows.reshape(nb, tb, oh1, K1w)
              .transpose(0, 2, 1, 3)
              .reshape(nb * oh1 * tb, K1w))

    kern = functools.partial(
        _fused_forward_kernel, tb=tb, c1=c1, c2=c2,
        k2=k2, s2=s2, oh2=oh2, ow2=ow2, n_act=n_act)

    flops = 2 * n_pad * (oh1 * K1w * (ow1 * c1)
                         + oh2 * ow2 * (k2 * k2 * c1) * c2
                         + (oh2 * ow2 * c2) * c3 + c3 * fc + fc * hpad)
    weight_names = ("w1big", "b1big", "w2f", "b2", "w3f", "b3",
                    "wfc", "bfc", "wh", "bh")
    bytes_accessed = (x1.size * x1.dtype.itemsize + n_pad * hpad * 4
                      + sum(packed[k].size * packed[k].dtype.itemsize
                            for k in weight_names))

    out = pl.pallas_call(
        kern,
        grid_spec=pltpu.PrefetchScalarGridSpec(
            num_scalar_prefetch=0,
            grid=(nb,),
            in_specs=[
                pl.BlockSpec((oh1 * tb, K1w), lambda i: (i, 0)),     # conv1 rows
                pl.BlockSpec(packed["w1big"].shape, lambda i: (0, 0)),
                pl.BlockSpec(packed["b1big"].shape, lambda i: (0, 0)),
                pl.BlockSpec(packed["w2f"].shape, lambda i: (0, 0)),
                pl.BlockSpec(packed["b2"].shape, lambda i: (0, 0)),
                pl.BlockSpec(packed["w3f"].shape, lambda i: (0, 0)),
                pl.BlockSpec(packed["b3"].shape, lambda i: (0, 0)),
                pl.BlockSpec(packed["wfc"].shape, lambda i: (0, 0)),
                pl.BlockSpec(packed["bfc"].shape, lambda i: (0, 0)),
                pl.BlockSpec(packed["wh"].shape, lambda i: (0, 0)),
                pl.BlockSpec(packed["bh"].shape, lambda i: (0, 0)),
            ],
            out_specs=pl.BlockSpec((tb, hpad), lambda i: (i, 0)),
            scratch_shapes=[
                pltpu.VMEM((oh1 * tb, ow1 * c1), jnp.float32),  # conv1 activations
                pltpu.VMEM((tb, k2 * k2 * c1), jnp.bfloat16),   # conv2 patch
                pltpu.VMEM((tb, oh2 * ow2 * c2), jnp.bfloat16), # conv2 out = conv3 patch
            ],
        ),
        out_shape=jax.ShapeDtypeStruct((n_pad, hpad), jnp.float32),
        compiler_params=pltpu.CompilerParams(
            dimension_semantics=("parallel",),
            vmem_limit_bytes=48 * 1024 * 1024),
        cost_estimate=pl.CostEstimate(flops=flops,
                                      transcendentals=n_pad * hpad,
                                      bytes_accessed=bytes_accessed),
    )(x1, packed["w1big"], packed["b1big"], packed["w2f"], packed["b2"],
      packed["w3f"], packed["b3"], packed["wfc"], packed["bfc"],
      packed["wh"], packed["bh"])

    out = out[:n]
    pi = out[:, :n_act].reshape(lead_shape + (n_act,))
    v = out[:, n_act].reshape(lead_shape)     # squeeze(-1) + restore lead dims
    return pi, v


def reference_forward(params, observation_pov):
    """Plain-JAX f32 reference (same math, no Pallas) for correctness checks."""
    img = observation_pov.astype(jnp.float32) * (1.0 / 255.0)
    lead_shape = img.shape[:-3]
    c, h, w = img.shape[-3:]
    x = img.reshape((-1, c, h, w)).transpose(0, 2, 3, 1)
    n = x.shape[0]
    cur = x
    for layer in params["conv"]:
        cols, oh, ow = _im2col(cur, layer["k"], layer["s"])
        w2d = layer["w"].reshape(-1, layer["w"].shape[-1])
        out = jnp.maximum(cols @ w2d + layer["b"], 0.0)
        cur = out.reshape(n, oh, ow, -1)
    flat = cur.reshape(n, -1)
    fc_out = jnp.maximum(flat @ params["fc_w"] + params["fc_b"], 0.0)
    logits = fc_out @ params["pi_w"] + params["pi_b"]
    pi = jax.nn.softmax(logits, axis=-1)
    v = (fc_out @ params["v_w"] + params["v_b"]).squeeze(-1)
    return pi.reshape(lead_shape + (pi.shape[-1],)), v.reshape(lead_shape)


if __name__ == "__main__":
    key = jax.random.PRNGKey(0)
    pkey, dkey = jax.random.split(key)

    image_shape = (3, 36, 36)   # smallest spatial size valid for k=[8,4,3], s=[4,2,1]
    output_size = 16
    T, B = 5, 2                 # [T, B] leading dims -> 10 images, 2 grid tiles

    params = init_params(pkey, image_shape=image_shape, output_size=output_size)
    packed = pack_params(params, image_shape=image_shape)

    obs = jax.random.randint(dkey, (T, B) + image_shape, 0, 256,
                             dtype=jnp.int32).astype(jnp.uint8)

    fwd = jax.jit(functools.partial(treechop_forward, packed, block_images=128))
    pi, v = fwd(obs)
    jax.block_until_ready((pi, v))

    pi_ref, v_ref = reference_forward(params, obs)
    assert pi.shape == (T, B, output_size) and v.shape == (T, B)
    assert np.allclose(np.asarray(pi), np.asarray(pi_ref), atol=2e-2), "pi mismatch"
    assert np.allclose(np.asarray(v), np.asarray(v_ref), atol=2e-2), "value mismatch"
    assert np.allclose(np.asarray(pi).sum(-1), 1.0, atol=5e-3), "softmax not normalized"

    print("KERNEL_OK")
</pallas_src>

<mosaic_0001>
module attributes {stable_mosaic.version = 11 : i64} {
  func.func @_fused_forward_kernel(%arg0: i32, %arg1: memref<64x864xbf16, #tpu.memory_space<vmem>>, %arg2: memref<864x256xbf16, #tpu.memory_space<vmem>>, %arg3: memref<1x256xf32, #tpu.memory_space<vmem>>, %arg4: memref<512x64xbf16, #tpu.memory_space<vmem>>, %arg5: memref<1x64xf32, #tpu.memory_space<vmem>>, %arg6: memref<576x64xbf16, #tpu.memory_space<vmem>>, %arg7: memref<1x64xf32, #tpu.memory_space<vmem>>, %arg8: memref<64x512xbf16, #tpu.memory_space<vmem>>, %arg9: memref<1x512xf32, #tpu.memory_space<vmem>>, %arg10: memref<512x128xbf16, #tpu.memory_space<vmem>>, %arg11: memref<1x128xf32, #tpu.memory_space<vmem>>, %arg12: memref<8x128xf32, #tpu.memory_space<vmem>>, %arg13: memref<64x256xf32, #tpu.memory_space<vmem>>, %arg14: memref<8x512xbf16, #tpu.memory_space<vmem>>, %arg15: memref<8x576xbf16, #tpu.memory_space<vmem>>) attributes {dimension_semantics = [#tpu.dimension_semantics<parallel>], iteration_bounds = array<i64: 2>, scalar_prefetch = 0 : i64, scratch_operands = 3 : i64, tpu.core_type = #tpu.core_type<tc>, window_params = [{transform_indices = @transform_0, window_bounds = array<i64: 64, 864>}, {pipeline_mode = #tpu.pipeline_mode<synchronous>, transform_indices = @transform_1, window_bounds = array<i64: 864, 256>}, {pipeline_mode = #tpu.pipeline_mode<synchronous>, transform_indices = @transform_2, window_bounds = array<i64: 1, 256>}, {pipeline_mode = #tpu.pipeline_mode<synchronous>, transform_indices = @transform_3, window_bounds = array<i64: 512, 64>}, {pipeline_mode = #tpu.pipeline_mode<synchronous>, transform_indices = @transform_4, window_bounds = array<i64: 1, 64>}, {pipeline_mode = #tpu.pipeline_mode<synchronous>, transform_indices = @transform_5, window_bounds = array<i64: 576, 64>}, {pipeline_mode = #tpu.pipeline_mode<synchronous>, transform_indices = @transform_6, window_bounds = array<i64: 1, 64>}, {pipeline_mode = #tpu.pipeline_mode<synchronous>, transform_indices = @transform_7, window_bounds = array<i64: 64, 512>}, {pipeline_mode = #tpu.pipeline_mode<synchronous>, transform_indices = @transform_8, window_bounds = array<i64: 1, 512>}, {pipeline_mode = #tpu.pipeline_mode<synchronous>, transform_indices = @transform_9, window_bounds = array<i64: 512, 128>}, {pipeline_mode = #tpu.pipeline_mode<synchronous>, transform_indices = @transform_10, window_bounds = array<i64: 1, 128>}, {transform_indices = @transform_11, window_bounds = array<i64: 8, 128>}]} {
    %c0 = arith.constant 0 : index
    %c0_0 = arith.constant 0 : index
    %0 = vector.load %arg1[%c0, %c0_0] : memref<64x864xbf16, #tpu.memory_space<vmem>>, vector<64x864xbf16>
    %c0_1 = arith.constant 0 : index
    %c0_2 = arith.constant 0 : index
    %1 = vector.load %arg2[%c0_1, %c0_2] : memref<864x256xbf16, #tpu.memory_space<vmem>>, vector<864x256xbf16>
    %cst = arith.constant dense<0.000000e+00> : vector<64x256xf32>
    %2 = tpu.matmul %0, %1, %cst {dimension_numbers = #tpu.dot_dimension_numbers<[1], [0], [0], [1], [0, 0, 1, 1], [], []>} : vector<64x864xbf16>, vector<864x256xbf16>, vector<64x256xf32> -> vector<64x256xf32>
    %c0_3 = arith.constant 0 : index
    %c0_4 = arith.constant 0 : index
    %3 = vector.load %arg3[%c0_3, %c0_4] : memref<1x256xf32, #tpu.memory_space<vmem>>, vector<1x256xf32>
    %4 = vector.broadcast %3 : vector<1x256xf32> to vector<64x256xf32>
    %5 = arith.addf %2, %4 : vector<64x256xf32>
    %cst_5 = arith.constant 0.000000e+00 : f32
    %6 = vector.broadcast %cst_5 : f32 to vector<64x256xf32>
    %7 = arith.maximumf %5, %6 : vector<64x256xf32>
    %c0_6 = arith.constant 0 : index
    %c0_7 = arith.constant 0 : index
    %8 = vector.load %arg13[%c0_6, %c0_7] : memref<64x256xf32, #tpu.memory_space<vmem>>, vector<64x256xf32>
    tpu.vector_store %arg13[%c0_6, %c0_7], %7 {strides = array<i32>} : memref<64x256xf32, #tpu.memory_space<vmem>>, vector<64x256xf32>,
    %c0_8 = arith.constant 0 : index
    %c0_9 = arith.constant 0 : index
    %9 = vector.load %arg13[%c0_8, %c0_9] : memref<64x256xf32, #tpu.memory_space<vmem>>, vector<8x128xf32>
    %10 = arith.truncf %9 : vector<8x128xf32> to vector<8x128xbf16>
    %c0_10 = arith.constant 0 : index
    %c0_11 = arith.constant 0 : index
    %11 = vector.load %arg14[%c0_10, %c0_11] : memref<8x512xbf16, #tpu.memory_space<vmem>>, vector<8x128xbf16>
    tpu.vector_store %arg14[%c0_10, %c0_11], %10 {strides = array<i32>} : memref<8x512xbf16, #tpu.memory_space<vmem>>, vector<8x128xbf16>,
    %c8 = arith.constant 8 : index
    %c0_12 = arith.constant 0 : index
    %12 = vector.load %arg13[%c8, %c0_12] : memref<64x256xf32, #tpu.memory_space<vmem>>, vector<8x128xf32>
    %13 = arith.truncf %12 : vector<8x128xf32> to vector<8x128xbf16>
    %c0_13 = arith.constant 0 : index
    %c128 = arith.constant 128 : index
    %14 = vector.load %arg14[%c0_13, %c128] : memref<8x512xbf16, #tpu.memory_space<vmem>>, vector<8x128xbf16>
    tpu.vector_store %arg14[%c0_13, %c128], %13 {strides = array<i32>} : memref<8x512xbf16, #tpu.memory_space<vmem>>, vector<8x128xbf16>,
    %c16 = arith.constant 16 : index
    %c0_14 = arith.constant 0 : index
    %15 = vector.load %arg13[%c16, %c0_14] : memref<64x256xf32, #tpu.memory_space<vmem>>, vector<8x128xf32>
    %16 = arith.truncf %15 : vector<8x128xf32> to vector<8x128xbf16>
    %c0_15 = arith.constant 0 : index
    %c256 = arith.constant 256 : index
    %17 = vector.load %arg14[%c0_15, %c256] : memref<8x512xbf16, #tpu.memory_space<vmem>>, vector<8x128xbf16>
    tpu.vector_store %arg14[%c0_15, %c256], %16 {strides = array<i32>} : memref<8x512xbf16, #tpu.memory_space<vmem>>, vector<8x128xbf16>,
    %c24 = arith.constant 24 : index
    %c0_16 = arith.constant 0 : index
    %18 = vector.load %arg13[%c24, %c0_16] : memref<64x256xf32, #tpu.memory_space<vmem>>, vector<8x128xf32>
    %19 = arith.truncf %18 : vector<8x128xf32> to vector<8x128xbf16>
    %c0_17 = arith.constant 0 : index
    %c384 = arith.constant 384 : index
    %20 = vector.load %arg14[%c0_17, %c384] : memref<8x512xbf16, #tpu.memory_space<vmem>>, vector<8x128xbf16>
    tpu.vector_store %arg14[%c0_17, %c384], %19 {strides = array<i32>} : memref<8x512xbf16, #tpu.memory_space<vmem>>, vector<8x128xbf16>,
    %c0_18 = arith.constant 0 : index
    %c0_19 = arith.constant 0 : index
    %21 = vector.load %arg14[%c0_18, %c0_19] : memref<8x512xbf16, #tpu.memory_space<vmem>>, vector<8x512xbf16>
    %c0_20 = arith.constant 0 : index
    %c0_21 = arith.constant 0 : index
    %22 = vector.load %arg4[%c0_20, %c0_21] : memref<512x64xbf16, #tpu.memory_space<vmem>>, vector<512x64xbf16>
    %cst_22 = arith.constant dense<0.000000e+00> : vector<8x64xf32>
    %23 = tpu.matmul %21, %22, %cst_22 {dimension_numbers = #tpu.dot_dimension_numbers<[1], [0], [0], [1], [0, 0, 1, 1], [], []>} : vector<8x512xbf16>, vector<512x64xbf16>, vector<8x64xf32> -> vector<8x64xf32>
    %c0_23 = arith.constant 0 : index
    %c0_24 = arith.constant 0 : index
    %24 = vector.load %arg5[%c0_23, %c0_24] : memref<1x64xf32, #tpu.memory_space<vmem>>, vector<1x64xf32>
    %25 = vector.broadcast %24 : vector<1x64xf32> to vector<8x64xf32>
    %26 = arith.addf %23, %25 : vector<8x64xf32>
    %cst_25 = arith.constant 0.000000e+00 : f32
    %27 = vector.broadcast %cst_25 : f32 to vector<8x64xf32>
    %28 = arith.maximumf %26, %27 : vector<8x64xf32>
    %29 = arith.truncf %28 : vector<8x64xf32> to vector<8x64xbf16>
    %c0_26 = arith.constant 0 : index
    %c0_27 = arith.constant 0 : index
    %30 = vector.load %arg15[%c0_26, %c0_27] : memref<8x576xbf16, #tpu.memory_space<vmem>>, vector<8x64xbf16>
    tpu.vector_store %arg15[%c0_26, %c0_27], %29 {strides = array<i32>} : memref<8x576xbf16, #tpu.memory_space<vmem>>, vector<8x64xbf16>,
    %c0_28 = arith.constant 0 : index
    %c64 = arith.constant 64 : index
    %31 = vector.load %arg13[%c0_28, %c64] : memref<64x256xf32, #tpu.memory_space<vmem>>, vector<8x128xf32>
    %32 = arith.truncf %31 : vector<8x128xf32> to vector<8x128xbf16>
    %c0_29 = arith.constant 0 : index
    %c0_30 = arith.constant 0 : index
    %33 = vector.load %arg14[%c0_29, %c0_30] : memref<8x512xbf16, #tpu.memory_space<vmem>>, vector<8x128xbf16>
    tpu.vector_store %arg14[%c0_29, %c0_30], %32 {strides = array<i32>} : memref<8x512xbf16, #tpu.memory_space<vmem>>, vector<8x128xbf16>,
    %c8_31 = arith.constant 8 : index
    %c64_32 = arith.constant 64 : index
    %34 = vector.load %arg13[%c8_31, %c64_32] : memref<64x256xf32, #tpu.memory_space<vmem>>, vector<8x128xf32>
    %35 = arith.truncf %34 : vector<8x128xf32> to vector<8x128xbf16>
    %c0_33 = arith.constant 0 : index
    %c128_34 = arith.constant 128 : index
    %36 = vector.load %arg14[%c0_33, %c128_34] : memref<8x512xbf16, #tpu.memory_space<vmem>>, vector<8x128xbf16>
    tpu.vector_store %arg14[%c0_33, %c128_34], %35 {strides = array<i32>} : memref<8x512xbf16, #tpu.memory_space<vmem>>, vector<8x128xbf16>,
    %c16_35 = arith.constant 16 : index
    %c64_36 = arith.constant 64 : index
    %37 = vector.load %arg13[%c16_35, %c64_36] : memref<64x256xf32, #tpu.memory_space<vmem>>, vector<8x128xf32>
    %38 = arith.truncf %37 : vector<8x128xf32> to vector<8x128xbf16>
    %c0_37 = arith.constant 0 : index
    %c256_38 = arith.constant 256 : index
    %39 = vector.load %arg14[%c0_37, %c256_38] : memref<8x512xbf16, #tpu.memory_space<vmem>>, vector<8x128xbf16>
    tpu.vector_store %arg14[%c0_37, %c256_38], %38 {strides = array<i32>} : memref<8x512xbf16, #tpu.memory_space<vmem>>, vector<8x128xbf16>,
    %c24_39 = arith.constant 24 : index
    %c64_40 = arith.constant 64 : index
    %40 = vector.load %arg13[%c24_39, %c64_40] : memref<64x256xf32, #tpu.memory_space<vmem>>, vector<8x128xf32>
    %41 = arith.truncf %40 : vector<8x128xf32> to vector<8x128xbf16>
    %c0_41 = arith.constant 0 : index
    %c384_42 = arith.constant 384 : index
    %42 = vector.load %arg14[%c0_41, %c384_42] : memref<8x512xbf16, #tpu.memory_space<vmem>>, vector<8x128xbf16>
    tpu.vector_store %arg14[%c0_41, %c384_42], %41 {strides = array<i32>} : memref<8x512xbf16, #tpu.memory_space<vmem>>, vector<8x128xbf16>,
    %c0_43 = arith.constant 0 : index
    %c0_44 = arith.constant 0 : index
    %43 = vector.load %arg14[%c0_43, %c0_44] : memref<8x512xbf16, #tpu.memory_space<vmem>>, vector<8x512xbf16>
    %c0_45 = arith.constant 0 : index
    %c0_46 = arith.constant 0 : index
    %44 = vector.load %arg4[%c0_45, %c0_46] : memref<512x64xbf16, #tpu.memory_space<vmem>>, vector<512x64xbf16>
    %cst_47 = arith.constant dense<0.000000e+00> : vector<8x64xf32>
    %45 = tpu.matmul %43, %44, %cst_47 {dimension_numbers = #tpu.dot_dimension_numbers<[1], [0], [0], [1], [0, 0, 1, 1], [], []>} : vector<8x512xbf16>, vector<512x64xbf16>, vector<8x64xf32> -> vector<8x64xf32>
    %c0_48 = arith.constant 0 : index
    %c0_49 = arith.constant 0 : index
    %46 = vector.load %arg5[%c0_48, %c0_49] : memref<1x64xf32, #tpu.memory_space<vmem>>, vector<1x64xf32>
    %47 = vector.broadcast %46 : vector<1x64xf32> to vector<8x64xf32>
    %48 = arith.addf %45, %47 : vector<8x64xf32>
    %cst_50 = arith.constant 0.000000e+00 : f32
    %49 = vector.broadcast %cst_50 : f32 to vector<8x64xf32>
    %50 = arith.maximumf %48, %49 : vector<8x64xf32>
    %51 = arith.truncf %50 : vector<8x64xf32> to vector<8x64xbf16>
    %c0_51 = arith.constant 0 : index
    %c64_52 = arith.constant 64 : index
    %52 = vector.load %arg15[%c0_51, %c64_52] : memref<8x576xbf16, #tpu.memory_space<vmem>>, vector<8x64xbf16>
    tpu.vector_store %arg15[%c0_51, %c64_52], %51 {strides = array<i32>} : memref<8x576xbf16, #tpu.memory_space<vmem>>, vector<8x64xbf16>,
    %c0_53 = arith.constant 0 : index
    %c128_54 = arith.constant 128 : index
    %53 = vector.load %arg13[%c0_53, %c128_54] : memref<64x256xf32, #tpu.memory_space<vmem>>, vector<8x128xf32>
    %54 = arith.truncf %53 : vector<8x128xf32> to vector<8x128xbf16>
    %c0_55 = arith.constant 0 : index
    %c0_56 = arith.constant 0 : index
    %55 = vector.load %arg14[%c0_55, %c0_56] : memref<8x512xbf16, #tpu.memory_space<vmem>>, vector<8x128xbf16>
    tpu.vector_store %arg14[%c0_55, %c0_56], %54 {strides = array<i32>} : memref<8x512xbf16, #tpu.memory_space<vmem>>, vector<8x128xbf16>,
    %c8_57 = arith.constant 8 : index
    %c128_58 = arith.constant 128 : index
    %56 = vector.load %arg13[%c8_57, %c128_58] : memref<64x256xf32, #tpu.memory_space<vmem>>, vector<8x128xf32>
    %57 = arith.truncf %56 : vector<8x128xf32> to vector<8x128xbf16>
    %c0_59 = arith.constant 0 : index
    %c128_60 = arith.constant 128 : index
    %58 = vector.load %arg14[%c0_59, %c128_60] : memref<8x512xbf16, #tpu.memory_space<vmem>>, vector<8x128xbf16>
    tpu.vector_store %arg14[%c0_59, %c128_60], %57 {strides = array<i32>} : memref<8x512xbf16, #tpu.memory_space<vmem>>, vector<8x128xbf16>,
    %c16_61 = arith.constant 16 : index
    %c128_62 = arith.constant 128 : index
    %59 = vector.load %arg13[%c16_61, %c128_62] : memref<64x256xf32, #tpu.memory_space<vmem>>, vector<8x128xf32>
    %60 = arith.truncf %59 : vector<8x128xf32> to vector<8x128xbf16>
    %c0_63 = arith.constant 0 : index
    %c256_64 = arith.constant 256 : index
    %61 = vector.load %arg14[%c0_63, %c256_64] : memref<8x512xbf16, #tpu.memory_space<vmem>>, vector<8x128xbf16>
    tpu.vector_store %arg14[%c0_63, %c256_64], %60 {strides = array<i32>} : memref<8x512xbf16, #tpu.memory_space<vmem>>, vector<8x128xbf16>,
    %c24_65 = arith.constant 24 : index
    %c128_66 = arith.constant 128 : index
    %62 = vector.load %arg13[%c24_65, %c128_66] : memref<64x256xf32, #tpu.memory_space<vmem>>, vector<8x128xf32>
    %63 = arith.truncf %62 : vector<8x128xf32> to vector<8x128xbf16>
    %c0_67 = arith.constant 0 : index
    %c384_68 = arith.constant 384 : index
    %64 = vector.load %arg14[%c0_67, %c384_68] : memref<8x512xbf16, #tpu.memory_space<vmem>>, vector<8x128xbf16>
    tpu.vector_store %arg14[%c0_67, %c384_68], %63 {strides = array<i32>} : memref<8x512xbf16, #tpu.memory_space<vmem>>, vector<8x128xbf16>,
    %c0_69 = arith.constant 0 : index
    %c0_70 = arith.constant 0 : index
    %65 = vector.load %arg14[%c0_69, %c0_70] : memref<8x512xbf16, #tpu.memory_space<vmem>>, vector<8x512xbf16>
    %c0_71 = arith.constant 0 : index
    %c0_72 = arith.constant 0 : index
    %66 = vector.load %arg4[%c0_71, %c0_72] : memref<512x64xbf16, #tpu.memory_space<vmem>>, vector<512x64xbf16>
    %cst_73 = arith.constant dense<0.000000e+00> : vector<8x64xf32>
    %67 = tpu.matmul %65, %66, %cst_73 {dimension_numbers = #tpu.dot_dimension_numbers<[1], [0], [0], [1], [0, 0, 1, 1], [], []>} : vector<8x512xbf16>, vector<512x64xbf16>, vector<8x64xf32> -> vector<8x64xf32>
    %c0_74 = arith.constant 0 : index
    %c0_75 = arith.constant 0 : index
    %68 = vector.load %arg5[%c0_74, %c0_75] : memref<1x64xf32, #tpu.memory_space<vmem>>, vector<1x64xf32>
    %69 = vector.broadcast %68 : vector<1x64xf32> to vector<8x64xf32>
    %70 = arith.addf %67, %69 : vector<8x64xf32>
    %cst_76 = arith.constant 0.000000e+00 : f32
    %71 = vector.broadcast %cst_76 : f32 to vector<8x64xf32>
    %72 = arith.maximumf %70, %71 : vector<8x64xf32>
    %73 = arith.truncf %72 : vector<8x64xf32> to vector<8x64xbf16>
    %c0_77 = arith.constant 0 : index
    %c128_78 = arith.constant 128 : index
    %74 = vector.load %arg15[%c0_77, %c128_78] : memref<8x576xbf16, #tpu.memory_space<vmem>>, vector<8x64xbf16>
    tpu.vector_store %arg15[%c0_77, %c128_78], %73 {strides = array<i32>} : memref<8x576xbf16, #tpu.memory_space<vmem>>, vector<8x64xbf16>,
    %c16_79 = arith.constant 16 : index
    %c0_80 = arith.constant 0 : index
    %75 = vector.load %arg13[%c16_79, %c0_80] : memref<64x256xf32, #tpu.memory_space<vmem>>, vector<8x128xf32>
    %76 = arith.truncf %75 : vector<8x128xf32> to vector<8x128xbf16>
    %c0_81 = arith.constant 0 : index
    %c0_82 = arith.constant 0 : index
    %77 = vector.load %arg14[%c0_81, %c0_82] : memref<8x512xbf16, #tpu.memory_space<vmem>>, vector<8x128xbf16>
    tpu.vector_store %arg14[%c0_81, %c0_82], %76 {strides = array<i32>} : memref<8x512xbf16, #tpu.memory_space<vmem>>, vector<8x128xbf16>,
    %c24_83 = arith.constant 24 : index
    %c0_84 = arith.constant 0 : index
    %78 = vector.load %arg13[%c24_83, %c0_84] : memref<64x256xf32, #tpu.memory_space<vmem>>, vector<8x128xf32>
    %79 = arith.truncf %78 : vector<8x128xf32> to vector<8x128xbf16>
    %c0_85 = arith.constant 0 : index
    %c128_86 = arith.constant 128 : index
    %80 = vector.load %arg14[%c0_85, %c128_86] : memref<8x512xbf16, #tpu.memory_space<vmem>>, vector<8x128xbf16>
    tpu.vector_store %arg14[%c0_85, %c128_86], %79 {strides = array<i32>} : memref<8x512xbf16, #tpu.memory_space<vmem>>, vector<8x128xbf16>,
    %c32 = arith.constant 32 : index
    %c0_87 = arith.constant 0 : index
    %81 = vector.load %arg13[%c32, %c0_87] : memref<64x256xf32, #tpu.memory_space<vmem>>, vector<8x128xf32>
    %82 = arith.truncf %81 : vector<8x128xf32> to vector<8x128xbf16>
    %c0_88 = arith.constant 0 : index
    %c256_89 = arith.constant 256 : index
    %83 = vector.load %arg14[%c0_88, %c256_89] : memref<8x512xbf16, #tpu.memory_space<vmem>>, vector<8x128xbf16>
    tpu.vector_store %arg14[%c0_88, %c256_89], %82 {strides = array<i32>} : memref<8x512xbf16, #tpu.memory_space<vmem>>, vector<8x128xbf16>,
    %c40 = arith.constant 40 : index
    %c0_90 = arith.constant 0 : index
    %84 = vector.load %arg13[%c40, %c0_90] : memref<64x256xf32, #tpu.memory_space<vmem>>, vector<8x128xf32>
    %85 = arith.truncf %84 : vector<8x128xf32> to vector<8x128xbf16>
    %c0_91 = arith.constant 0 : index
    %c384_92 = arith.constant 384 : index
    %86 = vector.load %arg14[%c0_91, %c384_92] : memref<8x512xbf16, #tpu.memory_space<vmem>>, vector<8x128xbf16>
    tpu.vector_store %arg14[%c0_91, %c384_92], %85 {strides = array<i32>} : memref<8x512xbf16, #tpu.memory_space<vmem>>, vector<8x128xbf16>,
    %c0_93 = arith.constant 0 : index
    %c0_94 = arith.constant 0 : index
    %87 = vector.load %arg14[%c0_93, %c0_94] : memref<8x512xbf16, #tpu.memory_space<vmem>>, vector<8x512xbf16>
    %c0_95 = arith.constant 0 : index
    %c0_96 = arith.constant 0 : index
    %88 = vector.load %arg4[%c0_95, %c0_96] : memref<512x64xbf16, #tpu.memory_space<vmem>>, vector<512x64xbf16>
    %cst_97 = arith.constant dense<0.000000e+00> : vector<8x64xf32>
    %89 = tpu.matmul %87, %88, %cst_97 {dimension_numbers = #tpu.dot_dimension_numbers<[1], [0], [0], [1], [0, 0, 1, 1], [], []>} : vector<8x512xbf16>, vector<512x64xbf16>, vector<8x64xf32> -> vector<8x64xf32>
    %c0_98 = arith.constant 0 : index
    %c0_99 = arith.constant 0 : index
    %90 = vector.load %arg5[%c0_98, %c0_99] : memref<1x64xf32, #tpu.memory_space<vmem>>, vector<1x64xf32>
    %91 = vector.broadcast %90 : vector<1x64xf32> to vector<8x64xf32>
    %92 = arith.addf %89, %91 : vector<8x64xf32>
    %cst_100 = arith.constant 0.000000e+00 : f32
    %93 = vector.broadcast %cst_100 : f32 to vector<8x64xf32>
    %94 = arith.maximumf %92, %93 : vector<8x64xf32>
    %95 = arith.truncf %94 : vector<8x64xf32> to vector<8x64xbf16>
    %c0_101 = arith.constant 0 : index
    %c192 = arith.constant 192 : index
    %96 = vector.load %arg15[%c0_101, %c192] : memref<8x576xbf16, #tpu.memory_space<vmem>>, vector<8x64xbf16>
    tpu.vector_store %arg15[%c0_101, %c192], %95 {strides = array<i32>} : memref<8x576xbf16, #tpu.memory_space<vmem>>, vector<8x64xbf16>,
    %c16_102 = arith.constant 16 : index
    %c64_103 = arith.constant 64 : index
    %97 = vector.load %arg13[%c16_102, %c64_103] : memref<64x256xf32, #tpu.memory_space<vmem>>, vector<8x128xf32>
    %98 = arith.truncf %97 : vector<8x128xf32> to vector<8x128xbf16>
    %c0_104 = arith.constant 0 : index
    %c0_105 = arith.constant 0 : index
    %99 = vector.load %arg14[%c0_104, %c0_105] : memref<8x512xbf16, #tpu.memory_space<vmem>>, vector<8x128xbf16>
    tpu.vector_store %arg14[%c0_104, %c0_105], %98 {strides = array<i32>} : memref<8x512xbf16, #tpu.memory_space<vmem>>, vector<8x128xbf16>,
    %c24_106 = arith.constant 24 : index
    %c64_107 = arith.constant 64 : index
    %100 = vector.load %arg13[%c24_106, %c64_107] : memref<64x256xf32, #tpu.memory_space<vmem>>, vector<8x128xf32>
    %101 = arith.truncf %100 : vector<8x128xf32> to vector<8x128xbf16>
    %c0_108 = arith.constant 0 : index
    %c128_109 = arith.constant 128 : index
    %102 = vector.load %arg14[%c0_108, %c128_109] : memref<8x512xbf16, #tpu.memory_space<vmem>>, vector<8x128xbf16>
    tpu.vector_store %arg14[%c0_108, %c128_109], %101 {strides = array<i32>} : memref<8x512xbf16, #tpu.memory_space<vmem>>, vector<8x128xbf16>,
    %c32_110 = arith.constant 32 : index
    %c64_111 = arith.constant 64 : index
    %103 = vector.load %arg13[%c32_110, %c64_111] : memref<64x256xf32, #tpu.memory_space<vmem>>, vector<8x128xf32>
    %104 = arith.truncf %103 : vector<8x128xf32> to vector<8x128xbf16>
    %c0_112 = arith.constant 0 : index
    %c256_113 = arith.constant 256 : index
    %105 = vector.load %arg14[%c0_112, %c256_113] : memref<8x512xbf16, #tpu.memory_space<vmem>>, vector<8x128xbf16>
    tpu.vector_store %arg14[%c0_112, %c256_113], %104 {strides = array<i32>} : memref<8x512xbf16, #tpu.memory_space<vmem>>, vector<8x128xbf16>,
    %c40_114 = arith.constant 40 : index
    %c64_115 = arith.constant 64 : index
    %106 = vector.load %arg13[%c40_114, %c64_115] : memref<64x256xf32, #tpu.memory_space<vmem>>, vector<8x128xf32>
    %107 = arith.truncf %106 : vector<8x128xf32> to vector<8x128xbf16>
    %c0_116 = arith.constant 0 : index
    %c384_117 = arith.constant 384 : index
    %108 = vector.load %arg14[%c0_116, %c384_117] : memref<8x512xbf16, #tpu.memory_space<vmem>>, vector<8x128xbf16>
    tpu.vector_store %arg14[%c0_116, %c384_117], %107 {strides = array<i32>} : memref<8x512xbf16, #tpu.memory_space<vmem>>, vector<8x128xbf16>,
    %c0_118 = arith.constant 0 : index
    %c0_119 = arith.constant 0 : index
    %109 = vector.load %arg14[%c0_118, %c0_119] : memref<8x512xbf16, #tpu.memory_space<vmem>>, vector<8x512xbf16>
    %c0_120 = arith.constant 0 : index
    %c0_121 = arith.constant 0 : index
    %110 = vector.load %arg4[%c0_120, %c0_121] : memref<512x64xbf16, #tpu.memory_space<vmem>>, vector<512x64xbf16>
    %cst_122 = arith.constant dense<0.000000e+00> : vector<8x64xf32>
    %111 = tpu.matmul %109, %110, %cst_122 {dimension_numbers = #tpu.dot_dimension_numbers<[1], [0], [0], [1], [0, 0, 1, 1], [], []>} : vector<8x512xbf16>, vector<512x64xbf16>, vector<8x64xf32> -> vector<8x64xf32>
    %c0_123 = arith.constant 0 : index
    %c0_124 = arith.constant 0 : index
    %112 = vector.load %arg5[%c0_123, %c0_124] : memref<1x64xf32, #tpu.memory_space<vmem>>, vector<1x64xf32>
    %113 = vector.broadcast %112 : vector<1x64xf32> to vector<8x64xf32>
    %114 = arith.addf %111, %113 : vector<8x64xf32>
    %cst_125 = arith.constant 0.000000e+00 : f32
    %115 = vector.broadcast %cst_125 : f32 to vector<8x64xf32>
    %116 = arith.maximumf %114, %115 : vector<8x64xf32>
    %117 = arith.truncf %116 : vector<8x64xf32> to vector<8x64xbf16>
    %c0_126 = arith.constant 0 : index
    %c256_127 = arith.constant 256 : index
    %118 = vector.load %arg15[%c0_126, %c256_127] : memref<8x576xbf16, #tpu.memory_space<vmem>>, vector<8x64xbf16>
    tpu.vector_store %arg15[%c0_126, %c256_127], %117 {strides = array<i32>} : memref<8x576xbf16, #tpu.memory_space<vmem>>, vector<8x64xbf16>,
    %c16_128 = arith.constant 16 : index
    %c128_129 = arith.constant 128 : index
    %119 = vector.load %arg13[%c16_128, %c128_129] : memref<64x256xf32, #tpu.memory_space<vmem>>, vector<8x128xf32>
    %120 = arith.truncf %119 : vector<8x128xf32> to vector<8x128xbf16>
    %c0_130 = arith.constant 0 : index
    %c0_131 = arith.constant 0 : index
    %121 = vector.load %arg14[%c0_130, %c0_131] : memref<8x512xbf16, #tpu.memory_space<vmem>>, vector<8x128xbf16>
    tpu.vector_store %arg14[%c0_130, %c0_131], %120 {strides = array<i32>} : memref<8x512xbf16, #tpu.memory_space<vmem>>, vector<8x128xbf16>,
    %c24_132 = arith.constant 24 : index
    %c128_133 = arith.constant 128 : index
    %122 = vector.load %arg13[%c24_132, %c128_133] : memref<64x256xf32, #tpu.memory_space<vmem>>, vector<8x128xf32>
    %123 = arith.truncf %122 : vector<8x128xf32> to vector<8x128xbf16>
    %c0_134 = arith.constant 0 : index
    %c128_135 = arith.constant 128 : index
    %124 = vector.load %arg14[%c0_134, %c128_135] : memref<8x512xbf16, #tpu.memory_space<vmem>>, vector<8x128xbf16>
    tpu.vector_store %arg14[%c0_134, %c128_135], %123 {strides = array<i32>} : memref<8x512xbf16, #tpu.memory_space<vmem>>, vector<8x128xbf16>,
    %c32_136 = arith.constant 32 : index
    %c128_137 = arith.constant 128 : index
    %125 = vector.load %arg13[%c32_136, %c128_137] : memref<64x256xf32, #tpu.memory_space<vmem>>, vector<8x128xf32>
    %126 = arith.truncf %125 : vector<8x128xf32> to vector<8x128xbf16>
    %c0_138 = arith.constant 0 : index
    %c256_139 = arith.constant 256 : index
    %127 = vector.load %arg14[%c0_138, %c256_139] : memref<8x512xbf16, #tpu.memory_space<vmem>>, vector<8x128xbf16>
    tpu.vector_store %arg14[%c0_138, %c256_139], %126 {strides = array<i32>} : memref<8x512xbf16, #tpu.memory_space<vmem>>, vector<8x128xbf16>,
    %c40_140 = arith.constant 40 : index
    %c128_141 = arith.constant 128 : index
    %128 = vector.load %arg13[%c40_140, %c128_141] : memref<64x256xf32, #tpu.memory_space<vmem>>, vector<8x128xf32>
    %129 = arith.truncf %128 : vector<8x128xf32> to vector<8x128xbf16>
    %c0_142 = arith.constant 0 : index
    %c384_143 = arith.constant 384 : index
    %130 = vector.load %arg14[%c0_142, %c384_143] : memref<8x512xbf16, #tpu.memory_space<vmem>>, vector<8x128xbf16>
    tpu.vector_store %arg14[%c0_142, %c384_143], %129 {strides = array<i32>} : memref<8x512xbf16, #tpu.memory_space<vmem>>, vector<8x128xbf16>,
    %c0_144 = arith.constant 0 : index
    %c0_145 = arith.constant 0 : index
    %131 = vector.load %arg14[%c0_144, %c0_145] : memref<8x512xbf16, #tpu.memory_space<vmem>>, vector<8x512xbf16>
    %c0_146 = arith.constant 0 : index
    %c0_147 = arith.constant 0 : index
    %132 = vector.load %arg4[%c0_146, %c0_147] : memref<512x64xbf16, #tpu.memory_space<vmem>>, vector<512x64xbf16>
    %cst_148 = arith.constant dense<0.000000e+00> : vector<8x64xf32>
    %133 = tpu.matmul %131, %132, %cst_148 {dimension_numbers = #tpu.dot_dimension_numbers<[1], [0], [0], [1], [0, 0, 1, 1], [], []>} : vector<8x512xbf16>, vector<512x64xbf16>, vector<8x64xf32> -> vector<8x64xf32>
    %c0_149 = arith.constant 0 : index
    %c0_150 = arith.constant 0 : index
    %134 = vector.load %arg5[%c0_149, %c0_150] : memref<1x64xf32, #tpu.memory_space<vmem>>, vector<1x64xf32>
    %135 = vector.broadcast %134 : vector<1x64xf32> to vector<8x64xf32>
    %136 = arith.addf %133, %135 : vector<8x64xf32>
    %cst_151 = arith.constant 0.000000e+00 : f32
    %137 = vector.broadcast %cst_151 : f32 to vector<8x64xf32>
    %138 = arith.maximumf %136, %137 : vector<8x64xf32>
    %139 = arith.truncf %138 : vector<8x64xf32> to vector<8x64xbf16>
    %c0_152 = arith.constant 0 : index
    %c320 = arith.constant 320 : index
    %140 = vector.load %arg15[%c0_152, %c320] : memref<8x576xbf16, #tpu.memory_space<vmem>>, vector<8x64xbf16>
    tpu.vector_store %arg15[%c0_152, %c320], %139 {strides = array<i32>} : memref<8x576xbf16, #tpu.memory_space<vmem>>, vector<8x64xbf16>,
    %c32_153 = arith.constant 32 : index
    %c0_154 = arith.constant 0 : index
    %141 = vector.load %arg13[%c32_153, %c0_154] : memref<64x256xf32, #tpu.memory_space<vmem>>, vector<8x128xf32>
    %142 = arith.truncf %141 : vector<8x128xf32> to vector<8x128xbf16>
    %c0_155 = arith.constant 0 : index
    %c0_156 = arith.constant 0 : index
    %143 = vector.load %arg14[%c0_155, %c0_156] : memref<8x512xbf16, #tpu.memory_space<vmem>>, vector<8x128xbf16>
    tpu.vector_store %arg14[%c0_155, %c0_156], %142 {strides = array<i32>} : memref<8x512xbf16, #tpu.memory_space<vmem>>, vector<8x128xbf16>,
    %c40_157 = arith.constant 40 : index
    %c0_158 = arith.constant 0 : index
    %144 = vector.load %arg13[%c40_157, %c0_158] : memref<64x256xf32, #tpu.memory_space<vmem>>, vector<8x128xf32>
    %145 = arith.truncf %144 : vector<8x128xf32> to vector<8x128xbf16>
    %c0_159 = arith.constant 0 : index
    %c128_160 = arith.constant 128 : index
    %146 = vector.load %arg14[%c0_159, %c128_160] : memref<8x512xbf16, #tpu.memory_space<vmem>>, vector<8x128xbf16>
    tpu.vector_store %arg14[%c0_159, %c128_160], %145 {strides = array<i32>} : memref<8x512xbf16, #tpu.memory_space<vmem>>, vector<8x128xbf16>,
    %c48 = arith.constant 48 : index
    %c0_161 = arith.constant 0 : index
    %147 = vector.load %arg13[%c48, %c0_161] : memref<64x256xf32, #tpu.memory_space<vmem>>, vector<8x128xf32>
    %148 = arith.truncf %147 : vector<8x128xf32> to vector<8x128xbf16>
    %c0_162 = arith.constant 0 : index
    %c256_163 = arith.constant 256 : index
    %149 = vector.load %arg14[%c0_162, %c256_163] : memref<8x512xbf16, #tpu.memory_space<vmem>>, vector<8x128xbf16>
    tpu.vector_store %arg14[%c0_162, %c256_163], %148 {strides = array<i32>} : memref<8x512xbf16, #tpu.memory_space<vmem>>, vector<8x128xbf16>,
    %c56 = arith.constant 56 : index
    %c0_164 = arith.constant 0 : index
    %150 = vector.load %arg13[%c56, %c0_164] : memref<64x256xf32, #tpu.memory_space<vmem>>, vector<8x128xf32>
    %151 = arith.truncf %150 : vector<8x128xf32> to vector<8x128xbf16>
    %c0_165 = arith.constant 0 : index
    %c384_166 = arith.constant 384 : index
    %152 = vector.load %arg14[%c0_165, %c384_166] : memref<8x512xbf16, #tpu.memory_space<vmem>>, vector<8x128xbf16>
    tpu.vector_store %arg14[%c0_165, %c384_166], %151 {strides = array<i32>} : memref<8x512xbf16, #tpu.memory_space<vmem>>, vector<8x128xbf16>,
    %c0_167 = arith.constant 0 : index
    %c0_168 = arith.constant 0 : index
    %153 = vector.load %arg14[%c0_167, %c0_168] : memref<8x512xbf16, #tpu.memory_space<vmem>>, vector<8x512xbf16>
    %c0_169 = arith.constant 0 : index
    %c0_170 = arith.constant 0 : index
    %154 = vector.load %arg4[%c0_169, %c0_170] : memref<512x64xbf16, #tpu.memory_space<vmem>>, vector<512x64xbf16>
    %cst_171 = arith.constant dense<0.000000e+00> : vector<8x64xf32>
    %155 = tpu.matmul %153, %154, %cst_171 {dimension_numbers = #tpu.dot_dimension_numbers<[1], [0], [0], [1], [0, 0, 1, 1], [], []>} : vector<8x512xbf16>, vector<512x64xbf16>, vector<8x64xf32> -> vector<8x64xf32>
    %c0_172 = arith.constant 0 : index
    %c0_173 = arith.constant 0 : index
    %156 = vector.load %arg5[%c0_172, %c0_173] : memref<1x64xf32, #tpu.memory_space<vmem>>, vector<1x64xf32>
    %157 = vector.broadcast %156 : vector<1x64xf32> to vector<8x64xf32>
    %158 = arith.addf %155, %157 : vector<8x64xf32>
    %cst_174 = arith.constant 0.000000e+00 : f32
    %159 = vector.broadcast %cst_174 : f32 to vector<8x64xf32>
    %160 = arith.maximumf %158, %159 : vector<8x64xf32>
    %161 = arith.truncf %160 : vector<8x64xf32> to vector<8x64xbf16>
    %c0_175 = arith.constant 0 : index
    %c384_176 = arith.constant 384 : index
    %162 = vector.load %arg15[%c0_175, %c384_176] : memref<8x576xbf16, #tpu.memory_space<vmem>>, vector<8x64xbf16>
    tpu.vector_store %arg15[%c0_175, %c384_176], %161 {strides = array<i32>} : memref<8x576xbf16, #tpu.memory_space<vmem>>, vector<8x64xbf16>,
    %c32_177 = arith.constant 32 : index
    %c64_178 = arith.constant 64 : index
    %163 = vector.load %arg13[%c32_177, %c64_178] : memref<64x256xf32, #tpu.memory_space<vmem>>, vector<8x128xf32>
    %164 = arith.truncf %163 : vector<8x128xf32> to vector<8x128xbf16>
    %c0_179 = arith.constant 0 : index
    %c0_180 = arith.constant 0 : index
    %165 = vector.load %arg14[%c0_179, %c0_180] : memref<8x512xbf16, #tpu.memory_space<vmem>>, vector<8x128xbf16>
    tpu.vector_store %arg14[%c0_179, %c0_180], %164 {strides = array<i32>} : memref<8x512xbf16, #tpu.memory_space<vmem>>, vector<8x128xbf16>,
    %c40_181 = arith.constant 40 : index
    %c64_182 = arith.constant 64 : index
    %166 = vector.load %arg13[%c40_181, %c64_182] : memref<64x256xf32, #tpu.memory_space<vmem>>, vector<8x128xf32>
    %167 = arith.truncf %166 : vector<8x128xf32> to vector<8x128xbf16>
    %c0_183 = arith.constant 0 : index
    %c128_184 = arith.constant 128 : index
    %168 = vector.load %arg14[%c0_183, %c128_184] : memref<8x512xbf16, #tpu.memory_space<vmem>>, vector<8x128xbf16>
    tpu.vector_store %arg14[%c0_183, %c128_184], %167 {strides = array<i32>} : memref<8x512xbf16, #tpu.memory_space<vmem>>, vector<8x128xbf16>,
    %c48_185 = arith.constant 48 : index
    %c64_186 = arith.constant 64 : index
    %169 = vector.load %arg13[%c48_185, %c64_186] : memref<64x256xf32, #tpu.memory_space<vmem>>, vector<8x128xf32>
    %170 = arith.truncf %169 : vector<8x128xf32> to vector<8x128xbf16>
    %c0_187 = arith.constant 0 : index
    %c256_188 = arith.constant 256 : index
    %171 = vector.load %arg14[%c0_187, %c256_188] : memref<8x512xbf16, #tpu.memory_space<vmem>>, vector<8x128xbf16>
    tpu.vector_store %arg14[%c0_187, %c256_188], %170 {strides = array<i32>} : memref<8x512xbf16, #tpu.memory_space<vmem>>, vector<8x128xbf16>,
    %c56_189 = arith.constant 56 : index
    %c64_190 = arith.constant 64 : index
    %172 = vector.load %arg13[%c56_189, %c64_190] : memref<64x256xf32, #tpu.memory_space<vmem>>, vector<8x128xf32>
    %173 = arith.truncf %172 : vector<8x128xf32> to vector<8x128xbf16>
    %c0_191 = arith.constant 0 : index
    %c384_192 = arith.constant 384 : index
    %174 = vector.load %arg14[%c0_191, %c384_192] : memref<8x512xbf16, #tpu.memory_space<vmem>>, vector<8x128xbf16>
    tpu.vector_store %arg14[%c0_191, %c384_192], %173 {strides = array<i32>} : memref<8x512xbf16, #tpu.memory_space<vmem>>, vector<8x128xbf16>,
    %c0_193 = arith.constant 0 : index
    %c0_194 = arith.constant 0 : index
    %175 = vector.load %arg14[%c0_193, %c0_194] : memref<8x512xbf16, #tpu.memory_space<vmem>>, vector<8x512xbf16>
    %c0_195 = arith.constant 0 : index
    %c0_196 = arith.constant 0 : index
    %176 = vector.load %arg4[%c0_195, %c0_196] : memref<512x64xbf16, #tpu.memory_space<vmem>>, vector<512x64xbf16>
    %cst_197 = arith.constant dense<0.000000e+00> : vector<8x64xf32>
    %177 = tpu.matmul %175, %176, %cst_197 {dimension_numbers = #tpu.dot_dimension_numbers<[1], [0], [0], [1], [0, 0, 1, 1], [], []>} : vector<8x512xbf16>, vector<512x64xbf16>, vector<8x64xf32> -> vector<8x64xf32>
    %c0_198 = arith.constant 0 : index
    %c0_199 = arith.constant 0 : index
    %178 = vector.load %arg5[%c0_198, %c0_199] : memref<1x64xf32, #tpu.memory_space<vmem>>, vector<1x64xf32>
    %179 = vector.broadcast %178 : vector<1x64xf32> to vector<8x64xf32>
    %180 = arith.addf %177, %179 : vector<8x64xf32>
    %cst_200 = arith.constant 0.000000e+00 : f32
    %181 = vector.broadcast %cst_200 : f32 to vector<8x64xf32>
    %182 = arith.maximumf %180, %181 : vector<8x64xf32>
    %183 = arith.truncf %182 : vector<8x64xf32> to vector<8x64xbf16>
    %c0_201 = arith.constant 0 : index
    %c448 = arith.constant 448 : index
    %184 = vector.load %arg15[%c0_201, %c448] : memref<8x576xbf16, #tpu.memory_space<vmem>>, vector<8x64xbf16>
    tpu.vector_store %arg15[%c0_201, %c448], %183 {strides = array<i32>} : memref<8x576xbf16, #tpu.memory_space<vmem>>, vector<8x64xbf16>,
    %c32_202 = arith.constant 32 : index
    %c128_203 = arith.constant 128 : index
    %185 = vector.load %arg13[%c32_202, %c128_203] : memref<64x256xf32, #tpu.memory_space<vmem>>, vector<8x128xf32>
    %186 = arith.truncf %185 : vector<8x128xf32> to vector<8x128xbf16>
    %c0_204 = arith.constant 0 : index
    %c0_205 = arith.constant 0 : index
    %187 = vector.load %arg14[%c0_204, %c0_205] : memref<8x512xbf16, #tpu.memory_space<vmem>>, vector<8x128xbf16>
    tpu.vector_store %arg14[%c0_204, %c0_205], %186 {strides = array<i32>} : memref<8x512xbf16, #tpu.memory_space<vmem>>, vector<8x128xbf16>,
    %c40_206 = arith.constant 40 : index
    %c128_207 = arith.constant 128 : index
    %188 = vector.load %arg13[%c40_206, %c128_207] : memref<64x256xf32, #tpu.memory_space<vmem>>, vector<8x128xf32>
    %189 = arith.truncf %188 : vector<8x128xf32> to vector<8x128xbf16>
    %c0_208 = arith.constant 0 : index
    %c128_209 = arith.constant 128 : index
    %190 = vector.load %arg14[%c0_208, %c128_209] : memref<8x512xbf16, #tpu.memory_space<vmem>>, vector<8x128xbf16>
    tpu.vector_store %arg14[%c0_208, %c128_209], %189 {strides = array<i32>} : memref<8x512xbf16, #tpu.memory_space<vmem>>, vector<8x128xbf16>,
    %c48_210 = arith.constant 48 : index
    %c128_211 = arith.constant 128 : index
    %191 = vector.load %arg13[%c48_210, %c128_211] : memref<64x256xf32, #tpu.memory_space<vmem>>, vector<8x128xf32>
    %192 = arith.truncf %191 : vector<8x128xf32> to vector<8x128xbf16>
    %c0_212 = arith.constant 0 : index
    %c256_213 = arith.constant 256 : index
    %193 = vector.load %arg14[%c0_212, %c256_213] : memref<8x512xbf16, #tpu.memory_space<vmem>>, vector<8x128xbf16>
    tpu.vector_store %arg14[%c0_212, %c256_213], %192 {strides = array<i32>} : memref<8x512xbf16, #tpu.memory_space<vmem>>, vector<8x128xbf16>,
    %c56_214 = arith.constant 56 : index
    %c128_215 = arith.constant 128 : index
    %194 = vector.load %arg13[%c56_214, %c128_215] : memref<64x256xf32, #tpu.memory_space<vmem>>, vector<8x128xf32>
    %195 = arith.truncf %194 : vector<8x128xf32> to vector<8x128xbf16>
    %c0_216 = arith.constant 0 : index
    %c384_217 = arith.constant 384 : index
    %196 = vector.load %arg14[%c0_216, %c384_217] : memref<8x512xbf16, #tpu.memory_space<vmem>>, vector<8x128xbf16>
    tpu.vector_store %arg14[%c0_216, %c384_217], %195 {strides = array<i32>} : memref<8x512xbf16, #tpu.memory_space<vmem>>, vector<8x128xbf16>,
    %c0_218 = arith.constant 0 : index
    %c0_219 = arith.constant 0 : index
    %197 = vector.load %arg14[%c0_218, %c0_219] : memref<8x512xbf16, #tpu.memory_space<vmem>>, vector<8x512xbf16>
    %c0_220 = arith.constant 0 : index
    %c0_221 = arith.constant 0 : index
    %198 = vector.load %arg4[%c0_220, %c0_221] : memref<512x64xbf16, #tpu.memory_space<vmem>>, vector<512x64xbf16>
    %cst_222 = arith.constant dense<0.000000e+00> : vector<8x64xf32>
    %199 = tpu.matmul %197, %198, %cst_222 {dimension_numbers = #tpu.dot_dimension_numbers<[1], [0], [0], [1], [0, 0, 1, 1], [], []>} : vector<8x512xbf16>, vector<512x64xbf16>, vector<8x64xf32> -> vector<8x64xf32>
    %c0_223 = arith.constant 0 : index
    %c0_224 = arith.constant 0 : index
    %200 = vector.load %arg5[%c0_223, %c0_224] : memref<1x64xf32, #tpu.memory_space<vmem>>, vector<1x64xf32>
    %201 = vector.broadcast %200 : vector<1x64xf32> to vector<8x64xf32>
    %202 = arith.addf %199, %201 : vector<8x64xf32>
    %cst_225 = arith.constant 0.000000e+00 : f32
    %203 = vector.broadcast %cst_225 : f32 to vector<8x64xf32>
    %204 = arith.maximumf %202, %203 : vector<8x64xf32>
    %205 = arith.truncf %204 : vector<8x64xf32> to vector<8x64xbf16>
    %c0_226 = arith.constant 0 : index
    %c512 = arith.constant 512 : index
    %206 = vector.load %arg15[%c0_226, %c512] : memref<8x576xbf16, #tpu.memory_space<vmem>>, vector<8x64xbf16>
    tpu.vector_store %arg15[%c0_226, %c512], %205 {strides = array<i32>} : memref<8x576xbf16, #tpu.memory_space<vmem>>, vector<8x64xbf16>,
    %c0_227 = arith.constant 0 : index
    %c0_228 = arith.constant 0 : index
    %207 = vector.load %arg15[%c0_227, %c0_228] : memref<8x576xbf16, #tpu.memory_space<vmem>>, vector<8x576xbf16>
    %c0_229 = arith.constant 0 : index
    %c0_230 = arith.constant 0 : index
    %208 = vector.load %arg6[%c0_229, %c0_230] : memref<576x64xbf16, #tpu.memory_space<vmem>>, vector<576x64xbf16>
    %cst_231 = arith.constant dense<0.000000e+00> : vector<8x64xf32>
    %209 = tpu.matmul %207, %208, %cst_231 {dimension_numbers = #tpu.dot_dimension_numbers<[1], [0], [0], [1], [0, 0, 1, 1], [], []>} : vector<8x576xbf16>, vector<576x64xbf16>, vector<8x64xf32> -> vector<8x64xf32>
    %c0_232 = arith.constant 0 : index
    %c0_233 = arith.constant 0 : index
    %210 = vector.load %arg7[%c0_232, %c0_233] : memref<1x64xf32, #tpu.memory_space<vmem>>, vector<1x64xf32>
    %211 = vector.broadcast %210 : vector<1x64xf32> to vector<8x64xf32>
    %212 = arith.addf %209, %211 : vector<8x64xf32>
    %cst_234 = arith.constant 0.000000e+00 : f32
    %213 = vector.broadcast %cst_234 : f32 to vector<8x64xf32>
    %214 = arith.maximumf %212, %213 : vector<8x64xf32>
    %215 = arith.truncf %214 : vector<8x64xf32> to vector<8x64xbf16>
    %c0_235 = arith.constant 0 : index
    %c0_236 = arith.constant 0 : index
    %216 = vector.load %arg8[%c0_235, %c0_236] : memref<64x512xbf16, #tpu.memory_space<vmem>>, vector<64x512xbf16>
    %cst_237 = arith.constant dense<0.000000e+00> : vector<8x512xf32>
    %217 = tpu.matmul %215, %216, %cst_237 {dimension_numbers = #tpu.dot_dimension_numbers<[1], [0], [0], [1], [0, 0, 1, 1], [], []>} : vector<8x64xbf16>, vector<64x512xbf16>, vector<8x512xf32> -> vector<8x512xf32>
    %c0_238 = arith.constant 0 : index
    %c0_239 = arith.constant 0 : index
    %218 = vector.load %arg9[%c0_238, %c0_239] : memref<1x512xf32, #tpu.memory_space<vmem>>, vector<1x512xf32>
    %219 = vector.broadcast %218 : vector<1x512xf32> to vector<8x512xf32>
    %220 = arith.addf %217, %219 : vector<8x512xf32>
    %cst_240 = arith.constant 0.000000e+00 : f32
    %221 = vector.broadcast %cst_240 : f32 to vector<8x512xf32>
    %222 = arith.maximumf %220, %221 : vector<8x512xf32>
    %223 = arith.truncf %222 : vector<8x512xf32> to vector<8x512xbf16>
    %c0_241 = arith.constant 0 : index
    %c0_242 = arith.constant 0 : index
    %224 = vector.load %arg10[%c0_241, %c0_242] : memref<512x128xbf16, #tpu.memory_space<vmem>>, vector<512x128xbf16>
    %cst_243 = arith.constant dense<0.000000e+00> : vector<8x128xf32>
    %225 = tpu.matmul %223, %224, %cst_243 {dimension_numbers = #tpu.dot_dimension_numbers<[1], [0], [0], [1], [0, 0, 1, 1], [], []>} : vector<8x512xbf16>, vector<512x128xbf16>, vector<8x128xf32> -> vector<8x128xf32>
    %c0_244 = arith.constant 0 : index
    %c0_245 = arith.constant 0 : index
    %226 = vector.load %arg11[%c0_244, %c0_245] : memref<1x128xf32, #tpu.memory_space<vmem>>, vector<1x128xf32>
    %227 = vector.broadcast %226 : vector<1x128xf32> to vector<8x128xf32>
    %228 = arith.addf %225, %227 : vector<8x128xf32>
    %229 = tpu.iota {dimensions = array<i32: 1>} : vector<8x128xi32>
    %c16_i32 = arith.constant 16 : i32
    %230 = vector.broadcast %c16_i32 : i32 to vector<8x128xi32>
    %231 = arith.cmpi slt, %229, %230 : vector<8x128xi32>
    %cst_246 = arith.constant 0xFF800000 : f32
    %232 = vector.broadcast %cst_246 : f32 to vector<8x128xf32>
    %233 = arith.select %231, %228, %232 : vector<8x128xi1>, vector<8x128xf32>
    %cst_247 = arith.constant dense<0xFF800000> : vector<8xf32>
    %234 = vector.multi_reduction <maximumf>, %233, %cst_247 [1] : vector<8x128xf32> to vector<8xf32>
    %235 = vector.shape_cast %234 : vector<8xf32> to vector<8x1xf32>
    %236 = vector.broadcast %235 : vector<8x1xf32> to vector<8x128xf32>
    %237 = arith.subf %233, %236 : vector<8x128xf32>
    %238 = math.exp %237 : vector<8x128xf32>
    %cst_248 = arith.constant dense<0.000000e+00> : vector<8xf32>
    %239 = vector.multi_reduction <add>, %238, %cst_248 [1] : vector<8x128xf32> to vector<8xf32>
    %240 = vector.shape_cast %239 : vector<8xf32> to vector<8x1xf32>
    %241 = tpu.reciprocal %240 {approx = true} : vector<8x1xf32> -> vector<8x1xf32>
    %242 = vector.broadcast %241 : vector<8x1xf32> to vector<8x128xf32>
    %243 = arith.mulf %238, %242 : vector<8x128xf32>
    %c16_i32_249 = arith.constant 16 : i32
    %244 = vector.broadcast %c16_i32_249 : i32 to vector<8x128xi32>
    %245 = arith.cmpi eq, %229, %244 : vector<8x128xi32>
    %cst_250 = arith.constant 0.000000e+00 : f32
    %246 = vector.broadcast %cst_250 : f32 to vector<8x128xf32>
    %247 = arith.select %245, %228, %246 : vector<8x128xi1>, vector<8x128xf32>
    %248 = arith.select %231, %243, %247 : vector<8x128xi1>, vector<8x128xf32>
    %c0_251 = arith.constant 0 : index
    %c0_252 = arith.constant 0 : index
    %249 = vector.load %arg12[%c0_251, %c0_252] : memref<8x128xf32, #tpu.memory_space<vmem>>, vector<8x128xf32>
    tpu.vector_store %arg12[%c0_251, %c0_252], %248 {strides = array<i32>} : memref<8x128xf32, #tpu.memory_space<vmem>>, vector<8x128xf32>,
    return
  }
  func.func @transform_0(%arg0: i32) -> (i32, i32) {
    %c0_i32 = arith.constant 0 : i32
    %c0_i32_0 = arith.constant 0 : i32
    return %arg0, %c0_i32 : i32, i32
  }
  func.func @transform_1(%arg0: i32) -> (i32, i32) {
    %c0_i32 = arith.constant 0 : i32
    %c0_i32_0 = arith.constant 0 : i32
    %c0_i32_1 = arith.constant 0 : i32
    return %c0_i32, %c0_i32_0 : i32, i32
  }
  func.func @transform_2(%arg0: i32) -> (i32, i32) {
    %c0_i32 = arith.constant 0 : i32
    %c0_i32_0 = arith.constant 0 : i32
    %c0_i32_1 = arith.constant 0 : i32
    return %c0_i32, %c0_i32_0 : i32, i32
  }
  func.func @transform_3(%arg0: i32) -> (i32, i32) {
    %c0_i32 = arith.constant 0 : i32
    %c0_i32_0 = arith.constant 0 : i32
    %c0_i32_1 = arith.constant 0 : i32
    return %c0_i32, %c0_i32_0 : i32, i32
  }
  func.func @transform_4(%arg0: i32) -> (i32, i32) {
    %c0_i32 = arith.constant 0 : i32
    %c0_i32_0 = arith.constant 0 : i32
    %c0_i32_1 = arith.constant 0 : i32
    return %c0_i32, %c0_i32_0 : i32, i32
  }
  func.func @transform_5(%arg0: i32) -> (i32, i32) {
    %c0_i32 = arith.constant 0 : i32
    %c0_i32_0 = arith.constant 0 : i32
    %c0_i32_1 = arith.constant 0 : i32
    return %c0_i32, %c0_i32_0 : i32, i32
  }
  func.func @transform_6(%arg0: i32) -> (i32, i32) {
    %c0_i32 = arith.constant 0 : i32
    %c0_i32_0 = arith.constant 0 : i32
    %c0_i32_1 = arith.constant 0 : i32
    return %c0_i32, %c0_i32_0 : i32, i32
  }
  func.func @transform_7(%arg0: i32) -> (i32, i32) {
    %c0_i32 = arith.constant 0 : i32
    %c0_i32_0 = arith.constant 0 : i32
    %c0_i32_1 = arith.constant 0 : i32
    return %c0_i32, %c0_i32_0 : i32, i32
  }
  func.func @transform_8(%arg0: i32) -> (i32, i32) {
    %c0_i32 = arith.constant 0 : i32
    %c0_i32_0 = arith.constant 0 : i32
    %c0_i32_1 = arith.constant 0 : i32
    return %c0_i32, %c0_i32_0 : i32, i32
  }
  func.func @transform_9(%arg0: i32) -> (i32, i32) {
    %c0_i32 = arith.constant 0 : i32
    %c0_i32_0 = arith.constant 0 : i32
    %c0_i32_1 = arith.constant 0 : i32
    return %c0_i32, %c0_i32_0 : i32, i32
  }
  func.func @transform_10(%arg0: i32) -> (i32, i32) {
    %c0_i32 = arith.constant 0 : i32
    %c0_i32_0 = arith.constant 0 : i32
    %c0_i32_1 = arith.constant 0 : i32
    return %c0_i32, %c0_i32_0 : i32, i32
  }
  func.func @transform_11(%arg0: i32) -> (i32, i32) {
    %c0_i32 = arith.constant 0 : i32
    %c0_i32_0 = arith.constant 0 : i32
    return %arg0, %c0_i32 : i32, i32
  }
}

</mosaic_0001>

<llo_original>
// kernel: squeeze.1
$region0: #{squeeze.1}
  %s0 = inlined_call_operand.vmem [shape: f32[10], index: 0, kind: input, shape index: {}]
  %s1 = inlined_call_operand.vmem [shape: f32[5,2], index: 1, kind: output, shape index: {}]
  $region1: #{squeeze.1} parent=0
    #allocation0 [shape = 'u8[4096]{0}', space=vmem, size = 0x1000, scoped, tag = 'scoped mem for input reshape']
    %s3 = sshllo.u32 0, 1
    %v4 = vld [vmem:[%s0] sm:%s3]
    %5 = vst [vmem:[#allocation0] sm:%s3] %v4
    %v6 = vld [vmem:[#allocation0] sm:$0x1]
    %vm7 = vcmask 15360
    %8 = vst.msk [vmem:[%s1] sm:$0x1] %vm7, %v6
    %v9 = vld [vmem:[#allocation0] sm:$0x1]
    %10 = vrot.lane.b32.xlu0 %v9, 126
    %v11 = vpop.permute.xlu0 %10
    %vm12 = vcmask 15360
    %s13 = scalar_lea.vmem %s1, 1
    %14 = vst.msk [vmem:[%s13] sm:$0x1] %vm12, %v11
    %v15 = vld [vmem:[#allocation0] sm:$0x1]
    %16 = vrot.lane.b32.xlu0 %v15, 124
    %v17 = vpop.permute.xlu0 %16
    %vm18 = vcmask 15360
    %s19 = scalar_lea.vmem %s1, 2
    %20 = vst.msk [vmem:[%s19] sm:$0x1] %vm18, %v17
    %v21 = vld [vmem:[#allocation0] sm:$0x1]
    %22 = vrot.lane.b32.xlu0 %v21, 122
    %v23 = vpop.permute.xlu0 %22
    %vm24 = vcmask 15360
    %s25 = scalar_lea.vmem %s1, 3
    %26 = vst.msk [vmem:[%s25] sm:$0x1] %vm24, %v23
    %v27 = vld [vmem:[#allocation0] sm:$0x1]
    %28 = vrot.lane.b32.xlu0 %v27, 120
    %v29 = vpop.permute.xlu0 %28
    %vm30 = vcmask 15360
    %s31 = scalar_lea.vmem %s1, 4
    %32 = vst.msk [vmem:[%s31] sm:$0x1] %vm30, %v29

// kernel: treechop_forward.1
$region0: #{treechop_forward.1}
  #allocation0 [shape = 'u32[]', space=smem, size = 0x4, offset = 0x4, fixed_abs, tag = 'smem constant byte address 0x4 - core index']
  #allocation1 [shape = 'u32[144,128]{1,0:T(1,128)}', space=vmem, size = 0x12000, scoped, tag = 'internal scratch']
  #allocation2 [shape = 'f32[64,256]{1,0:T(8,128)}', space=vmem, size = 0x10000, scoped, tag = 'scratch operand']
  #allocation3 [shape = 'bf16[8,512]{1,0:T(8,128)(2,1)}', space=vmem, size = 0x2000, scoped, tag = 'scratch operand']
  #allocation4 [shape = 'bf16[8,576]{1,0:T(8,128)(2,1)}', space=vmem, size = 0x2800, scoped, tag = 'scratch operand']
  %s0 = inlined_call_operand.vmem [shape: bf16[128,864], index: 0, kind: input, shape index: {}]
  %s1 = inlined_call_operand.vmem [shape: bf16[864,256], index: 1, kind: input, shape index: {}]
  %s2 = inlined_call_operand.vmem [shape: f32[1,256], index: 2, kind: input, shape index: {}]
  %s3 = inlined_call_operand.vmem [shape: bf16[512,64], index: 3, kind: input, shape index: {}]
  %s4 = inlined_call_operand.vmem [shape: f32[1,64], index: 4, kind: input, shape index: {}]
  %s5 = inlined_call_operand.vmem [shape: bf16[576,64], index: 5, kind: input, shape index: {}]
  %s6 = inlined_call_operand.vmem [shape: f32[1,64], index: 6, kind: input, shape index: {}]
  %s7 = inlined_call_operand.vmem [shape: bf16[64,512], index: 7, kind: input, shape index: {}]
  %s8 = inlined_call_operand.vmem [shape: f32[1,512], index: 8, kind: input, shape index: {}]
  %s9 = inlined_call_operand.vmem [shape: bf16[512,128], index: 9, kind: input, shape index: {}]
  %s10 = inlined_call_operand.vmem [shape: f32[1,128], index: 10, kind: input, shape index: {}]
  %s11 = inlined_call_operand.vmem [shape: f32[16,128], index: 11, kind: output, shape index: {}]
  %s12 = sld [smem:[#allocation0]]
  $region77: #{treechop_forward.1} parent=0
    _
  %s14 = ssub.s32 1, %s12
  %s15 = scalar_select 0, %s14, %s12
  loop: start=0, step=1, limit=4
  $region2: #{treechop_forward.1} parent=0 // loop_pre_header
    _
  $region3: #{treechop_forward.1} parent=0 // loop_header
    %s17 = sphi 0, %s21
    %p18 = scmp.ge.s32.totalorder %s17, 4
    %s27 = sphi 0, %s29
    %s30 = sphi 0, %s27
    %s31 = sphi 0, %s30
    %s47 = sphi 0, %s31
    %s51 = sphi 0, %s51
    %s53 = sphi 0, %s51
    %s54 = sphi 0, %s53
    %s68 = sphi 0, %s54
    %s72 = sphi 0, %s72
    %s74 = sphi 0, %s72
    %s75 = sphi 0, %s74
    %s89 = sphi 0, %s75
    %s93 = sphi 0, %s93
    %s95 = sphi 0, %s93
    %s96 = sphi 0, %s95
    %s110 = sphi 0, %s96
    %s114 = sphi 0, %s114
    %s116 = sphi 0, %s114
    %s117 = sphi 0, %s116
    %s131 = sphi 0, %s117
    %s135 = sphi 0, %s135
    %s137 = sphi 0, %s135
    %s138 = sphi 0, %s137
    %s152 = sphi 0, %s138
    %s156 = sphi 0, %s156
    %s158 = sphi 0, %s156
    %s159 = sphi 0, %s158
    %s173 = sphi 0, %s159
    %s177 = sphi 0, %s177
    %s179 = sphi 0, %s177
    %s180 = sphi 0, %s179
    %s194 = sphi 0, %s180
    %s198 = sphi 0, %s198
    %s200 = sphi 0, %s198
    %s201 = sphi 0, %s200
    %s215 = sphi 0, %s201
    %s219 = sphi 0, %s219
    %s221 = sphi 0, %s219
    %s222 = sphi 0, %s221
    %s236 = sphi 0, %s222
    %s240 = sphi 0, %s240
    %s242 = sphi 0, %s240
    %s243 = sphi 0, %s242
    %s257 = sphi 0, %s243
    %s263 = sphi 0, %s265
    %s266 = sphi 0, %s263
    %s267 = sphi 0, %s266
    %s283 = sphi 0, %s267
  $region4: #{treechop_forward.1} parent=0 // loop_header_branch
    %20 = sbr.rel (%p18) target = $region8
  $region5: #{treechop_forward.1} parent=0 // loop_body
    %s22 = ssub.s32 %s17, 1
    %s23 = ssub.s32 %s17, 2
    %s24 = sadd.s32 %s17, 1
    %s25 = ssub.s32 %s17, %s24
    %p26 = scmp.eq.s32.totalorder %s25, 0
    %s28 = sadd.s32 %s27, 1
    %s29 = scalar_select %p26, %s27, %s28
    %p32 = pneg %p26
    %p33 = scmp.eq.s32.totalorder %s17, 1
    %p34 = por %p32, %p33
    %p35 = scmp.ne.s32.totalorder %s27, %s30
    %p36 = scmp.eq.s32.totalorder %s17, 0
    %p37 = por %p35, %p36
    %p38 = scmp.ne.s32.totalorder %s27, %s30
    %p39 = scmp.eq.s32.totalorder %s22, 1
    %p40 = por %p38, %p39
    %p41 = scmp.ne.s32.totalorder %s30, %s31
    %p42 = scmp.eq.s32.totalorder %s22, 0
    %p43 = por %p41, %p42
    %p44 = scmp.ne.s32.totalorder %s30, %s31
    %p45 = scmp.eq.s32.totalorder %s23, 1
    %p46 = por %p44, %p45
    %p48 = scmp.ne.s32.totalorder %s31, %s47
    %p49 = scmp.eq.s32.totalorder %s23, 0
    %p50 = por %p48, %p49
    %s52 = sadd.s32 %s51, 1
    %p55 = scmp.eq.s32.totalorder %s17, 1
    %p56 = scmp.ne.s32.totalorder %s51, %s53
    %p57 = scmp.eq.s32.totalorder %s17, 0
    %p58 = por %p56, %p57
    %p59 = scmp.ne.s32.totalorder %s51, %s53
    %p60 = scmp.eq.s32.totalorder %s22, 1
    %p61 = por %p59, %p60
    %p62 = scmp.ne.s32.totalorder %s53, %s54
    %p63 = scmp.eq.s32.totalorder %s22, 0
    %p64 = por %p62, %p63
    %p65 = scmp.ne.s32.totalorder %s53, %s54
    %p66 = scmp.eq.s32.totalorder %s23, 1
    %p67 = por %p65, %p66
    %p69 = scmp.ne.s32.totalorder %s54, %s68
    %p70 = scmp.eq.s32.totalorder %s23, 0
    %p71 = por %p69, %p70
    %s73 = sadd.s32 %s72, 1
    %p76 = scmp.eq.s32.totalorder %s17, 1
    %p77 = scmp.ne.s32.totalorder %s72, %s74
    %p78 = scmp.eq.s32.totalorder %s17, 0
    %p79 = por %p77, %p78
    %p80 = scmp.ne.s32.totalorder %s72, %s74
    %p81 = scmp.eq.s32.totalorder %s22, 1
    %p82 = por %p80, %p81
    %p83 = scmp.ne.s32.totalorder %s74, %s75
    %p84 = scmp.eq.s32.totalorder %s22, 0
    %p85 = por %p83, %p84
    %p86 = scmp.ne.s32.totalorder %s74, %s75
    %p87 = scmp.eq.s32.totalorder %s23, 1
    %p88 = por %p86, %p87
    %p90 = scmp.ne.s32.totalorder %s75, %s89
    %p91 = scmp.eq.s32.totalorder %s23, 0
    %p92 = por %p90, %p91
    %s94 = sadd.s32 %s93, 1
    %p97 = scmp.eq.s32.totalorder %s17, 1
    %p98 = scmp.ne.s32.totalorder %s93, %s95
    %p99 = scmp.eq.s32.totalorder %s17, 0
    %p100 = por %p98, %p99
    %p101 = scmp.ne.s32.totalorder %s93, %s95
    %p102 = scmp.eq.s32.totalorder %s22, 1
    %p103 = por %p101, %p102
    %p104 = scmp.ne.s32.totalorder %s95, %s96
    %p105 = scmp.eq.s32.totalorder %s22, 0
    %p106 = por %p104, %p105
    %p107 = scmp.ne.s32.totalorder %s95, %s96
    %p108 = scmp.eq.s32.totalorder %s23, 1
    %p109 = por %p107, %p108
    %p111 = scmp.ne.s32.totalorder %s96, %s110
    %p112 = scmp.eq.s32.totalorder %s23, 0
    %p113 = por %p111, %p112
    %s115 = sadd.s32 %s114, 1
    %p118 = scmp.eq.s32.totalorder %s17, 1
    %p119 = scmp.ne.s32.totalorder %s114, %s116
    %p120 = scmp.eq.s32.totalorder %s17, 0
    %p121 = por %p119, %p120
    %p122 = scmp.ne.s32.totalorder %s114, %s116
    %p123 = scmp.eq.s32.totalorder %s22, 1
    %p124 = por %p122, %p123
    %p125 = scmp.ne.s32.totalorder %s116, %s117
    %p126 = scmp.eq.s32.totalorder %s22, 0
    %p127 = por %p125, %p126
    %p128 = scmp.ne.s32.totalorder %s116, %s117
    %p129 = scmp.eq.s32.totalorder %s23, 1
    %p130 = por %p128, %p129
    %p132 = scmp.ne.s32.totalorder %s117, %s131
    %p133 = scmp.eq.s32.totalorder %s23, 0
    %p134 = por %p132, %p133
    %s136 = sadd.s32 %s135, 1
    %p139 = scmp.eq.s32.totalorder %s17, 1
    %p140 = scmp.ne.s32.totalorder %s135, %s137
    %p141 = scmp.eq.s32.totalorder %s17, 0
    %p142 = por %p140, %p141
    %p143 = scmp.ne.s32.totalorder %s135, %s137
    %p144 = scmp.eq.s32.totalorder %s22, 1
    %p145 = por %p143, %p144
    %p146 = scmp.ne.s32.totalorder %s137, %s138
    %p147 = scmp.eq.s32.totalorder %s22, 0
    %p148 = por %p146, %p147
    %p149 = scmp.ne.s32.totalorder %s137, %s138
    %p150 = scmp.eq.s32.totalorder %s23, 1
    %p151 = por %p149, %p150
    %p153 = scmp.ne.s32.totalorder %s138, %s152
    %p154 = scmp.eq.s32.totalorder %s23, 0
    %p155 = por %p153, %p154
    %s157 = sadd.s32 %s156, 1
    %p160 = scmp.eq.s32.totalorder %s17, 1
    %p161 = scmp.ne.s32.totalorder %s156, %s158
    %p162 = scmp.eq.s32.totalorder %s17, 0
    %p163 = por %p161, %p162
    %p164 = scmp.ne.s32.totalorder %s156, %s158
    %p165 = scmp.eq.s32.totalorder %s22, 1
    %p166 = por %p164, %p165
    %p167 = scmp.ne.s32.totalorder %s158, %s159
    %p168 = scmp.eq.s32.totalorder %s22, 0
    %p169 = por %p167, %p168
    %p170 = scmp.ne.s32.totalorder %s158, %s159
    %p171 = scmp.eq.s32.totalorder %s23, 1
    %p172 = por %p170, %p171
    %p174 = scmp.ne.s32.totalorder %s159, %s173
    %p175 = scmp.eq.s32.totalorder %s23, 0
    %p176 = por %p174, %p175
    %s178 = sadd.s32 %s177, 1
    %p181 = scmp.eq.s32.totalorder %s17, 1
    %p182 = scmp.ne.s32.totalorder %s177, %s179
    %p183 = scmp.eq.s32.totalorder %s17, 0
    %p184 = por %p182, %p183
    %p185 = scmp.ne.s32.totalorder %s177, %s179
    %p186 = scmp.eq.s32.totalorder %s22, 1
    %p187 = por %p185, %p186
    %p188 = scmp.ne.s32.totalorder %s179, %s180
    %p189 = scmp.eq.s32.totalorder %s22, 0
    %p190 = por %p188, %p189
    %p191 = scmp.ne.s32.totalorder %s179, %s180
    %p192 = scmp.eq.s32.totalorder %s23, 1
    %p193 = por %p191, %p192
    %p195 = scmp.ne.s32.totalorder %s180, %s194
    %p196 = scmp.eq.s32.totalorder %s23, 0
    %p197 = por %p195, %p196
    %s199 = sadd.s32 %s198, 1
    %p202 = scmp.eq.s32.totalorder %s17, 1
    %p203 = scmp.ne.s32.totalorder %s198, %s200
    %p204 = scmp.eq.s32.totalorder %s17, 0
    %p205 = por %p203, %p204
    %p206 = scmp.ne.s32.totalorder %s198, %s200
    %p207 = scmp.eq.s32.totalorder %s22, 1
    %p208 = por %p206, %p207
    %p209 = scmp.ne.s32.totalorder %s200, %s201
    %p210 = scmp.eq.s32.totalorder %s22, 0
    %p211 = por %p209, %p210
    %p212 = scmp.ne.s32.totalorder %s200, %s201
    %p213 = scmp.eq.s32.totalorder %s23, 1
    %p214 = por %p212, %p213
    %p216 = scmp.ne.s32.totalorder %s201, %s215
    %p217 = scmp.eq.s32.totalorder %s23, 0
    %p218 = por %p216, %p217
    %s220 = sadd.s32 %s219, 1
    %p223 = scmp.eq.s32.totalorder %s17, 1
    %p224 = scmp.ne.s32.totalorder %s219, %s221
    %p225 = scmp.eq.s32.totalorder %s17, 0
    %p226 = por %p224, %p225
    %p227 = scmp.ne.s32.totalorder %s219, %s221
    %p228 = scmp.eq.s32.totalorder %s22, 1
    %p229 = por %p227, %p228
    %p230 = scmp.ne.s32.totalorder %s221, %s222
    %p231 = scmp.eq.s32.totalorder %s22, 0
    %p232 = por %p230, %p231
    %p233 = scmp.ne.s32.totalorder %s221, %s222
    %p234 = scmp.eq.s32.totalorder %s23, 1
    %p235 = por %p233, %p234
    %p237 = scmp.ne.s32.totalorder %s222, %s236
    %p238 = scmp.eq.s32.totalorder %s23, 0
    %p239 = por %p237, %p238
    %s241 = sadd.s32 %s240, 1
    %p244 = scmp.eq.s32.totalorder %s17, 1
    %p245 = scmp.ne.s32.totalorder %s240, %s242
    %p246 = scmp.eq.s32.totalorder %s17, 0
    %p247 = por %p245, %p246
    %p248 = scmp.ne.s32.totalorder %s240, %s242
    %p249 = scmp.eq.s32.totalorder %s22, 1
    %p250 = por %p248, %p249
    %p251 = scmp.ne.s32.totalorder %s242, %s243
    %p252 = scmp.eq.s32.totalorder %s22, 0
    %p253 = por %p251, %p252
    %p254 = scmp.ne.s32.totalorder %s242, %s243
    %p255 = scmp.eq.s32.totalorder %s23, 1
    %p256 = por %p254, %p255
    %p258 = scmp.ne.s32.totalorder %s243, %s257
    %p259 = scmp.eq.s32.totalorder %s23, 0
    %p260 = por %p258, %p259
    %s261 = ssub.s32 %s17, %s24
    %p262 = scmp.eq.s32.totalorder %s261, 0
    %s264 = sadd.s32 %s263, 1
    %s265 = scalar_select %p262, %s263, %s264
    %p268 = pneg %p262
    %p269 = scmp.eq.s32.totalorder %s17, 1
    %p270 = por %p268, %p269
    %p271 = scmp.ne.s32.totalorder %s263, %s266
    %p272 = scmp.eq.s32.totalorder %s17, 0
    %p273 = por %p271, %p272
    %p274 = scmp.ne.s32.totalorder %s263, %s266
    %p275 = scmp.eq.s32.totalorder %s22, 1
    %p276 = por %p274, %p275
    %p277 = scmp.ne.s32.totalorder %s266, %s267
    %p278 = scmp.eq.s32.totalorder %s22, 0
    %p279 = por %p277, %p278
    %p280 = scmp.ne.s32.totalorder %s266, %s267
    %p281 = scmp.eq.s32.totalorder %s23, 1
    %p282 = por %p280, %p281
    %p284 = scmp.ne.s32.totalorder %s267, %s283
    %p285 = scmp.eq.s32.totalorder %s23, 0
    %p286 = por %p284, %p285
    %p287 = scmp.le.s32.totalorder 1, %s17
    %p288 = scmp.lt.s32.totalorder %s17, 3
    %p289 = pnand %p287, %p288
    %p290 = pneg %p289
    // Predicated region
    $region9: #{treechop_forward.1} parent=5 // pred_check
      _
    $region10: #{treechop_forward.1} parent=5 // pred_check_branch
      %292 = sbr.rel (%p289) target = $region12
    $region11: #{treechop_forward.1} parent=5 // pred_region
      %s293 = ssub.s32 %s17, 1
      // Predicated region
      $region13: #{treechop_forward.1} parent=11 // pred_check
        %p294 = pneg %p64
      $region14: #{treechop_forward.1} parent=11 // pred_check_branch
        %296 = sbr.rel (%p294) target = $region16
      $region15: #{treechop_forward.1} parent=11 // pred_region
        _
      $region16: #{treechop_forward.1} parent=11 // pred_fallthru
        _
      // Predicated region
      $region17: #{treechop_forward.1} parent=11 // pred_check
        %p297 = pneg %p85
      $region18: #{treechop_forward.1} parent=11 // pred_check_branch
        %299 = sbr.rel (%p297) target = $region20
      $region19: #{treechop_forward.1} parent=11 // pred_region
        _
      $region20: #{treechop_forward.1} parent=11 // pred_fallthru
        _
      // Predicated region
      $region21: #{treechop_forward.1} parent=11 // pred_check
        %p300 = pneg %p106
      $region22: #{treechop_forward.1} parent=11 // pred_check_branch
        %302 = sbr.rel (%p300) target = $region24
      $region23: #{treechop_forward.1} parent=11 // pred_region
        _
      $region24: #{treechop_forward.1} parent=11 // pred_fallthru
        _
      // Predicated region
      $region25: #{treechop_forward.1} parent=11 // pred_check
        %p303 = pneg %p127
      $region26: #{treechop_forward.1} parent=11 // pred_check_branch
        %305 = sbr.rel (%p303) target = $region28
      $region27: #{treechop_forward.1} parent=11 // pred_region
        _
      $region28: #{treechop_forward.1} parent=11 // pred_fallthru
        _
      // Predicated region
      $region29: #{treechop_forward.1} parent=11 // pred_check
        %p306 = pneg %p148
      $region30: #{treechop_forward.1} parent=11 // pred_check_branch
        %308 = sbr.rel (%p306) target = $region32
      $region31: #{treechop_forward.1} parent=11 // pred_region
        _
      $region32: #{treechop_forward.1} parent=11 // pred_fallthru
        _
      // Predicated region
      $region33: #{treechop_forward.1} parent=11 // pred_check
        %p309 = pneg %p169
      $region34: #{treechop_forward.1} parent=11 // pred_check_branch
        %311 = sbr.rel (%p309) target = $region36
      $region35: #{treechop_forward.1} parent=11 // pred_region
        _
      $region36: #{treechop_forward.1} parent=11 // pred_fallthru
        _
      // Predicated region
      $region37: #{treechop_forward.1} parent=11 // pred_check
        %p312 = pneg %p190
      $region38: #{treechop_forward.1} parent=11 // pred_check_branch
        %314 = sbr.rel (%p312) target = $region40
      $region39: #{treechop_forward.1} parent=11 // pred_region
        _
      $region40: #{treechop_forward.1} parent=11 // pred_fallthru
        _
      // Predicated region
      $region41: #{treechop_forward.1} parent=11 // pred_check
        %p315 = pneg %p211
      $region42: #{treechop_forward.1} parent=11 // pred_check_branch
        %317 = sbr.rel (%p315) target = $region44
      $region43: #{treechop_forward.1} parent=11 // pred_region
        _
      $region44: #{treechop_forward.1} parent=11 // pred_fallthru
        _
      // Predicated region
      $region45: #{treechop_forward.1} parent=11 // pred_check
        %p318 = pneg %p232
      $region46: #{treechop_forward.1} parent=11 // pred_check_branch
        %320 = sbr.rel (%p318) target = $region48
      $region47: #{treechop_forward.1} parent=11 // pred_region
        _
      $region48: #{treechop_forward.1} parent=11 // pred_fallthru
        _
      // Predicated region
      $region49: #{treechop_forward.1} parent=11 // pred_check
        %p321 = pneg %p253
      $region50: #{treechop_forward.1} parent=11 // pred_check_branch
        %323 = sbr.rel (%p321) target = $region52
      $region51: #{treechop_forward.1} parent=11 // pred_region
        _
      $region52: #{treechop_forward.1} parent=11 // pred_fallthru
        _
    $region12: #{treechop_forward.1} parent=5 // pred_fallthru
      _
    %p324 = scmp.lt.s32.totalorder %s17, 2
    // Predicated region
    $region53: #{treechop_forward.1} parent=5 // pred_check
      %p325 = pneg %p324
    $region54: #{treechop_forward.1} parent=5 // pred_check_branch
      %327 = sbr.rel (%p325) target = $region56
    $region55: #{treechop_forward.1} parent=5 // pred_region
      // Predicated region
      $region57: #{treechop_forward.1} parent=55 // pred_check
        %p328 = pneg %p37
      $region58: #{treechop_forward.1} parent=55 // pred_check_branch
        %330 = sbr.rel (%p328) target = $region60
      $region59: #{treechop_forward.1} parent=55 // pred_region
        %s331 = smul.u32 8, %s17
        %p332 = scmp.lt.s32.totalorder %s331, 15
        %s333 = scalar_select %p332, %s331, 15
        %s334 = smul.addr %s333, 7
        %s335 = smul.addr %s334, 4
        %s336 = scalar_lea.vmem %s0, %s335
        %s337 = smul.u32 8, %s17
      $region60: #{treechop_forward.1} parent=55 // pred_fallthru
        _
    $region56: #{treechop_forward.1} parent=5 // pred_fallthru
      _
    %p338 = scmp.le.s32.totalorder 1, %s17
    %p339 = scmp.lt.s32.totalorder %s17, 3
    %p340 = pnand %p338, %p339
    %p341 = pneg %p340
    // Predicated region
    $region61: #{treechop_forward.1} parent=5 // pred_check
      _
    $region62: #{treechop_forward.1} parent=5 // pred_check_branch
      %343 = sbr.rel (%p340) target = $region64
    $region63: #{treechop_forward.1} parent=5 // pred_region
      %s344 = ssub.s32 %s17, 1
      %s345 = smul.u32 8, %s22
      %p346 = scmp.lt.s32.totalorder %s345, 15
      %s347 = scalar_select %p346, %s345, 15
      %s348 = smul.addr %s347, 7
      %s349 = smul.addr %s348, 4
      %s350 = scalar_lea.vmem %s0, %s349
      %p351 = pneg %p43
      %p352 = pneg %p40
      %p353 = pneg %p64
      %p354 = pneg %p61
      %p355 = pneg %p85
      %p356 = pneg %p82
      %p357 = pneg %p106
      %p358 = pneg %p103
      %p359 = pneg %p127
      %p360 = pneg %p124
      %p361 = pneg %p148
      %p362 = pneg %p145
      %p363 = pneg %p169
      %p364 = pneg %p166
      %p365 = pneg %p190
      %p366 = pneg %p187
      %p367 = pneg %p211
      %p368 = pneg %p208
      %p369 = pneg %p232
      %p370 = pneg %p229
      %p371 = pneg %p253
      %p372 = pneg %p250
      %p373 = pneg %p279
      %p374 = pneg %p276
      %p375 = scmp.lt.s32.totalorder %s22, 1
      %s376 = scalar_select %p375, %s22, 1
      %s377 = smul.addr %s376, 8
      %s378 = scalar_lea.vmem %s11, %s377
      %s379 = smul.u32 8, %s22
      %p380 = scmp.lt.s32.totalorder %s379, 15
      %s381 = scalar_select %p380, %s379, 15
      %s382 = smul.addr %s381, 7
      %s383 = smul.addr %s382, 4
      %s384 = scalar_lea.vmem %s0, %s383
      %s385 = smul.u32 8, %s22
      %p386 = scmp.lt.s32.totalorder %s22, 1
      %s387 = scalar_select %p386, %s22, 1
      %s388 = smul.addr %s387, 8
      %s389 = scalar_lea.vmem %s11, %s388
      %v391 = vld [vmem:[%s384] sm:$0xff]
      %v392 = vld [vmem:[%s384 + $0x8] sm:$0xff]
      %v393 = vld [vmem:[%s384 + $0x10] sm:$0xff]
      %v394 = vld [vmem:[%s384 + $0x18] sm:$0xf]
      %v395 = vld [vmem:[%s384 + $0x1c] sm:$0xff]
      %v396 = vld [vmem:[%s384 + $0x24] sm:$0xff]
      %v397 = vld [vmem:[%s384 + $0x2c] sm:$0xff]
      %v398 = vld [vmem:[%s384 + $0x34] sm:$0xf]
      %v399 = vld [vmem:[%s384 + $0x38] sm:$0xff]
      %v400 = vld [vmem:[%s384 + $0x40] sm:$0xff]
      %v401 = vld [vmem:[%s384 + $0x48] sm:$0xff]
      %v402 = vld [vmem:[%s384 + $0x50] sm:$0xf]
      %v403 = vld [vmem:[%s384 + $0x54] sm:$0xff]
      %v404 = vld [vmem:[%s384 + $0x5c] sm:$0xff]
      %v405 = vld [vmem:[%s384 + $0x64] sm:$0xff]
      %v406 = vld [vmem:[%s384 + $0x6c] sm:$0xf]
      %v407 = vld [vmem:[%s384 + $0x70] sm:$0xff]
      %v408 = vld [vmem:[%s384 + $0x78] sm:$0xff]
      %v409 = vld [vmem:[%s384 + $0x80] sm:$0xff]
      %v410 = vld [vmem:[%s384 + $0x88] sm:$0xf]
      %v411 = vld [vmem:[%s384 + $0x8c] sm:$0xff]
      %v412 = vld [vmem:[%s384 + $0x94] sm:$0xff]
      %v413 = vld [vmem:[%s384 + $0x9c] sm:$0xff]
      %v414 = vld [vmem:[%s384 + $0xa4] sm:$0xf]
      %v415 = vld [vmem:[%s384 + $0xa8] sm:$0xff]
      %v416 = vld [vmem:[%s384 + $0xb0] sm:$0xff]
      %v417 = vld [vmem:[%s384 + $0xb8] sm:$0xff]
      %v418 = vld [vmem:[%s384 + $0xc0] sm:$0xf]
      %v419 = vld [vmem:[%s384 + $0xc4] sm:$0xff]
      %v420 = vld [vmem:[%s384 + $0xcc] sm:$0xff]
      %v421 = vld [vmem:[%s384 + $0xd4] sm:$0xff]
      %v422 = vld [vmem:[%s384 + $0xdc] sm:$0xf]
      %v423 = vld [vmem:[%s1] sm:$0xff]
      %v424 = vld [vmem:[%s1 + $0x8] sm:$0xff]
      %v425 = vld [vmem:[%s1 + $0x10] sm:$0xff]
      %v426 = vld [vmem:[%s1 + $0x18] sm:$0xff]
      %v427 = vld [vmem:[%s1 + $0x20] sm:$0xff]
      %v428 = vld [vmem:[%s1 + $0x28] sm:$0xff]
      %v429 = vld [vmem:[%s1 + $0x30] sm:$0xff]
      %v430 = vld [vmem:[%s1 + $0x38] sm:$0xff]
      %v431 = vld [vmem:[%s1 + $0x40] sm:$0xff]
      %v432 = vld [vmem:[%s1 + $0x48] sm:$0xff]
      %v433 = vld [vmem:[%s1 + $0x50] sm:$0xff]
      %v434 = vld [vmem:[%s1 + $0x58] sm:$0xff]
      %v435 = vld [vmem:[%s1 + $0x60] sm:$0xff]
      %v436 = vld [vmem:[%s1 + $0x68] sm:$0xff]
      %v437 = vld [vmem:[%s1 + $0x70] sm:$0xff]
      %v438 = vld [vmem:[%s1 + $0x78] sm:$0xff]
      %v439 = vld [vmem:[%s1 + $0x80] sm:$0xff]
      %v440 = vld [vmem:[%s1 + $0x88] sm:$0xff]
      %v441 = vld [vmem:[%s1 + $0x90] sm:$0xff]
      %v442 = vld [vmem:[%s1 + $0x98] sm:$0xff]
      %v443 = vld [vmem:[%s1 + $0xa0] sm:$0xff]
      %v444 = vld [vmem:[%s1 + $0xa8] sm:$0xff]
      %v445 = vld [vmem:[%s1 + $0xb0] sm:$0xff]
      %v446 = vld [vmem:[%s1 + $0xb8] sm:$0xff]
      %v447 = vld [vmem:[%s1 + $0xc0] sm:$0xff]
      %v448 = vld [vmem:[%s1 + $0xc8] sm:$0xff]
      %v449 = vld [vmem:[%s1 + $0xd0] sm:$0xff]
      %v450 = vld [vmem:[%s1 + $0xd8] sm:$0xff]
      %v451 = vld [vmem:[%s1 + $0xe0] sm:$0xff]
      %v452 = vld [vmem:[%s1 + $0xe8] sm:$0xff]
      %v453 = vld [vmem:[%s1 + $0xf0] sm:$0xff]
      %v454 = vld [vmem:[%s1 + $0xf8] sm:$0xff]
      %v455 = vld [vmem:[%s1 + $0x100] sm:$0xff]
      %v456 = vld [vmem:[%s1 + $0x108] sm:$0xff]
      %v457 = vld [vmem:[%s1 + $0x110] sm:$0xff]
      %v458 = vld [vmem:[%s1 + $0x118] sm:$0xff]
      %v459 = vld [vmem:[%s1 + $0x120] sm:$0xff]
      %v460 = vld [vmem:[%s1 + $0x128] sm:$0xff]
      %v461 = vld [vmem:[%s1 + $0x130] sm:$0xff]
      %v462 = vld [vmem:[%s1 + $0x138] sm:$0xff]
      %v463 = vld [vmem:[%s1 + $0x140] sm:$0xff]
      %v464 = vld [vmem:[%s1 + $0x148] sm:$0xff]
      %v465 = vld [vmem:[%s1 + $0x150] sm:$0xff]
      %v466 = vld [vmem:[%s1 + $0x158] sm:$0xff]
      %v467 = vld [vmem:[%s1 + $0x160] sm:$0xff]
      %v468 = vld [vmem:[%s1 + $0x168] sm:$0xff]
      %v469 = vld [vmem:[%s1 + $0x170] sm:$0xff]
      %v470 = vld [vmem:[%s1 + $0x178] sm:$0xff]
      %v471 = vld [vmem:[%s1 + $0x180] sm:$0xff]
      %v472 = vld [vmem:[%s1 + $0x188] sm:$0xff]
      %v473 = vld [vmem:[%s1 + $0x190] sm:$0xff]
      %v474 = vld [vmem:[%s1 + $0x198] sm:$0xff]
      %v475 = vld [vmem:[%s1 + $0x1a0] sm:$0xff]
      %v476 = vld [vmem:[%s1 + $0x1a8] sm:$0xff]
      %v477 = vld [vmem:[%s1 + $0x1b0] sm:$0xff]
      %v478 = vld [vmem:[%s1 + $0x1b8] sm:$0xff]
      %v479 = vld [vmem:[%s1 + $0x1c0] sm:$0xff]
      %v480 = vld [vmem:[%s1 + $0x1c8] sm:$0xff]
      %v481 = vld [vmem:[%s1 + $0x1d0] sm:$0xff]
      %v482 = vld [vmem:[%s1 + $0x1d8] sm:$0xff]
      %v483 = vld [vmem:[%s1 + $0x1e0] sm:$0xff]
      %v484 = vld [vmem:[%s1 + $0x1e8] sm:$0xff]
      %v485 = vld [vmem:[%s1 + $0x1f0] sm:$0xff]
      %v486 = vld [vmem:[%s1 + $0x1f8] sm:$0xff]
      %v487 = vld [vmem:[%s1 + $0x200] sm:$0xff]
      %v488 = vld [vmem:[%s1 + $0x208] sm:$0xff]
      %v489 = vld [vmem:[%s1 + $0x210] sm:$0xff]
      %v490 = vld [vmem:[%s1 + $0x218] sm:$0xff]
      %v491 = vld [vmem:[%s1 + $0x220] sm:$0xff]
      %v492 = vld [vmem:[%s1 + $0x228] sm:$0xff]
      %v493 = vld [vmem:[%s1 + $0x230] sm:$0xff]
      %v494 = vld [vmem:[%s1 + $0x238] sm:$0xff]
      %v495 = vld [vmem:[%s1 + $0x240] sm:$0xff]
      %v496 = vld [vmem:[%s1 + $0x248] sm:$0xff]
      %v497 = vld [vmem:[%s1 + $0x250] sm:$0xff]
      %v498 = vld [vmem:[%s1 + $0x258] sm:$0xff]
      %v499 = vld [vmem:[%s1 + $0x260] sm:$0xff]
      %v500 = vld [vmem:[%s1 + $0x268] sm:$0xff]
      %v501 = vld [vmem:[%s1 + $0x270] sm:$0xff]
      %v502 = vld [vmem:[%s1 + $0x278] sm:$0xff]
      %v503 = vld [vmem:[%s1 + $0x280] sm:$0xff]
      %v504 = vld [vmem:[%s1 + $0x288] sm:$0xff]
      %v505 = vld [vmem:[%s1 + $0x290] sm:$0xff]
      %v506 = vld [vmem:[%s1 + $0x298] sm:$0xff]
      %v507 = vld [vmem:[%s1 + $0x2a0] sm:$0xff]
      %v508 = vld [vmem:[%s1 + $0x2a8] sm:$0xff]
      %v509 = vld [vmem:[%s1 + $0x2b0] sm:$0xff]
      %v510 = vld [vmem:[%s1 + $0x2b8] sm:$0xff]
      %v511 = vld [vmem:[%s1 + $0x2c0] sm:$0xff]
      %v512 = vld [vmem:[%s1 + $0x2c8] sm:$0xff]
      %v513 = vld [vmem:[%s1 + $0x2d0] sm:$0xff]
      %v514 = vld [vmem:[%s1 + $0x2d8] sm:$0xff]
      %v515 = vld [vmem:[%s1 + $0x2e0] sm:$0xff]
      %v516 = vld [vmem:[%s1 + $0x2e8] sm:$0xff]
      %v517 = vld [vmem:[%s1 + $0x2f0] sm:$0xff]
      %v518 = vld [vmem:[%s1 + $0x2f8] sm:$0xff]
      %v519 = vld [vmem:[%s1 + $0x300] sm:$0xff]
      %v520 = vld [vmem:[%s1 + $0x308] sm:$0xff]
      %v521 = vld [vmem:[%s1 + $0x310] sm:$0xff]
      %v522 = vld [vmem:[%s1 + $0x318] sm:$0xff]
      %v523 = vld [vmem:[%s1 + $0x320] sm:$0xff]
      %v524 = vld [vmem:[%s1 + $0x328] sm:$0xff]
      %v525 = vld [vmem:[%s1 + $0x330] sm:$0xff]
      %v526 = vld [vmem:[%s1 + $0x338] sm:$0xff]
      %v527 = vld [vmem:[%s1 + $0x340] sm:$0xff]
      %v528 = vld [vmem:[%s1 + $0x348] sm:$0xff]
      %v529 = vld [vmem:[%s1 + $0x350] sm:$0xff]
      %v530 = vld [vmem:[%s1 + $0x358] sm:$0xff]
      %v531 = vld [vmem:[%s2] sm:$0x3]
      %v533 = vlaneseq
      %v534 = vshrl.u32 %v533, 7
      %v535 = vsub.s32 0, %v534
      %v536 = vrot.slane %v531, %v535
      %v537 = vlaneseq
      %v538 = vshrl.u32 %v537, 7
      %v539 = vsub.s32 1, %v538
      %v540 = vrot.slane %v531, %v539
      %v575 = vunpack.c.l.b16 %v391
      %v576 = vunpack.c.h.b16 %v391
      %v577 = vunpack.c.l.b16 %v392
      %v578 = vunpack.c.h.b16 %v392
      %v579 = vunpack.c.l.b16 %v393
      %v580 = vunpack.c.h.b16 %v393
      %v581 = vunpack.c.l.b16 %v394
      %v582 = vunpack.c.l.b16 %v395
      %v583 = vunpack.c.h.b16 %v395
      %v584 = vunpack.c.l.b16 %v396
      %v585 = vunpack.c.h.b16 %v396
      %v586 = vunpack.c.l.b16 %v397
      %v587 = vunpack.c.h.b16 %v397
      %v588 = vunpack.c.l.b16 %v398
      %v589 = vunpack.c.l.b16 %v399
      %v590 = vunpack.c.h.b16 %v399
      %v591 = vunpack.c.l.b16 %v400
      %v592 = vunpack.c.h.b16 %v400
      %v593 = vunpack.c.l.b16 %v401
      %v594 = vunpack.c.h.b16 %v401
      %v595 = vunpack.c.l.b16 %v402
      %v596 = vunpack.c.l.b16 %v403
      %v597 = vunpack.c.h.b16 %v403
      %v598 = vunpack.c.l.b16 %v404
      %v599 = vunpack.c.h.b16 %v404
      %v600 = vunpack.c.l.b16 %v405
      %v601 = vunpack.c.h.b16 %v405
      %v602 = vunpack.c.l.b16 %v406
      %v603 = vunpack.c.l.b16 %v407
      %v604 = vunpack.c.h.b16 %v407
      %v605 = vunpack.c.l.b16 %v408
      %v606 = vunpack.c.h.b16 %v408
      %v607 = vunpack.c.l.b16 %v409
      %v608 = vunpack.c.h.b16 %v409
      %v609 = vunpack.c.l.b16 %v410
      %v610 = vunpack.c.l.b16 %v411
      %v611 = vunpack.c.h.b16 %v411
      %v612 = vunpack.c.l.b16 %v412
      %v613 = vunpack.c.h.b16 %v412
      %v614 = vunpack.c.l.b16 %v413
      %v615 = vunpack.c.h.b16 %v413
      %v616 = vunpack.c.l.b16 %v414
      %v617 = vunpack.c.l.b16 %v415
      %v618 = vunpack.c.h.b16 %v415
      %v619 = vunpack.c.l.b16 %v416
      %v620 = vunpack.c.h.b16 %v416
      %v621 = vunpack.c.l.b16 %v417
      %v622 = vunpack.c.h.b16 %v417
      %v623 = vunpack.c.l.b16 %v418
      %v624 = vunpack.c.l.b16 %v419
      %v625 = vunpack.c.h.b16 %v419
      %v626 = vunpack.c.l.b16 %v420
      %v627 = vunpack.c.h.b16 %v420
      %v628 = vunpack.c.l.b16 %v421
      %v629 = vunpack.c.h.b16 %v421
      %v630 = vunpack.c.l.b16 %v422
      %v631 = vpack.c.b16 %v582, %v575
      %v632 = vpack.c.b16 %v583, %v576
      %v633 = vpack.c.b16 %v584, %v577
      %v634 = vpack.c.b16 %v585, %v578
      %v635 = vpack.c.b16 %v586, %v579
      %v636 = vpack.c.b16 %v587, %v580
      %v637 = vpack.c.b16 %v588, %v581
      %v638 = vpack.c.b16 %v596, %v589
      %v639 = vpack.c.b16 %v597, %v590
      %v640 = vpack.c.b16 %v598, %v591
      %v641 = vpack.c.b16 %v599, %v592
      %v642 = vpack.c.b16 %v600, %v593
      %v643 = vpack.c.b16 %v601, %v594
      %v644 = vpack.c.b16 %v602, %v595
      %v645 = vpack.c.b16 %v610, %v603
      %v646 = vpack.c.b16 %v611, %v604
      %v647 = vpack.c.b16 %v612, %v605
      %v648 = vpack.c.b16 %v613, %v606
      %v649 = vpack.c.b16 %v614, %v607
      %v650 = vpack.c.b16 %v615, %v608
      %v651 = vpack.c.b16 %v616, %v609
      %v652 = vpack.c.b16 %v624, %v617
      %v653 = vpack.c.b16 %v625, %v618
      %v654 = vpack.c.b16 %v626, %v619
      %v655 = vpack.c.b16 %v627, %v620
      %v656 = vpack.c.b16 %v628, %v621
      %v657 = vpack.c.b16 %v629, %v622
      %v658 = vpack.c.b16 %v630, %v623
      %v791 = vunpack.c.l.b16 %v423
      %v792 = vunpack.c.h.b16 %v423
      %v793 = vunpack.c.l.b16 %v424
      %v794 = vunpack.c.h.b16 %v424
      %v795 = vunpack.c.l.b16 %v425
      %v796 = vunpack.c.h.b16 %v425
      %v797 = vunpack.c.l.b16 %v426
      %v798 = vunpack.c.h.b16 %v426
      %v799 = vunpack.c.l.b16 %v427
      %v800 = vunpack.c.h.b16 %v427
      %v801 = vunpack.c.l.b16 %v428
      %v802 = vunpack.c.h.b16 %v428
      %v803 = vunpack.c.l.b16 %v429
      %v804 = vunpack.c.h.b16 %v429
      %v805 = vunpack.c.l.b16 %v430
      %v806 = vunpack.c.h.b16 %v430
      %v807 = vunpack.c.l.b16 %v431
      %v808 = vunpack.c.h.b16 %v431
      %v809 = vunpack.c.l.b16 %v432
      %v810 = vunpack.c.h.b16 %v432
      %v811 = vunpack.c.l.b16 %v433
      %v812 = vunpack.c.h.b16 %v433
      %v813 = vunpack.c.l.b16 %v434
      %v814 = vunpack.c.h.b16 %v434
      %v815 = vunpack.c.l.b16 %v435
      %v816 = vunpack.c.h.b16 %v435
      %v817 = vunpack.c.l.b16 %v436
      %v818 = vunpack.c.h.b16 %v436
      %v819 = vunpack.c.l.b16 %v437
      %v820 = vunpack.c.h.b16 %v437
      %v821 = vunpack.c.l.b16 %v438
      %v822 = vunpack.c.h.b16 %v438
      %v823 = vunpack.c.l.b16 %v439
      %v824 = vunpack.c.h.b16 %v439
      %v825 = vunpack.c.l.b16 %v440
      %v826 = vunpack.c.h.b16 %v440
      %v827 = vunpack.c.l.b16 %v441
      %v828 = vunpack.c.h.b16 %v441
      %v829 = vunpack.c.l.b16 %v442
      %v830 = vunpack.c.h.b16 %v442
      %v831 = vunpack.c.l.b16 %v443
      %v832 = vunpack.c.h.b16 %v443
      %v833 = vunpack.c.l.b16 %v444
      %v834 = vunpack.c.h.b16 %v444
      %v835 = vunpack.c.l.b16 %v445
      %v836 = vunpack.c.h.b16 %v445
      %v837 = vunpack.c.l.b16 %v446
      %v838 = vunpack.c.h.b16 %v446
      %v839 = vunpack.c.l.b16 %v447
      %v840 = vunpack.c.h.b16 %v447
      %v841 = vunpack.c.l.b16 %v448
      %v842 = vunpack.c.h.b16 %v448
      %v843 = vunpack.c.l.b16 %v449
      %v844 = vunpack.c.h.b16 %v449
      %v845 = vunpack.c.l.b16 %v450
      %v846 = vunpack.c.h.b16 %v450
      %v847 = vunpack.c.l.b16 %v451
      %v848 = vunpack.c.h.b16 %v451
      %v849 = vunpack.c.l.b16 %v452
      %v850 = vunpack.c.h.b16 %v452
      %v851 = vunpack.c.l.b16 %v453
      %v852 = vunpack.c.h.b16 %v453
      %v853 = vunpack.c.l.b16 %v454
      %v854 = vunpack.c.h.b16 %v454
      %v855 = vunpack.c.l.b16 %v455
      %v856 = vunpack.c.h.b16 %v455
      %v857 = vunpack.c.l.b16 %v456
      %v858 = vunpack.c.h.b16 %v456
      %v859 = vunpack.c.l.b16 %v457
      %v860 = vunpack.c.h.b16 %v457
      %v861 = vunpack.c.l.b16 %v458
      %v862 = vunpack.c.h.b16 %v458
      %v863 = vunpack.c.l.b16 %v459
      %v864 = vunpack.c.h.b16 %v459
      %v865 = vunpack.c.l.b16 %v460
      %v866 = vunpack.c.h.b16 %v460
      %v867 = vunpack.c.l.b16 %v461
      %v868 = vunpack.c.h.b16 %v461
      %v869 = vunpack.c.l.b16 %v462
      %v870 = vunpack.c.h.b16 %v462
      %v871 = vunpack.c.l.b16 %v463
      %v872 = vunpack.c.h.b16 %v463
      %v873 = vunpack.c.l.b16 %v464
      %v874 = vunpack.c.h.b16 %v464
      %v875 = vunpack.c.l.b16 %v465
      %v876 = vunpack.c.h.b16 %v465
      %v877 = vunpack.c.l.b16 %v466
      %v878 = vunpack.c.h.b16 %v466
      %v879 = vunpack.c.l.b16 %v467
      %v880 = vunpack.c.h.b16 %v467
      %v881 = vunpack.c.l.b16 %v468
      %v882 = vunpack.c.h.b16 %v468
      %v883 = vunpack.c.l.b16 %v469
      %v884 = vunpack.c.h.b16 %v469
      %v885 = vunpack.c.l.b16 %v470
      %v886 = vunpack.c.h.b16 %v470
      %v887 = vunpack.c.l.b16 %v471
      %v888 = vunpack.c.h.b16 %v471
      %v889 = vunpack.c.l.b16 %v472
      %v890 = vunpack.c.h.b16 %v472
      %v891 = vunpack.c.l.b16 %v473
      %v892 = vunpack.c.h.b16 %v473
      %v893 = vunpack.c.l.b16 %v474
      %v894 = vunpack.c.h.b16 %v474
      %v895 = vunpack.c.l.b16 %v475
      %v896 = vunpack.c.h.b16 %v475
      %v897 = vunpack.c.l.b16 %v476
      %v898 = vunpack.c.h.b16 %v476
      %v899 = vunpack.c.l.b16 %v477
      %v900 = vunpack.c.h.b16 %v477
      %v901 = vunpack.c.l.b16 %v478
      %v902 = vunpack.c.h.b16 %v478
      %v903 = vunpack.c.l.b16 %v479
      %v904 = vunpack.c.h.b16 %v479
      %v905 = vunpack.c.l.b16 %v480
      %v906 = vunpack.c.h.b16 %v480
      %v907 = vunpack.c.l.b16 %v481
      %v908 = vunpack.c.h.b16 %v481
      %v909 = vunpack.c.l.b16 %v482
      %v910 = vunpack.c.h.b16 %v482
      %v911 = vunpack.c.l.b16 %v483
      %v912 = vunpack.c.h.b16 %v483
      %v913 = vunpack.c.l.b16 %v484
      %v914 = vunpack.c.h.b16 %v484
      %v915 = vunpack.c.l.b16 %v485
      %v916 = vunpack.c.h.b16 %v485
      %v917 = vunpack.c.l.b16 %v486
      %v918 = vunpack.c.h.b16 %v486
      %v919 = vunpack.c.l.b16 %v487
      %v920 = vunpack.c.h.b16 %v487
      %v921 = vunpack.c.l.b16 %v488
      %v922 = vunpack.c.h.b16 %v488
      %v923 = vunpack.c.l.b16 %v489
      %v924 = vunpack.c.h.b16 %v489
      %v925 = vunpack.c.l.b16 %v490
      %v926 = vunpack.c.h.b16 %v490
      %v927 = vunpack.c.l.b16 %v491
      %v928 = vunpack.c.h.b16 %v491
      %v929 = vunpack.c.l.b16 %v492
      %v930 = vunpack.c.h.b16 %v492
      %v931 = vunpack.c.l.b16 %v493
      %v932 = vunpack.c.h.b16 %v493
      %v933 = vunpack.c.l.b16 %v494
      %v934 = vunpack.c.h.b16 %v494
      %v935 = vunpack.c.l.b16 %v495
      %v936 = vunpack.c.h.b16 %v495
      %v937 = vunpack.c.l.b16 %v496
      %v938 = vunpack.c.h.b16 %v496
      %v939 = vunpack.c.l.b16 %v497
      %v940 = vunpack.c.h.b16 %v497
      %v941 = vunpack.c.l.b16 %v498
      %v942 = vunpack.c.h.b16 %v498
      %v943 = vunpack.c.l.b16 %v499
      %v944 = vunpack.c.h.b16 %v499
      %v945 = vunpack.c.l.b16 %v500
      %v946 = vunpack.c.h.b16 %v500
      %v947 = vunpack.c.l.b16 %v501
      %v948 = vunpack.c.h.b16 %v501
      %v949 = vunpack.c.l.b16 %v502
      %v950 = vunpack.c.h.b16 %v502
      %v951 = vunpack.c.l.b16 %v503
      %v952 = vunpack.c.h.b16 %v503
      %v953 = vunpack.c.l.b16 %v504
      %v954 = vunpack.c.h.b16 %v504
      %v955 = vunpack.c.l.b16 %v505
      %v956 = vunpack.c.h.b16 %v505
      %v957 = vunpack.c.l.b16 %v506
      %v958 = vunpack.c.h.b16 %v506
      %v959 = vunpack.c.l.b16 %v507
      %v960 = vunpack.c.h.b16 %v507
      %v961 = vunpack.c.l.b16 %v508
      %v962 = vunpack.c.h.b16 %v508
      %v963 = vunpack.c.l.b16 %v509
      %v964 = vunpack.c.h.b16 %v509
      %v965 = vunpack.c.l.b16 %v510
      %v966 = vunpack.c.h.b16 %v510
      %v967 = vunpack.c.l.b16 %v511
      %v968 = vunpack.c.h.b16 %v511
      %v969 = vunpack.c.l.b16 %v512
      %v970 = vunpack.c.h.b16 %v512
      %v971 = vunpack.c.l.b16 %v513
      %v972 = vunpack.c.h.b16 %v513
      %v973 = vunpack.c.l.b16 %v514
      %v974 = vunpack.c.h.b16 %v514
      %v975 = vunpack.c.l.b16 %v515
      %v976 = vunpack.c.h.b16 %v515
      %v977 = vunpack.c.l.b16 %v516
      %v978 = vunpack.c.h.b16 %v516
      %v979 = vunpack.c.l.b16 %v517
      %v980 = vunpack.c.h.b16 %v517
      %v981 = vunpack.c.l.b16 %v518
      %v982 = vunpack.c.h.b16 %v518
      %v983 = vunpack.c.l.b16 %v519
      %v984 = vunpack.c.h.b16 %v519
      %v985 = vunpack.c.l.b16 %v520
      %v986 = vunpack.c.h.b16 %v520
      %v987 = vunpack.c.l.b16 %v521
      %v988 = vunpack.c.h.b16 %v521
      %v989 = vunpack.c.l.b16 %v522
      %v990 = vunpack.c.h.b16 %v522
      %v991 = vunpack.c.l.b16 %v523
      %v992 = vunpack.c.h.b16 %v523
      %v993 = vunpack.c.l.b16 %v524
      %v994 = vunpack.c.h.b16 %v524
      %v995 = vunpack.c.l.b16 %v525
      %v996 = vunpack.c.h.b16 %v525
      %v997 = vunpack.c.l.b16 %v526
      %v998 = vunpack.c.h.b16 %v526
      %v999 = vunpack.c.l.b16 %v527
      %v1000 = vunpack.c.h.b16 %v527
      %v1001 = vunpack.c.l.b16 %v528
      %v1002 = vunpack.c.h.b16 %v528
      %v1003 = vunpack.c.l.b16 %v529
      %v1004 = vunpack.c.h.b16 %v529
      %v1005 = vunpack.c.l.b16 %v530
      %v1006 = vunpack.c.h.b16 %v530
      %v1007 = vpack.c.b16 %v793, %v791
      %v1008 = vpack.c.b16 %v794, %v792
      %v1009 = vpack.c.b16 %v797, %v795
      %v1010 = vpack.c.b16 %v798, %v796
      %v1011 = vpack.c.b16 %v801, %v799
      %v1012 = vpack.c.b16 %v802, %v800
      %v1013 = vpack.c.b16 %v805, %v803
      %v1014 = vpack.c.b16 %v806, %v804
      %v1015 = vpack.c.b16 %v809, %v807
      %v1016 = vpack.c.b16 %v810, %v808
      %v1017 = vpack.c.b16 %v813, %v811
      %v1018 = vpack.c.b16 %v814, %v812
      %v1019 = vpack.c.b16 %v817, %v815
      %v1020 = vpack.c.b16 %v818, %v816
      %v1021 = vpack.c.b16 %v821, %v819
      %v1022 = vpack.c.b16 %v822, %v820
      %v1023 = vpack.c.b16 %v825, %v823
      %v1024 = vpack.c.b16 %v826, %v824
      %v1025 = vpack.c.b16 %v829, %v827
      %v1026 = vpack.c.b16 %v830, %v828
      %v1027 = vpack.c.b16 %v833, %v831
      %v1028 = vpack.c.b16 %v834, %v832
      %v1029 = vpack.c.b16 %v837, %v835
      %v1030 = vpack.c.b16 %v838, %v836
      %v1031 = vpack.c.b16 %v841, %v839
      %v1032 = vpack.c.b16 %v842, %v840
      %v1033 = vpack.c.b16 %v845, %v843
      %v1034 = vpack.c.b16 %v846, %v844
      %v1035 = vpack.c.b16 %v849, %v847
      %v1036 = vpack.c.b16 %v850, %v848
      %v1037 = vpack.c.b16 %v853, %v851
      %v1038 = vpack.c.b16 %v854, %v852
      %v1039 = vpack.c.b16 %v857, %v855
      %v1040 = vpack.c.b16 %v858, %v856
      %v1041 = vpack.c.b16 %v861, %v859
      %v1042 = vpack.c.b16 %v862, %v860
      %v1043 = vpack.c.b16 %v865, %v863
      %v1044 = vpack.c.b16 %v866, %v864
      %v1045 = vpack.c.b16 %v869, %v867
      %v1046 = vpack.c.b16 %v870, %v868
      %v1047 = vpack.c.b16 %v873, %v871
      %v1048 = vpack.c.b16 %v874, %v872
      %v1049 = vpack.c.b16 %v877, %v875
      %v1050 = vpack.c.b16 %v878, %v876
      %v1051 = vpack.c.b16 %v881, %v879
      %v1052 = vpack.c.b16 %v882, %v880
      %v1053 = vpack.c.b16 %v885, %v883
      %v1054 = vpack.c.b16 %v886, %v884
      %v1055 = vpack.c.b16 %v889, %v887
      %v1056 = vpack.c.b16 %v890, %v888
      %v1057 = vpack.c.b16 %v893, %v891
      %v1058 = vpack.c.b16 %v894, %v892
      %v1059 = vpack.c.b16 %v897, %v895
      %v1060 = vpack.c.b16 %v898, %v896
      %v1061 = vpack.c.b16 %v901, %v899
      %v1062 = vpack.c.b16 %v902, %v900
      %v1063 = vpack.c.b16 %v905, %v903
      %v1064 = vpack.c.b16 %v906, %v904
      %v1065 = vpack.c.b16 %v909, %v907
      %v1066 = vpack.c.b16 %v910, %v908
      %v1067 = vpack.c.b16 %v913, %v911
      %v1068 = vpack.c.b16 %v914, %v912
      %v1069 = vpack.c.b16 %v917, %v915
      %v1070 = vpack.c.b16 %v918, %v916
      %v1071 = vpack.c.b16 %v921, %v919
      %v1072 = vpack.c.b16 %v922, %v920
      %v1073 = vpack.c.b16 %v925, %v923
      %v1074 = vpack.c.b16 %v926, %v924
      %v1075 = vpack.c.b16 %v929, %v927
      %v1076 = vpack.c.b16 %v930, %v928
      %v1077 = vpack.c.b16 %v933, %v931
      %v1078 = vpack.c.b16 %v934, %v932
      %v1079 = vpack.c.b16 %v937, %v935
      %v1080 = vpack.c.b16 %v938, %v936
      %v1081 = vpack.c.b16 %v941, %v939
      %v1082 = vpack.c.b16 %v942, %v940
      %v1083 = vpack.c.b16 %v945, %v943
      %v1084 = vpack.c.b16 %v946, %v944
      %v1085 = vpack.c.b16 %v949, %v947
      %v1086 = vpack.c.b16 %v950, %v948
      %v1087 = vpack.c.b16 %v953, %v951
      %v1088 = vpack.c.b16 %v954, %v952
      %v1089 = vpack.c.b16 %v957, %v955
      %v1090 = vpack.c.b16 %v958, %v956
      %v1091 = vpack.c.b16 %v961, %v959
      %v1092 = vpack.c.b16 %v962, %v960
      %v1093 = vpack.c.b16 %v965, %v963
      %v1094 = vpack.c.b16 %v966, %v964
      %v1095 = vpack.c.b16 %v969, %v967
      %v1096 = vpack.c.b16 %v970, %v968
      %v1097 = vpack.c.b16 %v973, %v971
      %v1098 = vpack.c.b16 %v974, %v972
      %v1099 = vpack.c.b16 %v977, %v975
      %v1100 = vpack.c.b16 %v978, %v976
      %v1101 = vpack.c.b16 %v981, %v979
      %v1102 = vpack.c.b16 %v982, %v980
      %v1103 = vpack.c.b16 %v985, %v983
      %v1104 = vpack.c.b16 %v986, %v984
      %v1105 = vpack.c.b16 %v989, %v987
      %v1106 = vpack.c.b16 %v990, %v988
      %v1107 = vpack.c.b16 %v993, %v991
      %v1108 = vpack.c.b16 %v994, %v992
      %v1109 = vpack.c.b16 %v997, %v995
      %v1110 = vpack.c.b16 %v998, %v996
      %v1111 = vpack.c.b16 %v1001, %v999
      %v1112 = vpack.c.b16 %v1002, %v1000
      %v1113 = vpack.c.b16 %v1005, %v1003
      %v1114 = vpack.c.b16 %v1006, %v1004
      %vm1223 = vcmask 785408
      %v1225 = vsel %vm1223, %v637, 0
      %v1228 = vsel %vm1223, %v644, 0
      %v1231 = vsel %vm1223, %v651, 0
      %v1234 = vsel %vm1223, %v658, 0
      %1236 = vmatprep.subr.bf16.mxu0 %v1008
      %1237 = vmatpush1.bf16.msra.mxu0 %v1007
      %1238 = vmatprep.subr.bf16.mxu0 %v1010
      %1239 = vmatpush1.bf16.msra.mxu0 %v1009
      %1240 = vmatprep.subr.bf16.mxu0 %v1012
      %1241 = vmatpush1.bf16.msra.mxu0 %v1011
      %1242 = vmatprep.subr.bf16.mxu0 %v1014
      %1243 = vmatpush1.bf16.msra.mxu0 %v1013
      %1244 = vmatprep.subr.bf16.mxu0 %v1016
      %1245 = vmatpush1.bf16.msra.mxu0 %v1015
      %1246 = vmatprep.subr.bf16.mxu0 %v1018
      %1247 = vmatpush1.bf16.msra.mxu0 %v1017
      %1248 = vmatprep.subr.bf16.mxu0 %v1020
      %1249 = vmatpush1.bf16.msra.mxu0 %v1019
      %1250 = vmatprep.subr.bf16.mxu0 %v1022
      %1251 = vmatpush1.bf16.msra.mxu0 %v1021
      %1252 = vmatprep.subr.bf16.mxu0 %v1024
      %1253 = vmatpush1.bf16.msra.mxu0 %v1023
      %1254 = vmatprep.subr.bf16.mxu0 %v1026
      %1255 = vmatpush1.bf16.msra.mxu0 %v1025
      %1256 = vmatprep.subr.bf16.mxu0 %v1028
      %1257 = vmatpush1.bf16.msra.mxu0 %v1027
      %1258 = vmatprep.subr.bf16.mxu0 %v1030
      %1259 = vmatpush1.bf16.msra.mxu0 %v1029
      %1260 = vmatprep.subr.bf16.mxu0 %v1032
      %1261 = vmatpush1.bf16.msra.mxu0 %v1031
      %1262 = vmatprep.subr.bf16.mxu0 %v1034
      %1263 = vmatpush1.bf16.msra.mxu0 %v1033
      %1264 = vmatprep.subr.bf16.mxu0 %v1036
      %1265 = vmatpush1.bf16.msra.mxu0 %v1035
      %1266 = vmatprep.subr.bf16.mxu0 %v1038
      %1267 = vmatpush1.bf16.msra.mxu0 %v1037
      %1268 = vmatprep.mubr.bf16.mxu0 %v632
      %1269 = vmatmul.mubr.bf16.gmra.mrb[0].mxu0 %v631
      %v1270 = vpop.f32.mrb[0].mxu0
      %v1271 = vadd.f32 %v536, %v1270
      %v1272 = vpop.f32.mrb[0].mxu0
      %v1273 = vadd.f32 %v540, %v1272
      %v1274 = vpop.f32.mrb[0].mxu0
      %v1275 = vadd.f32 %v536, %v1274
      %v1276 = vpop.f32.mrb[0].mxu0
      %v1277 = vadd.f32 %v540, %v1276
      %1278 = vmatprep.mubr.bf16.mxu0 %v639
      %1279 = vmatmul.mubr.bf16.gmra.mrb[0].mxu0 %v638
      %v1280 = vpop.f32.mrb[0].mxu0
      %v1281 = vadd.f32 %v536, %v1280
      %v1282 = vpop.f32.mrb[0].mxu0
      %v1283 = vadd.f32 %v540, %v1282
      %v1284 = vpop.f32.mrb[0].mxu0
      %v1285 = vadd.f32 %v536, %v1284
      %v1286 = vpop.f32.mrb[0].mxu0
      %v1287 = vadd.f32 %v540, %v1286
      %1288 = vmatprep.mubr.bf16.mxu0 %v646
      %1289 = vmatmul.mubr.bf16.gmra.mrb[0].mxu0 %v645
      %v1290 = vpop.f32.mrb[0].mxu0
      %v1291 = vadd.f32 %v536, %v1290
      %v1292 = vpop.f32.mrb[0].mxu0
      %v1293 = vadd.f32 %v540, %v1292
      %v1294 = vpop.f32.mrb[0].mxu0
      %v1295 = vadd.f32 %v536, %v1294
      %v1296 = vpop.f32.mrb[0].mxu0
      %v1297 = vadd.f32 %v540, %v1296
      %1298 = vmatprep.mubr.bf16.mxu0 %v653
      %1299 = vmatmul.mubr.bf16.gmra.mrb[0].mxu0 %v652
      %v1300 = vpop.f32.mrb[0].mxu0
      %v1301 = vadd.f32 %v536, %v1300
      %v1302 = vpop.f32.mrb[0].mxu0
      %v1303 = vadd.f32 %v540, %v1302
      %v1304 = vpop.f32.mrb[0].mxu0
      %v1305 = vadd.f32 %v536, %v1304
      %v1306 = vpop.f32.mrb[0].mxu0
      %v1307 = vadd.f32 %v540, %v1306
      %1308 = vdwg.mxu0
      %1309 = vmatprep.subr.bf16.mxu0 %v1040
      %1310 = vmatpush1.bf16.msra.mxu0 %v1039
      %1311 = vmatprep.subr.bf16.mxu0 %v1042
      %1312 = vmatpush1.bf16.msra.mxu0 %v1041
      %1313 = vmatprep.subr.bf16.mxu0 %v1044
      %1314 = vmatpush1.bf16.msra.mxu0 %v1043
      %1315 = vmatprep.subr.bf16.mxu0 %v1046
      %1316 = vmatpush1.bf16.msra.mxu0 %v1045
      %1317 = vmatprep.subr.bf16.mxu0 %v1048
      %1318 = vmatpush1.bf16.msra.mxu0 %v1047
      %1319 = vmatprep.subr.bf16.mxu0 %v1050
      %1320 = vmatpush1.bf16.msra.mxu0 %v1049
      %1321 = vmatprep.subr.bf16.mxu0 %v1052
      %1322 = vmatpush1.bf16.msra.mxu0 %v1051
      %1323 = vmatprep.subr.bf16.mxu0 %v1054
      %1324 = vmatpush1.bf16.msra.mxu0 %v1053
      %1325 = vmatprep.subr.bf16.mxu0 %v1056
      %1326 = vmatpush1.bf16.msra.mxu0 %v1055
      %1327 = vmatprep.subr.bf16.mxu0 %v1058
      %1328 = vmatpush1.bf16.msra.mxu0 %v1057
      %1329 = vmatprep.subr.bf16.mxu0 %v1060
      %1330 = vmatpush1.bf16.msra.mxu0 %v1059
      %1331 = vmatprep.subr.bf16.mxu0 %v1062
      %1332 = vmatpush1.bf16.msra.mxu0 %v1061
      %1333 = vmatprep.subr.bf16.mxu0 %v1064
      %1334 = vmatpush1.bf16.msra.mxu0 %v1063
      %1335 = vmatprep.subr.bf16.mxu0 %v1066
      %1336 = vmatpush1.bf16.msra.mxu0 %v1065
      %1337 = vmatprep.subr.bf16.mxu0 %v1068
      %1338 = vmatpush1.bf16.msra.mxu0 %v1067
      %1339 = vmatprep.subr.bf16.mxu0 %v1070
      %1340 = vmatpush1.bf16.msra.mxu0 %v1069
      %1341 = vmatprep.mubr.bf16.mxu0 %v634
      %1342 = vmatmul.mubr.bf16.gmra.mrb[0].mxu0 %v633
      %v1343 = vpop.f32.mrb[0].mxu0
      %v1344 = vadd.f32 %v1271, %v1343
      %v1345 = vpop.f32.mrb[0].mxu0
      %v1346 = vadd.f32 %v1273, %v1345
      %v1347 = vpop.f32.mrb[0].mxu0
      %v1348 = vadd.f32 %v1275, %v1347
      %v1349 = vpop.f32.mrb[0].mxu0
      %v1350 = vadd.f32 %v1277, %v1349
      %1351 = vmatprep.mubr.bf16.mxu0 %v641
      %1352 = vmatmul.mubr.bf16.gmra.mrb[0].mxu0 %v640
      %v1353 = vpop.f32.mrb[0].mxu0
      %v1354 = vadd.f32 %v1281, %v1353
      %v1355 = vpop.f32.mrb[0].mxu0
      %v1356 = vadd.f32 %v1283, %v1355
      %v1357 = vpop.f32.mrb[0].mxu0
      %v1358 = vadd.f32 %v1285, %v1357
      %v1359 = vpop.f32.mrb[0].mxu0
      %v1360 = vadd.f32 %v1287, %v1359
      %1361 = vmatprep.mubr.bf16.mxu0 %v648
      %1362 = vmatmul.mubr.bf16.gmra.mrb[0].mxu0 %v647
      %v1363 = vpop.f32.mrb[0].mxu0
      %v1364 = vadd.f32 %v1291, %v1363
      %v1365 = vpop.f32.mrb[0].mxu0
      %v1366 = vadd.f32 %v1293, %v1365
      %v1367 = vpop.f32.mrb[0].mxu0
      %v1368 = vadd.f32 %v1295, %v1367
      %v1369 = vpop.f32.mrb[0].mxu0
      %v1370 = vadd.f32 %v1297, %v1369
      %1371 = vmatprep.mubr.bf16.mxu0 %v655
      %1372 = vmatmul.mubr.bf16.gmra.mrb[0].mxu0 %v654
      %v1373 = vpop.f32.mrb[0].mxu0
      %v1374 = vadd.f32 %v1301, %v1373
      %v1375 = vpop.f32.mrb[0].mxu0
      %v1376 = vadd.f32 %v1303, %v1375
      %v1377 = vpop.f32.mrb[0].mxu0
      %v1378 = vadd.f32 %v1305, %v1377
      %v1379 = vpop.f32.mrb[0].mxu0
      %v1380 = vadd.f32 %v1307, %v1379
      %1381 = vdwg.mxu0
      %1382 = vmatprep.subr.bf16.mxu0 %v1072
      %1383 = vmatpush1.bf16.msra.mxu0 %v1071
      %1384 = vmatprep.subr.bf16.mxu0 %v1074
      %1385 = vmatpush1.bf16.msra.mxu0 %v1073
      %1386 = vmatprep.subr.bf16.mxu0 %v1076
      %1387 = vmatpush1.bf16.msra.mxu0 %v1075
      %1388 = vmatprep.subr.bf16.mxu0 %v1078
      %1389 = vmatpush1.bf16.msra.mxu0 %v1077
      %1390 = vmatprep.subr.bf16.mxu0 %v1080
      %1391 = vmatpush1.bf16.msra.mxu0 %v1079
      %1392 = vmatprep.subr.bf16.mxu0 %v1082
      %1393 = vmatpush1.bf16.msra.mxu0 %v1081
      %1394 = vmatprep.subr.bf16.mxu0 %v1084
      %1395 = vmatpush1.bf16.msra.mxu0 %v1083
      %1396 = vmatprep.subr.bf16.mxu0 %v1086
      %1397 = vmatpush1.bf16.msra.mxu0 %v1085
      %1398 = vmatprep.subr.bf16.mxu0 %v1088
      %1399 = vmatpush1.bf16.msra.mxu0 %v1087
      %1400 = vmatprep.subr.bf16.mxu0 %v1090
      %1401 = vmatpush1.bf16.msra.mxu0 %v1089
      %1402 = vmatprep.subr.bf16.mxu0 %v1092
      %1403 = vmatpush1.bf16.msra.mxu0 %v1091
      %1404 = vmatprep.subr.bf16.mxu0 %v1094
      %1405 = vmatpush1.bf16.msra.mxu0 %v1093
      %1406 = vmatprep.subr.bf16.mxu0 %v1096
      %1407 = vmatpush1.bf16.msra.mxu0 %v1095
      %1408 = vmatprep.subr.bf16.mxu0 %v1098
      %1409 = vmatpush1.bf16.msra.mxu0 %v1097
      %1410 = vmatprep.subr.bf16.mxu0 %v1100
      %1411 = vmatpush1.bf16.msra.mxu0 %v1099
      %1412 = vmatprep.subr.bf16.mxu0 %v1102
      %1413 = vmatpush1.bf16.msra.mxu0 %v1101
      %1414 = vmatprep.mubr.bf16.mxu0 %v636
      %1415 = vmatmul.mubr.bf16.gmra.mrb[0].mxu0 %v635
      %v1416 = vpop.f32.mrb[0].mxu0
      %v1417 = vadd.f32 %v1344, %v1416
      %v1418 = vpop.f32.mrb[0].mxu0
      %v1419 = vadd.f32 %v1346, %v1418
      %v1420 = vpop.f32.mrb[0].mxu0
      %v1421 = vadd.f32 %v1348, %v1420
      %v1422 = vpop.f32.mrb[0].mxu0
      %v1423 = vadd.f32 %v1350, %v1422
      %1424 = vmatprep.mubr.bf16.mxu0 %v643
      %1425 = vmatmul.mubr.bf16.gmra.mrb[0].mxu0 %v642
      %v1426 = vpop.f32.mrb[0].mxu0
      %v1427 = vadd.f32 %v1354, %v1426
      %v1428 = vpop.f32.mrb[0].mxu0
      %v1429 = vadd.f32 %v1356, %v1428
      %v1430 = vpop.f32.mrb[0].mxu0
      %v1431 = vadd.f32 %v1358, %v1430
      %v1432 = vpop.f32.mrb[0].mxu0
      %v1433 = vadd.f32 %v1360, %v1432
      %1434 = vmatprep.mubr.bf16.mxu0 %v650
      %1435 = vmatmul.mubr.bf16.gmra.mrb[0].mxu0 %v649
      %v1436 = vpop.f32.mrb[0].mxu0
      %v1437 = vadd.f32 %v1364, %v1436
      %v1438 = vpop.f32.mrb[0].mxu0
      %v1439 = vadd.f32 %v1366, %v1438
      %v1440 = vpop.f32.mrb[0].mxu0
      %v1441 = vadd.f32 %v1368, %v1440
      %v1442 = vpop.f32.mrb[0].mxu0
      %v1443 = vadd.f32 %v1370, %v1442
      %1444 = vmatprep.mubr.bf16.mxu0 %v657
      %1445 = vmatmul.mubr.bf16.gmra.mrb[0].mxu0 %v656
      %v1446 = vpop.f32.mrb[0].mxu0
      %v1447 = vadd.f32 %v1374, %v1446
      %v1448 = vpop.f32.mrb[0].mxu0
      %v1449 = vadd.f32 %v1376, %v1448
      %v1450 = vpop.f32.mrb[0].mxu0
      %v1451 = vadd.f32 %v1378, %v1450
      %v1452 = vpop.f32.mrb[0].mxu0
      %v1453 = vadd.f32 %v1380, %v1452
      %1454 = vdwg.mxu0
      %1455 = vmatprep.subr.bf16.mxu0 %v1104
      %1456 = vmatpush1.bf16.msra.mxu0 %v1103
      %1457 = vmatprep.subr.bf16.mxu0 %v1106
      %1458 = vmatpush1.bf16.msra.mxu0 %v1105
      %1459 = vmatprep.subr.bf16.mxu0 %v1108
      %1460 = vmatpush1.bf16.msra.mxu0 %v1107
      %1461 = vmatprep.subr.bf16.mxu0 %v1110
      %1462 = vmatpush1.bf16.msra.mxu0 %v1109
      %1463 = vmatprep.subr.bf16.mxu0 %v1112
      %1464 = vmatpush1.bf16.msra.mxu0 %v1111
      %1465 = vmatprep.subr.bf16.mxu0 %v1114
      %1466 = vmatpush1.bf16.msra.mxu0 %v1113
      %1467 = vmatprep.subr.bf16.mxu0 0
      %1468 = vmatpush1.bf16.msra.mxu0 0
      %1469 = vmatprep.subr.bf16.mxu0 0
      %1470 = vmatpush1.bf16.msra.mxu0 0
      %1471 = vmatprep.subr.bf16.mxu0 0
      %1472 = vmatpush1.bf16.msra.mxu0 0
      %1473 = vmatprep.subr.bf16.mxu0 0
      %1474 = vmatpush1.bf16.msra.mxu0 0
      %1475 = vmatprep.subr.bf16.mxu0 0
      %1476 = vmatpush1.bf16.msra.mxu0 0
      %1477 = vmatprep.subr.bf16.mxu0 0
      %1478 = vmatpush1.bf16.msra.mxu0 0
      %1479 = vmatprep.subr.bf16.mxu0 0
      %1480 = vmatpush1.bf16.msra.mxu0 0
      %1481 = vmatprep.subr.bf16.mxu0 0
      %1482 = vmatpush1.bf16.msra.mxu0 0
      %1483 = vmatprep.subr.bf16.mxu0 0
      %1484 = vmatpush1.bf16.msra.mxu0 0
      %1485 = vmatprep.subr.bf16.mxu0 0
      %1486 = vmatpush1.bf16.msra.mxu0 0
      %1487 = vmatprep.mubr.bf16.mxu0 0
      %1488 = vmatmul.mubr.bf16.gmra.mrb[0].mxu0 %v1225
      %v1489 = vpop.f32.mrb[0].mxu0
      %v1490 = vadd.f32 %v1417, %v1489
      %v1491 = vpop.f32.mrb[0].mxu0
      %v1492 = vadd.f32 %v1419, %v1491
      %v1493 = vpop.f32.mrb[0].mxu0
      %v1494 = vadd.f32 %v1421, %v1493
      %v1495 = vpop.f32.mrb[0].mxu0
      %v1496 = vadd.f32 %v1423, %v1495
      %1497 = vmatprep.mubr.bf16.mxu0 0
      %1498 = vmatmul.mubr.bf16.gmra.mrb[0].mxu0 %v1228
      %v1499 = vpop.f32.mrb[0].mxu0
      %v1500 = vadd.f32 %v1427, %v1499
      %v1501 = vpop.f32.mrb[0].mxu0
      %v1502 = vadd.f32 %v1429, %v1501
      %v1503 = vpop.f32.mrb[0].mxu0
      %v1504 = vadd.f32 %v1431, %v1503
      %v1505 = vpop.f32.mrb[0].mxu0
      %v1506 = vadd.f32 %v1433, %v1505
      %1507 = vmatprep.mubr.bf16.mxu0 0
      %1508 = vmatmul.mubr.bf16.gmra.mrb[0].mxu0 %v1231
      %v1509 = vpop.f32.mrb[0].mxu0
      %v1510 = vadd.f32 %v1437, %v1509
      %v1511 = vpop.f32.mrb[0].mxu0
      %v1512 = vadd.f32 %v1439, %v1511
      %v1513 = vpop.f32.mrb[0].mxu0
      %v1514 = vadd.f32 %v1441, %v1513
      %v1515 = vpop.f32.mrb[0].mxu0
      %v1516 = vadd.f32 %v1443, %v1515
      %1517 = vmatprep.mubr.bf16.mxu0 0
      %1518 = vmatmul.mubr.bf16.gmra.mrb[0].mxu0 %v1234
      %v1519 = vpop.f32.mrb[0].mxu0
      %v1520 = vadd.f32 %v1447, %v1519
      %v1521 = vpop.f32.mrb[0].mxu0
      %v1522 = vadd.f32 %v1449, %v1521
      %v1523 = vpop.f32.mrb[0].mxu0
      %v1524 = vadd.f32 %v1451, %v1523
      %v1525 = vpop.f32.mrb[0].mxu0
      %v1526 = vadd.f32 %v1453, %v1525
      %1527 = vdwg.mxu0
      %v1528 = vmax.f32 %v1490, 0.0
      %v1529 = vmax.f32 %v1492, 0.0
      %v1530 = vmax.f32 %v1494, 0.0
      %v1531 = vmax.f32 %v1496, 0.0
      %v1532 = vmax.f32 %v1500, 0.0
      %v1533 = vmax.f32 %v1502, 0.0
      %v1534 = vmax.f32 %v1504, 0.0
      %v1535 = vmax.f32 %v1506, 0.0
      %v1536 = vmax.f32 %v1510, 0.0
      %v1537 = vmax.f32 %v1512, 0.0
      %v1538 = vmax.f32 %v1514, 0.0
      %v1539 = vmax.f32 %v1516, 0.0
      %v1540 = vmax.f32 %v1520, 0.0
      %v1541 = vmax.f32 %v1522, 0.0
      %v1542 = vmax.f32 %v1524, 0.0
      %v1543 = vmax.f32 %v1526, 0.0
      %1544 = vst [vmem:[#allocation2] sm:$0xff] %v1528
      %1545 = vst [vmem:[#allocation2 + $0x8] sm:$0xff] %v1529
      %1546 = vst [vmem:[#allocation2 + $0x10] sm:$0xff] %v1530
      %1547 = vst [vmem:[#allocation2 + $0x18] sm:$0xff] %v1531
      %1548 = vst [vmem:[#allocation2 + $0x20] sm:$0xff] %v1532
      %1549 = vst [vmem:[#allocation2 + $0x28] sm:$0xff] %v1533
      %1550 = vst [vmem:[#allocation2 + $0x30] sm:$0xff] %v1534
      %1551 = vst [vmem:[#allocation2 + $0x38] sm:$0xff] %v1535
      %1552 = vst [vmem:[#allocation2 + $0x40] sm:$0xff] %v1536
      %1553 = vst [vmem:[#allocation2 + $0x48] sm:$0xff] %v1537
      %1554 = vst [vmem:[#allocation2 + $0x50] sm:$0xff] %v1538
      %1555 = vst [vmem:[#allocation2 + $0x58] sm:$0xff] %v1539
      %1556 = vst [vmem:[#allocation2 + $0x60] sm:$0xff] %v1540
      %1557 = vst [vmem:[#allocation2 + $0x68] sm:$0xff] %v1541
      %1558 = vst [vmem:[#allocation2 + $0x70] sm:$0xff] %v1542
      %1559 = vst [vmem:[#allocation2 + $0x78] sm:$0xff] %v1543
      %v1560 = vld [vmem:[#allocation2] sm:$0xff]
      %v1561 = vpack.c.bf16 %v1560, %v1560
      %1562 = vst [vmem:[#allocation3] sm:$0xf] %v1561
      %v1563 = vld [vmem:[#allocation2 + $0x10] sm:$0xff]
      %v1564 = vpack.c.bf16 %v1563, %v1563
      %1565 = vst [vmem:[#allocation3 + $0x4] sm:$0xf] %v1564
      %v1566 = vld [vmem:[#allocation2 + $0x20] sm:$0xff]
      %v1567 = vpack.c.bf16 %v1566, %v1566
      %1568 = vst [vmem:[#allocation3 + $0x8] sm:$0xf] %v1567
      %v1569 = vld [vmem:[#allocation2 + $0x30] sm:$0xff]
      %v1570 = vpack.c.bf16 %v1569, %v1569
      %1571 = vst [vmem:[#allocation3 + $0xc] sm:$0xf] %v1570
      %v1572 = vld [vmem:[#allocation3] sm:$0xff]
      %v1573 = vld [vmem:[#allocation3 + $0x8] sm:$0xff]
      %v1574 = vld [vmem:[%s3] sm:$0xf]
      %v1575 = vld [vmem:[%s3 + $0x4] sm:$0xf]
      %v1576 = vld [vmem:[%s3 + $0x8] sm:$0xf]
      %v1577 = vld [vmem:[%s3 + $0xc] sm:$0xf]
      %v1578 = vld [vmem:[%s3 + $0x10] sm:$0xf]
      %v1579 = vld [vmem:[%s3 + $0x14] sm:$0xf]
      %v1580 = vld [vmem:[%s3 + $0x18] sm:$0xf]
      %v1581 = vld [vmem:[%s3 + $0x1c] sm:$0xf]
      %v1582 = vld [vmem:[%s3 + $0x20] sm:$0xf]
      %v1583 = vld [vmem:[%s3 + $0x24] sm:$0xf]
      %v1584 = vld [vmem:[%s3 + $0x28] sm:$0xf]
      %v1585 = vld [vmem:[%s3 + $0x2c] sm:$0xf]
      %v1586 = vld [vmem:[%s3 + $0x30] sm:$0xf]
      %v1587 = vld [vmem:[%s3 + $0x34] sm:$0xf]
      %v1588 = vld [vmem:[%s3 + $0x38] sm:$0xf]
      %v1589 = vld [vmem:[%s3 + $0x3c] sm:$0xf]
      %v1590 = vld [vmem:[%s3 + $0x40] sm:$0xf]
      %v1591 = vld [vmem:[%s3 + $0x44] sm:$0xf]
      %v1592 = vld [vmem:[%s3 + $0x48] sm:$0xf]
      %v1593 = vld [vmem:[%s3 + $0x4c] sm:$0xf]
      %v1594 = vld [vmem:[%s3 + $0x50] sm:$0xf]
      %v1595 = vld [vmem:[%s3 + $0x54] sm:$0xf]
      %v1596 = vld [vmem:[%s3 + $0x58] sm:$0xf]
      %v1597 = vld [vmem:[%s3 + $0x5c] sm:$0xf]
      %v1598 = vld [vmem:[%s3 + $0x60] sm:$0xf]
      %v1599 = vld [vmem:[%s3 + $0x64] sm:$0xf]
      %v1600 = vld [vmem:[%s3 + $0x68] sm:$0xf]
      %v1601 = vld [vmem:[%s3 + $0x6c] sm:$0xf]
      %v1602 = vld [vmem:[%s3 + $0x70] sm:$0xf]
      %v1603 = vld [vmem:[%s3 + $0x74] sm:$0xf]
      %v1604 = vld [vmem:[%s3 + $0x78] sm:$0xf]
      %v1605 = vld [vmem:[%s3 + $0x7c] sm:$0xf]
      %v1606 = vld [vmem:[%s3 + $0x80] sm:$0xf]
      %v1607 = vld [vmem:[%s3 + $0x84] sm:$0xf]
      %v1608 = vld [vmem:[%s3 + $0x88] sm:$0xf]
      %v1609 = vld [vmem:[%s3 + $0x8c] sm:$0xf]
      %v1610 = vld [vmem:[%s3 + $0x90] sm:$0xf]
      %v1611 = vld [vmem:[%s3 + $0x94] sm:$0xf]
      %v1612 = vld [vmem:[%s3 + $0x98] sm:$0xf]
      %v1613 = vld [vmem:[%s3 + $0x9c] sm:$0xf]
      %v1614 = vld [vmem:[%s3 + $0xa0] sm:$0xf]
      %v1615 = vld [vmem:[%s3 + $0xa4] sm:$0xf]
      %v1616 = vld [vmem:[%s3 + $0xa8] sm:$0xf]
      %v1617 = vld [vmem:[%s3 + $0xac] sm:$0xf]
      %v1618 = vld [vmem:[%s3 + $0xb0] sm:$0xf]
      %v1619 = vld [vmem:[%s3 + $0xb4] sm:$0xf]
      %v1620 = vld [vmem:[%s3 + $0xb8] sm:$0xf]
      %v1621 = vld [vmem:[%s3 + $0xbc] sm:$0xf]
      %v1622 = vld [vmem:[%s3 + $0xc0] sm:$0xf]
      %v1623 = vld [vmem:[%s3 + $0xc4] sm:$0xf]
      %v1624 = vld [vmem:[%s3 + $0xc8] sm:$0xf]
      %v1625 = vld [vmem:[%s3 + $0xcc] sm:$0xf]
      %v1626 = vld [vmem:[%s3 + $0xd0] sm:$0xf]
      %v1627 = vld [vmem:[%s3 + $0xd4] sm:$0xf]
      %v1628 = vld [vmem:[%s3 + $0xd8] sm:$0xf]
      %v1629 = vld [vmem:[%s3 + $0xdc] sm:$0xf]
      %v1630 = vld [vmem:[%s3 + $0xe0] sm:$0xf]
      %v1631 = vld [vmem:[%s3 + $0xe4] sm:$0xf]
      %v1632 = vld [vmem:[%s3 + $0xe8] sm:$0xf]
      %v1633 = vld [vmem:[%s3 + $0xec] sm:$0xf]
      %v1634 = vld [vmem:[%s3 + $0xf0] sm:$0xf]
      %v1635 = vld [vmem:[%s3 + $0xf4] sm:$0xf]
      %v1636 = vld [vmem:[%s3 + $0xf8] sm:$0xf]
      %v1637 = vld [vmem:[%s3 + $0xfc] sm:$0xf]
      %v1638 = vld [vmem:[%s4] sm:$0x1]
      %v1640 = vlaneseq
      %v1641 = vshrl.u32 %v1640, 7
      %v1642 = vsub.s32 0, %v1641
      %v1643 = vrot.slane %v1638, %v1642
      %v1647 = vunpack.c.l.b16 %v1572
      %v1648 = vunpack.c.h.b16 %v1572
      %v1649 = vunpack.c.l.b16 %v1573
      %v1650 = vunpack.c.h.b16 %v1573
      %v1651 = vpack.c.b16 %v1647, %v1647
      %v1652 = vpack.c.b16 %v1648, %v1648
      %v1653 = vpack.c.b16 %v1649, %v1649
      %v1654 = vpack.c.b16 %v1650, %v1650
      %v1723 = vunpack.c.l.b16 %v1574
      %v1724 = vunpack.c.l.b16 %v1575
      %v1725 = vunpack.c.l.b16 %v1576
      %v1726 = vunpack.c.l.b16 %v1577
      %v1727 = vunpack.c.l.b16 %v1578
      %v1728 = vunpack.c.l.b16 %v1579
      %v1729 = vunpack.c.l.b16 %v1580
      %v1730 = vunpack.c.l.b16 %v1581
      %v1731 = vunpack.c.l.b16 %v1582
      %v1732 = vunpack.c.l.b16 %v1583
      %v1733 = vunpack.c.l.b16 %v1584
      %v1734 = vunpack.c.l.b16 %v1585
      %v1735 = vunpack.c.l.b16 %v1586
      %v1736 = vunpack.c.l.b16 %v1587
      %v1737 = vunpack.c.l.b16 %v1588
      %v1738 = vunpack.c.l.b16 %v1589
      %v1739 = vunpack.c.l.b16 %v1590
      %v1740 = vunpack.c.l.b16 %v1591
      %v1741 = vunpack.c.l.b16 %v1592
      %v1742 = vunpack.c.l.b16 %v1593
      %v1743 = vunpack.c.l.b16 %v1594
      %v1744 = vunpack.c.l.b16 %v1595
      %v1745 = vunpack.c.l.b16 %v1596
      %v1746 = vunpack.c.l.b16 %v1597
      %v1747 = vunpack.c.l.b16 %v1598
      %v1748 = vunpack.c.l.b16 %v1599
      %v1749 = vunpack.c.l.b16 %v1600
      %v1750 = vunpack.c.l.b16 %v1601
      %v1751 = vunpack.c.l.b16 %v1602
      %v1752 = vunpack.c.l.b16 %v1603
      %v1753 = vunpack.c.l.b16 %v1604
      %v1754 = vunpack.c.l.b16 %v1605
      %v1755 = vunpack.c.l.b16 %v1606
      %v1756 = vunpack.c.l.b16 %v1607
      %v1757 = vunpack.c.l.b16 %v1608
      %v1758 = vunpack.c.l.b16 %v1609
      %v1759 = vunpack.c.l.b16 %v1610
      %v1760 = vunpack.c.l.b16 %v1611
      %v1761 = vunpack.c.l.b16 %v1612
      %v1762 = vunpack.c.l.b16 %v1613
      %v1763 = vunpack.c.l.b16 %v1614
      %v1764 = vunpack.c.l.b16 %v1615
      %v1765 = vunpack.c.l.b16 %v1616
      %v1766 = vunpack.c.l.b16 %v1617
      %v1767 = vunpack.c.l.b16 %v1618
      %v1768 = vunpack.c.l.b16 %v1619
      %v1769 = vunpack.c.l.b16 %v1620
      %v1770 = vunpack.c.l.b16 %v1621
      %v1771 = vunpack.c.l.b16 %v1622
      %v1772 = vunpack.c.l.b16 %v1623
      %v1773 = vunpack.c.l.b16 %v1624
      %v1774 = vunpack.c.l.b16 %v1625
      %v1775 = vunpack.c.l.b16 %v1626
      %v1776 = vunpack.c.l.b16 %v1627
      %v1777 = vunpack.c.l.b16 %v1628
      %v1778 = vunpack.c.l.b16 %v1629
      %v1779 = vunpack.c.l.b16 %v1630
      %v1780 = vunpack.c.l.b16 %v1631
      %v1781 = vunpack.c.l.b16 %v1632
      %v1782 = vunpack.c.l.b16 %v1633
      %v1783 = vunpack.c.l.b16 %v1634
      %v1784 = vunpack.c.l.b16 %v1635
      %v1785 = vunpack.c.l.b16 %v1636
      %v1786 = vunpack.c.l.b16 %v1637
      %v1787 = vpack.c.b16 %v1724, %v1723
      %v1788 = vpack.c.b16 %v1726, %v1725
      %v1789 = vpack.c.b16 %v1728, %v1727
      %v1790 = vpack.c.b16 %v1730, %v1729
      %v1791 = vpack.c.b16 %v1732, %v1731
      %v1792 = vpack.c.b16 %v1734, %v1733
      %v1793 = vpack.c.b16 %v1736, %v1735
      %v1794 = vpack.c.b16 %v1738, %v1737
      %v1795 = vpack.c.b16 %v1740, %v1739
      %v1796 = vpack.c.b16 %v1742, %v1741
      %v1797 = vpack.c.b16 %v1744, %v1743
      %v1798 = vpack.c.b16 %v1746, %v1745
      %v1799 = vpack.c.b16 %v1748, %v1747
      %v1800 = vpack.c.b16 %v1750, %v1749
      %v1801 = vpack.c.b16 %v1752, %v1751
      %v1802 = vpack.c.b16 %v1754, %v1753
      %v1803 = vpack.c.b16 %v1756, %v1755
      %v1804 = vpack.c.b16 %v1758, %v1757
      %v1805 = vpack.c.b16 %v1760, %v1759
      %v1806 = vpack.c.b16 %v1762, %v1761
      %v1807 = vpack.c.b16 %v1764, %v1763
      %v1808 = vpack.c.b16 %v1766, %v1765
      %v1809 = vpack.c.b16 %v1768, %v1767
      %v1810 = vpack.c.b16 %v1770, %v1769
      %v1811 = vpack.c.b16 %v1772, %v1771
      %v1812 = vpack.c.b16 %v1774, %v1773
      %v1813 = vpack.c.b16 %v1776, %v1775
      %v1814 = vpack.c.b16 %v1778, %v1777
      %v1815 = vpack.c.b16 %v1780, %v1779
      %v1816 = vpack.c.b16 %v1782, %v1781
      %v1817 = vpack.c.b16 %v1784, %v1783
      %v1818 = vpack.c.b16 %v1786, %v1785
      %1851 = vmatprep.subr.bf16.mxu0 0
      %1852 = vmatpush1.bf16.msra.mxu0 %v1787
      %1853 = vmatprep.subr.bf16.mxu0 0
      %1854 = vmatpush1.bf16.msra.mxu0 %v1788
      %1855 = vmatprep.subr.bf16.mxu0 0
      %1856 = vmatpush1.bf16.msra.mxu0 %v1789
      %1857 = vmatprep.subr.bf16.mxu0 0
      %1858 = vmatpush1.bf16.msra.mxu0 %v1790
      %1859 = vmatprep.subr.bf16.mxu0 0
      %1860 = vmatpush1.bf16.msra.mxu0 %v1791
      %1861 = vmatprep.subr.bf16.mxu0 0
      %1862 = vmatpush1.bf16.msra.mxu0 %v1792
      %1863 = vmatprep.subr.bf16.mxu0 0
      %1864 = vmatpush1.bf16.msra.mxu0 %v1793
      %1865 = vmatprep.subr.bf16.mxu0 0
      %1866 = vmatpush1.bf16.msra.mxu0 %v1794
      %1867 = vmatprep.subr.bf16.mxu0 0
      %1868 = vmatpush1.bf16.msra.mxu0 %v1795
      %1869 = vmatprep.subr.bf16.mxu0 0
      %1870 = vmatpush1.bf16.msra.mxu0 %v1796
      %1871 = vmatprep.subr.bf16.mxu0 0
      %1872 = vmatpush1.bf16.msra.mxu0 %v1797
      %1873 = vmatprep.subr.bf16.mxu0 0
      %1874 = vmatpush1.bf16.msra.mxu0 %v1798
      %1875 = vmatprep.subr.bf16.mxu0 0
      %1876 = vmatpush1.bf16.msra.mxu0 %v1799
      %1877 = vmatprep.subr.bf16.mxu0 0
      %1878 = vmatpush1.bf16.msra.mxu0 %v1800
      %1879 = vmatprep.subr.bf16.mxu0 0
      %1880 = vmatpush1.bf16.msra.mxu0 %v1801
      %1881 = vmatprep.subr.bf16.mxu0 0
      %1882 = vmatpush1.bf16.msra.mxu0 %v1802
      %1883 = vmatprep.mubr.bf16.mxu0 %v1652
      %1884 = vmatmul.mubr.bf16.gmra.mrb[0].mxu0 %v1651
      %v1885 = vpop.f32.mrb[0].mxu0
      %v1886 = vadd.f32 %v1643, %v1885
      %v1887 = vpop.f32.mrb[0].mxu0
      %v1888 = vpop.f32.mrb[0].mxu0
      %v1889 = vpop.f32.mrb[0].mxu0
      %1890 = vdwg.mxu0
      %1891 = vmatprep.subr.bf16.mxu0 0
      %1892 = vmatpush1.bf16.msra.mxu0 %v1803
      %1893 = vmatprep.subr.bf16.mxu0 0
      %1894 = vmatpush1.bf16.msra.mxu0 %v1804
      %1895 = vmatprep.subr.bf16.mxu0 0
      %1896 = vmatpush1.bf16.msra.mxu0 %v1805
      %1897 = vmatprep.subr.bf16.mxu0 0
      %1898 = vmatpush1.bf16.msra.mxu0 %v1806
      %1899 = vmatprep.subr.bf16.mxu0 0
      %1900 = vmatpush1.bf16.msra.mxu0 %v1807
      %1901 = vmatprep.subr.bf16.mxu0 0
      %1902 = vmatpush1.bf16.msra.mxu0 %v1808
      %1903 = vmatprep.subr.bf16.mxu0 0
      %1904 = vmatpush1.bf16.msra.mxu0 %v1809
      %1905 = vmatprep.subr.bf16.mxu0 0
      %1906 = vmatpush1.bf16.msra.mxu0 %v1810
      %1907 = vmatprep.subr.bf16.mxu0 0
      %1908 = vmatpush1.bf16.msra.mxu0 %v1811
      %1909 = vmatprep.subr.bf16.mxu0 0
      %1910 = vmatpush1.bf16.msra.mxu0 %v1812
      %1911 = vmatprep.subr.bf16.mxu0 0
      %1912 = vmatpush1.bf16.msra.mxu0 %v1813
      %1913 = vmatprep.subr.bf16.mxu0 0
      %1914 = vmatpush1.bf16.msra.mxu0 %v1814
      %1915 = vmatprep.subr.bf16.mxu0 0
      %1916 = vmatpush1.bf16.msra.mxu0 %v1815
      %1917 = vmatprep.subr.bf16.mxu0 0
      %1918 = vmatpush1.bf16.msra.mxu0 %v1816
      %1919 = vmatprep.subr.bf16.mxu0 0
      %1920 = vmatpush1.bf16.msra.mxu0 %v1817
      %1921 = vmatprep.subr.bf16.mxu0 0
      %1922 = vmatpush1.bf16.msra.mxu0 %v1818
      %1923 = vmatprep.mubr.bf16.mxu0 %v1654
      %1924 = vmatmul.mubr.bf16.gmra.mrb[0].mxu0 %v1653
      %v1925 = vpop.f32.mrb[0].mxu0
      %v1926 = vadd.f32 %v1886, %v1925
      %v1927 = vpop.f32.mrb[0].mxu0
      %v1928 = vpop.f32.mrb[0].mxu0
      %v1929 = vpop.f32.mrb[0].mxu0
      %1930 = vdwg.mxu0
      %v1931 = vmax.f32 %v1926, 0.0
      %v1932 = vpack.c.bf16 %v1931, %v1931
      %vm1933 = vcmask 519168
      %1934 = vst.msk [vmem:[#allocation4] sm:$0xf] %vm1933, %v1932
      %v1935 = vld [vmem:[#allocation2] sm:$0xff]
      %v1936 = vld [vmem:[#allocation2 + $0x8] sm:$0xff]
      %v1937 = vpack.c.bf16 %v1935, %v1935
      %v1938 = vpack.c.bf16 %v1936, %v1936
      %v1941 = vunpack.c.l.b16 %v1937
      %v1942 = vunpack.c.l.b16 %v1938
      %v1943 = vpack.c.b16 %v1942, %v1941
      %1944 = vrot.lane.b32.xlu0 %v1943, 64
      %v1945 = vpop.permute.xlu0 %1944
      %v1946 = vrot.slane %v1945, 4
      %vm1947 = vcmask 523264
      %v1948 = vsel %vm1947, %v1945, %v1946
      %1950 = vst [vmem:[#allocation3] sm:$0xf] %v1948
      %v1951 = vld [vmem:[#allocation2 + $0x10] sm:$0xff]
      %v1952 = vld [vmem:[#allocation2 + $0x18] sm:$0xff]
      %v1953 = vpack.c.bf16 %v1951, %v1951
      %v1954 = vpack.c.bf16 %v1952, %v1952
      %v1957 = vunpack.c.l.b16 %v1953
      %v1958 = vunpack.c.l.b16 %v1954
      %v1959 = vpack.c.b16 %v1958, %v1957
      %1960 = vrot.lane.b32.xlu0 %v1959, 64
      %v1961 = vpop.permute.xlu0 %1960
      %v1962 = vrot.slane %v1961, 4
      %v1963 = vsel %vm1947, %v1961, %v1962
      %1965 = vst [vmem:[#allocation3 + $0x4] sm:$0xf] %v1963
      %v1966 = vld [vmem:[#allocation2 + $0x20] sm:$0xff]
      %v1967 = vld [vmem:[#allocation2 + $0x28] sm:$0xff]
      %v1968 = vpack.c.bf16 %v1966, %v1966
      %v1969 = vpack.c.bf16 %v1967, %v1967
      %v1972 = vunpack.c.l.b16 %v1968
      %v1973 = vunpack.c.l.b16 %v1969
      %v1974 = vpack.c.b16 %v1973, %v1972
      %1975 = vrot.lane.b32.xlu0 %v1974, 64
      %v1976 = vpop.permute.xlu0 %1975
      %v1977 = vrot.slane %v1976, 4
      %v1978 = vsel %vm1947, %v1976, %v1977
      %1980 = vst [vmem:[#allocation3 + $0x8] sm:$0xf] %v1978
      %v1981 = vld [vmem:[#allocation2 + $0x30] sm:$0xff]
      %v1982 = vld [vmem:[#allocation2 + $0x38] sm:$0xff]
      %v1983 = vpack.c.bf16 %v1981, %v1981
      %v1984 = vpack.c.bf16 %v1982, %v1982
      %v1987 = vunpack.c.l.b16 %v1983
      %v1988 = vunpack.c.l.b16 %v1984
      %v1989 = vpack.c.b16 %v1988, %v1987
      %1990 = vrot.lane.b32.xlu0 %v1989, 64
      %v1991 = vpop.permute.xlu0 %1990
      %v1992 = vrot.slane %v1991, 4
      %v1993 = vsel %vm1947, %v1991, %v1992
      %1995 = vst [vmem:[#allocation3 + $0xc] sm:$0xf] %v1993
      %v1996 = vld [vmem:[#allocation3] sm:$0xff]
      %v1997 = vld [vmem:[#allocation3 + $0x8] sm:$0xff]
      %v1998 = vld [vmem:[%s3] sm:$0xf]
      %v1999 = vld [vmem:[%s3 + $0x4] sm:$0xf]
      %v2000 = vld [vmem:[%s3 + $0x8] sm:$0xf]
      %v2001 = vld [vmem:[%s3 + $0xc] sm:$0xf]
      %v2002 = vld [vmem:[%s3 + $0x10] sm:$0xf]
      %v2003 = vld [vmem:[%s3 + $0x14] sm:$0xf]
      %v2004 = vld [vmem:[%s3 + $0x18] sm:$0xf]
      %v2005 = vld [vmem:[%s3 + $0x1c] sm:$0xf]
      %v2006 = vld [vmem:[%s3 + $0x20] sm:$0xf]
      %v2007 = vld [vmem:[%s3 + $0x24] sm:$0xf]
      %v2008 = vld [vmem:[%s3 + $0x28] sm:$0xf]
      %v2009 = vld [vmem:[%s3 + $0x2c] sm:$0xf]
      %v2010 = vld [vmem:[%s3 + $0x30] sm:$0xf]
      %v2011 = vld [vmem:[%s3 + $0x34] sm:$0xf]
      %v2012 = vld [vmem:[%s3 + $0x38] sm:$0xf]
      %v2013 = vld [vmem:[%s3 + $0x3c] sm:$0xf]
      %v2014 = vld [vmem:[%s3 + $0x40] sm:$0xf]
      %v2015 = vld [vmem:[%s3 + $0x44] sm:$0xf]
      %v2016 = vld [vmem:[%s3 + $0x48] sm:$0xf]
      %v2017 = vld [vmem:[%s3 + $0x4c] sm:$0xf]
      %v2018 = vld [vmem:[%s3 + $0x50] sm:$0xf]
      %v2019 = vld [vmem:[%s3 + $0x54] sm:$0xf]
      %v2020 = vld [vmem:[%s3 + $0x58] sm:$0xf]
      %v2021 = vld [vmem:[%s3 + $0x5c] sm:$0xf]
      %v2022 = vld [vmem:[%s3 + $0x60] sm:$0xf]
      %v2023 = vld [vmem:[%s3 + $0x64] sm:$0xf]
      %v2024 = vld [vmem:[%s3 + $0x68] sm:$0xf]
      %v2025 = vld [vmem:[%s3 + $0x6c] sm:$0xf]
      %v2026 = vld [vmem:[%s3 + $0x70] sm:$0xf]
      %v2027 = vld [vmem:[%s3 + $0x74] sm:$0xf]
      %v2028 = vld [vmem:[%s3 + $0x78] sm:$0xf]
      %v2029 = vld [vmem:[%s3 + $0x7c] sm:$0xf]
      %v2030 = vld [vmem:[%s3 + $0x80] sm:$0xf]
      %v2031 = vld [vmem:[%s3 + $0x84] sm:$0xf]
      %v2032 = vld [vmem:[%s3 + $0x88] sm:$0xf]
      %v2033 = vld [vmem:[%s3 + $0x8c] sm:$0xf]
      %v2034 = vld [vmem:[%s3 + $0x90] sm:$0xf]
      %v2035 = vld [vmem:[%s3 + $0x94] sm:$0xf]
      %v2036 = vld [vmem:[%s3 + $0x98] sm:$0xf]
      %v2037 = vld [vmem:[%s3 + $0x9c] sm:$0xf]
      %v2038 = vld [vmem:[%s3 + $0xa0] sm:$0xf]
      %v2039 = vld [vmem:[%s3 + $0xa4] sm:$0xf]
      %v2040 = vld [vmem:[%s3 + $0xa8] sm:$0xf]
      %v2041 = vld [vmem:[%s3 + $0xac] sm:$0xf]
      %v2042 = vld [vmem:[%s3 + $0xb0] sm:$0xf]
      %v2043 = vld [vmem:[%s3 + $0xb4] sm:$0xf]
      %v2044 = vld [vmem:[%s3 + $0xb8] sm:$0xf]
      %v2045 = vld [vmem:[%s3 + $0xbc] sm:$0xf]
      %v2046 = vld [vmem:[%s3 + $0xc0] sm:$0xf]
      %v2047 = vld [vmem:[%s3 + $0xc4] sm:$0xf]
      %v2048 = vld [vmem:[%s3 + $0xc8] sm:$0xf]
      %v2049 = vld [vmem:[%s3 + $0xcc] sm:$0xf]
      %v2050 = vld [vmem:[%s3 + $0xd0] sm:$0xf]
      %v2051 = vld [vmem:[%s3 + $0xd4] sm:$0xf]
      %v2052 = vld [vmem:[%s3 + $0xd8] sm:$0xf]
      %v2053 = vld [vmem:[%s3 + $0xdc] sm:$0xf]
      %v2054 = vld [vmem:[%s3 + $0xe0] sm:$0xf]
      %v2055 = vld [vmem:[%s3 + $0xe4] sm:$0xf]
      %v2056 = vld [vmem:[%s3 + $0xe8] sm:$0xf]
      %v2057 = vld [vmem:[%s3 + $0xec] sm:$0xf]
      %v2058 = vld [vmem:[%s3 + $0xf0] sm:$0xf]
      %v2059 = vld [vmem:[%s3 + $0xf4] sm:$0xf]
      %v2060 = vld [vmem:[%s3 + $0xf8] sm:$0xf]
      %v2061 = vld [vmem:[%s3 + $0xfc] sm:$0xf]
      %v2062 = vld [vmem:[%s4] sm:$0x1]
      %v2064 = vlaneseq
      %v2065 = vshrl.u32 %v2064, 7
      %v2066 = vsub.s32 0, %v2065
      %v2067 = vrot.slane %v2062, %v2066
      %v2071 = vunpack.c.l.b16 %v1996
      %v2072 = vunpack.c.h.b16 %v1996
      %v2073 = vunpack.c.l.b16 %v1997
      %v2074 = vunpack.c.h.b16 %v1997
      %v2075 = vpack.c.b16 %v2071, %v2071
      %v2076 = vpack.c.b16 %v2072, %v2072
      %v2077 = vpack.c.b16 %v2073, %v2073
      %v2078 = vpack.c.b16 %v2074, %v2074
      %v2147 = vunpack.c.l.b16 %v1998
      %v2148 = vunpack.c.l.b16 %v1999
      %v2149 = vunpack.c.l.b16 %v2000
      %v2150 = vunpack.c.l.b16 %v2001
      %v2151 = vunpack.c.l.b16 %v2002
      %v2152 = vunpack.c.l.b16 %v2003
      %v2153 = vunpack.c.l.b16 %v2004
      %v2154 = vunpack.c.l.b16 %v2005
      %v2155 = vunpack.c.l.b16 %v2006
      %v2156 = vunpack.c.l.b16 %v2007
      %v2157 = vunpack.c.l.b16 %v2008
      %v2158 = vunpack.c.l.b16 %v2009
      %v2159 = vunpack.c.l.b16 %v2010
      %v2160 = vunpack.c.l.b16 %v2011
      %v2161 = vunpack.c.l.b16 %v2012
      %v2162 = vunpack.c.l.b16 %v2013
      %v2163 = vunpack.c.l.b16 %v2014
      %v2164 = vunpack.c.l.b16 %v2015
      %v2165 = vunpack.c.l.b16 %v2016
      %v2166 = vunpack.c.l.b16 %v2017
      %v2167 = vunpack.c.l.b16 %v2018
      %v2168 = vunpack.c.l.b16 %v2019
      %v2169 = vunpack.c.l.b16 %v2020
      %v2170 = vunpack.c.l.b16 %v2021
      %v2171 = vunpack.c.l.b16 %v2022
      %v2172 = vunpack.c.l.b16 %v2023
      %v2173 = vunpack.c.l.b16 %v2024
      %v2174 = vunpack.c.l.b16 %v2025
      %v2175 = vunpack.c.l.b16 %v2026
      %v2176 = vunpack.c.l.b16 %v2027
      %v2177 = vunpack.c.l.b16 %v2028
      %v2178 = vunpack.c.l.b16 %v2029
      %v2179 = vunpack.c.l.b16 %v2030
      %v2180 = vunpack.c.l.b16 %v2031
      %v2181 = vunpack.c.l.b16 %v2032
      %v2182 = vunpack.c.l.b16 %v2033
      %v2183 = vunpack.c.l.b16 %v2034
      %v2184 = vunpack.c.l.b16 %v2035
      %v2185 = vunpack.c.l.b16 %v2036
      %v2186 = vunpack.c.l.b16 %v2037
      %v2187 = vunpack.c.l.b16 %v2038
      %v2188 = vunpack.c.l.b16 %v2039
      %v2189 = vunpack.c.l.b16 %v2040
      %v2190 = vunpack.c.l.b16 %v2041
      %v2191 = vunpack.c.l.b16 %v2042
      %v2192 = vunpack.c.l.b16 %v2043
      %v2193 = vunpack.c.l.b16 %v2044
      %v2194 = vunpack.c.l.b16 %v2045
      %v2195 = vunpack.c.l.b16 %v2046
      %v2196 = vunpack.c.l.b16 %v2047
      %v2197 = vunpack.c.l.b16 %v2048
      %v2198 = vunpack.c.l.b16 %v2049
      %v2199 = vunpack.c.l.b16 %v2050
      %v2200 = vunpack.c.l.b16 %v2051
      %v2201 = vunpack.c.l.b16 %v2052
      %v2202 = vunpack.c.l.b16 %v2053
      %v2203 = vunpack.c.l.b16 %v2054
      %v2204 = vunpack.c.l.b16 %v2055
      %v2205 = vunpack.c.l.b16 %v2056
      %v2206 = vunpack.c.l.b16 %v2057
      %v2207 = vunpack.c.l.b16 %v2058
      %v2208 = vunpack.c.l.b16 %v2059
      %v2209 = vunpack.c.l.b16 %v2060
      %v2210 = vunpack.c.l.b16 %v2061
      %v2211 = vpack.c.b16 %v2148, %v2147
      %v2212 = vpack.c.b16 %v2150, %v2149
      %v2213 = vpack.c.b16 %v2152, %v2151
      %v2214 = vpack.c.b16 %v2154, %v2153
      %v2215 = vpack.c.b16 %v2156, %v2155
      %v2216 = vpack.c.b16 %v2158, %v2157
      %v2217 = vpack.c.b16 %v2160, %v2159
      %v2218 = vpack.c.b16 %v2162, %v2161
      %v2219 = vpack.c.b16 %v2164, %v2163
      %v2220 = vpack.c.b16 %v2166, %v2165
      %v2221 = vpack.c.b16 %v2168, %v2167
      %v2222 = vpack.c.b16 %v2170, %v2169
      %v2223 = vpack.c.b16 %v2172, %v2171
      %v2224 = vpack.c.b16 %v2174, %v2173
      %v2225 = vpack.c.b16 %v2176, %v2175
      %v2226 = vpack.c.b16 %v2178, %v2177
      %v2227 = vpack.c.b16 %v2180, %v2179
      %v2228 = vpack.c.b16 %v2182, %v2181
      %v2229 = vpack.c.b16 %v2184, %v2183
      %v2230 = vpack.c.b16 %v2186, %v2185
      %v2231 = vpack.c.b16 %v2188, %v2187
      %v2232 = vpack.c.b16 %v2190, %v2189
      %v2233 = vpack.c.b16 %v2192, %v2191
      %v2234 = vpack.c.b16 %v2194, %v2193
      %v2235 = vpack.c.b16 %v2196, %v2195
      %v2236 = vpack.c.b16 %v2198, %v2197
      %v2237 = vpack.c.b16 %v2200, %v2199
      %v2238 = vpack.c.b16 %v2202, %v2201
      %v2239 = vpack.c.b16 %v2204, %v2203
      %v2240 = vpack.c.b16 %v2206, %v2205
      %v2241 = vpack.c.b16 %v2208, %v2207
      %v2242 = vpack.c.b16 %v2210, %v2209
      %2275 = vmatprep.subr.bf16.mxu0 0
      %2276 = vmatpush1.bf16.msra.mxu0 %v2211
      %2277 = vmatprep.subr.bf16.mxu0 0
      %2278 = vmatpush1.bf16.msra.mxu0 %v2212
      %2279 = vmatprep.subr.bf16.mxu0 0
      %2280 = vmatpush1.bf16.msra.mxu0 %v2213
      %2281 = vmatprep.subr.bf16.mxu0 0
      %2282 = vmatpush1.bf16.msra.mxu0 %v2214
      %2283 = vmatprep.subr.bf16.mxu0 0
      %2284 = vmatpush1.bf16.msra.mxu0 %v2215
      %2285 = vmatprep.subr.bf16.mxu0 0
      %2286 = vmatpush1.bf16.msra.mxu0 %v2216
      %2287 = vmatprep.subr.bf16.mxu0 0
      %2288 = vmatpush1.bf16.msra.mxu0 %v2217
      %2289 = vmatprep.subr.bf16.mxu0 0
      %2290 = vmatpush1.bf16.msra.mxu0 %v2218
      %2291 = vmatprep.subr.bf16.mxu0 0
      %2292 = vmatpush1.bf16.msra.mxu0 %v2219
      %2293 = vmatprep.subr.bf16.mxu0 0
      %2294 = vmatpush1.bf16.msra.mxu0 %v2220
      %2295 = vmatprep.subr.bf16.mxu0 0
      %2296 = vmatpush1.bf16.msra.mxu0 %v2221
      %2297 = vmatprep.subr.bf16.mxu0 0
      %2298 = vmatpush1.bf16.msra.mxu0 %v2222
      %2299 = vmatprep.subr.bf16.mxu0 0
      %2300 = vmatpush1.bf16.msra.mxu0 %v2223
      %2301 = vmatprep.subr.bf16.mxu0 0
      %2302 = vmatpush1.bf16.msra.mxu0 %v2224
      %2303 = vmatprep.subr.bf16.mxu0 0
      %2304 = vmatpush1.bf16.msra.mxu0 %v2225
      %2305 = vmatprep.subr.bf16.mxu0 0
      %2306 = vmatpush1.bf16.msra.mxu0 %v2226
      %2307 = vmatprep.mubr.bf16.mxu0 %v2076
      %2308 = vmatmul.mubr.bf16.gmra.mrb[0].mxu0 %v2075
      %v2309 = vpop.f32.mrb[0].mxu0
      %v2310 = vadd.f32 %v2067, %v2309
      %v2311 = vpop.f32.mrb[0].mxu0
      %v2312 = vpop.f32.mrb[0].mxu0
      %v2313 = vpop.f32.mrb[0].mxu0
      %2314 = vdwg.mxu0
      %2315 = vmatprep.subr.bf16.mxu0 0
      %2316 = vmatpush1.bf16.msra.mxu0 %v2227
      %2317 = vmatprep.subr.bf16.mxu0 0
      %2318 = vmatpush1.bf16.msra.mxu0 %v2228
      %2319 = vmatprep.subr.bf16.mxu0 0
      %2320 = vmatpush1.bf16.msra.mxu0 %v2229
      %2321 = vmatprep.subr.bf16.mxu0 0
      %2322 = vmatpush1.bf16.msra.mxu0 %v2230
      %2323 = vmatprep.subr.bf16.mxu0 0
      %2324 = vmatpush1.bf16.msra.mxu0 %v2231
      %2325 = vmatprep.subr.bf16.mxu0 0
      %2326 = vmatpush1.bf16.msra.mxu0 %v2232
      %2327 = vmatprep.subr.bf16.mxu0 0
      %2328 = vmatpush1.bf16.msra.mxu0 %v2233
      %2329 = vmatprep.subr.bf16.mxu0 0
      %2330 = vmatpush1.bf16.msra.mxu0 %v2234
      %2331 = vmatprep.subr.bf16.mxu0 0
      %2332 = vmatpush1.bf16.msra.mxu0 %v2235
      %2333 = vmatprep.subr.bf16.mxu0 0
      %2334 = vmatpush1.bf16.msra.mxu0 %v2236
      %2335 = vmatprep.subr.bf16.mxu0 0
      %2336 = vmatpush1.bf16.msra.mxu0 %v2237
      %2337 = vmatprep.subr.bf16.mxu0 0
      %2338 = vmatpush1.bf16.msra.mxu0 %v2238
      %2339 = vmatprep.subr.bf16.mxu0 0
      %2340 = vmatpush1.bf16.msra.mxu0 %v2239
      %2341 = vmatprep.subr.bf16.mxu0 0
      %2342 = vmatpush1.bf16.msra.mxu0 %v2240
      %2343 = vmatprep.subr.bf16.mxu0 0
      %2344 = vmatpush1.bf16.msra.mxu0 %v2241
      %2345 = vmatprep.subr.bf16.mxu0 0
      %2346 = vmatpush1.bf16.msra.mxu0 %v2242
      %2347 = vmatprep.mubr.bf16.mxu0 %v2078
      %2348 = vmatmul.mubr.bf16.gmra.mrb[0].mxu0 %v2077
      %v2349 = vpop.f32.mrb[0].mxu0
      %v2350 = vadd.f32 %v2310, %v2349
      %v2351 = vpop.f32.mrb[0].mxu0
      %v2352 = vpop.f32.mrb[0].mxu0
      %v2353 = vpop.f32.mrb[0].mxu0
      %2354 = vdwg.mxu0
      %v2355 = vmax.f32 %v2350, 0.0
      %v2356 = vpack.c.bf16 %v2355, %v2355
      %v2358 = vunpack.c.l.b16 %v2356
      %v2359 = vpack.c.b16 %v2358, %v2358
      %2360 = vrot.lane.b32.xlu0 %v2359, 64
      %v2361 = vpop.permute.xlu0 %2360
      %vm2363 = vcmask 1043968
      %2364 = vst.msk [vmem:[#allocation4] sm:$0xf] %vm2363, %v2361
      %v2365 = vld [vmem:[#allocation2 + $0x8] sm:$0xff]
      %v2366 = vpack.c.bf16 %v2365, %v2365
      %2367 = vst [vmem:[#allocation3] sm:$0xf] %v2366
      %v2368 = vld [vmem:[#allocation2 + $0x18] sm:$0xff]
      %v2369 = vpack.c.bf16 %v2368, %v2368
      %2370 = vst [vmem:[#allocation3 + $0x4] sm:$0xf] %v2369
      %v2371 = vld [vmem:[#allocation2 + $0x28] sm:$0xff]
      %v2372 = vpack.c.bf16 %v2371, %v2371
      %2373 = vst [vmem:[#allocation3 + $0x8] sm:$0xf] %v2372
      %v2374 = vld [vmem:[#allocation2 + $0x38] sm:$0xff]
      %v2375 = vpack.c.bf16 %v2374, %v2374
      %2376 = vst [vmem:[#allocation3 + $0xc] sm:$0xf] %v2375
      %v2377 = vld [vmem:[#allocation3] sm:$0xff]
      %v2378 = vld [vmem:[#allocation3 + $0x8] sm:$0xff]
      %v2379 = vld [vmem:[%s3] sm:$0xf]
      %v2380 = vld [vmem:[%s3 + $0x4] sm:$0xf]
      %v2381 = vld [vmem:[%s3 + $0x8] sm:$0xf]
      %v2382 = vld [vmem:[%s3 + $0xc] sm:$0xf]
      %v2383 = vld [vmem:[%s3 + $0x10] sm:$0xf]
      %v2384 = vld [vmem:[%s3 + $0x14] sm:$0xf]
      %v2385 = vld [vmem:[%s3 + $0x18] sm:$0xf]
      %v2386 = vld [vmem:[%s3 + $0x1c] sm:$0xf]
      %v2387 = vld [vmem:[%s3 + $0x20] sm:$0xf]
      %v2388 = vld [vmem:[%s3 + $0x24] sm:$0xf]
      %v2389 = vld [vmem:[%s3 + $0x28] sm:$0xf]
      %v2390 = vld [vmem:[%s3 + $0x2c] sm:$0xf]
      %v2391 = vld [vmem:[%s3 + $0x30] sm:$0xf]
      %v2392 = vld [vmem:[%s3 + $0x34] sm:$0xf]
      %v2393 = vld [vmem:[%s3 + $0x38] sm:$0xf]
      %v2394 = vld [vmem:[%s3 + $0x3c] sm:$0xf]
      %v2395 = vld [vmem:[%s3 + $0x40] sm:$0xf]
      %v2396 = vld [vmem:[%s3 + $0x44] sm:$0xf]
      %v2397 = vld [vmem:[%s3 + $0x48] sm:$0xf]
      %v2398 = vld [vmem:[%s3 + $0x4c] sm:$0xf]
      %v2399 = vld [vmem:[%s3 + $0x50] sm:$0xf]
      %v2400 = vld [vmem:[%s3 + $0x54] sm:$0xf]
      %v2401 = vld [vmem:[%s3 + $0x58] sm:$0xf]
      %v2402 = vld [vmem:[%s3 + $0x5c] sm:$0xf]
      %v2403 = vld [vmem:[%s3 + $0x60] sm:$0xf]
      %v2404 = vld [vmem:[%s3 + $0x64] sm:$0xf]
      %v2405 = vld [vmem:[%s3 + $0x68] sm:$0xf]
      %v2406 = vld [vmem:[%s3 + $0x6c] sm:$0xf]
      %v2407 = vld [vmem:[%s3 + $0x70] sm:$0xf]
      %v2408 = vld [vmem:[%s3 + $0x74] sm:$0xf]
      %v2409 = vld [vmem:[%s3 + $0x78] sm:$0xf]
      %v2410 = vld [vmem:[%s3 + $0x7c] sm:$0xf]
      %v2411 = vld [vmem:[%s3 + $0x80] sm:$0xf]
      %v2412 = vld [vmem:[%s3 + $0x84] sm:$0xf]
      %v2413 = vld [vmem:[%s3 + $0x88] sm:$0xf]
      %v2414 = vld [vmem:[%s3 + $0x8c] sm:$0xf]
      %v2415 = vld [vmem:[%s3 + $0x90] sm:$0xf]
      %v2416 = vld [vmem:[%s3 + $0x94] sm:$0xf]
      %v2417 = vld [vmem:[%s3 + $0x98] sm:$0xf]
      %v2418 = vld [vmem:[%s3 + $0x9c] sm:$0xf]
      %v2419 = vld [vmem:[%s3 + $0xa0] sm:$0xf]
      %v2420 = vld [vmem:[%s3 + $0xa4] sm:$0xf]
      %v2421 = vld [vmem:[%s3 + $0xa8] sm:$0xf]
      %v2422 = vld [vmem:[%s3 + $0xac] sm:$0xf]
      %v2423 = vld [vmem:[%s3 + $0xb0] sm:$0xf]
      %v2424 = vld [vmem:[%s3 + $0xb4] sm:$0xf]
      %v2425 = vld [vmem:[%s3 + $0xb8] sm:$0xf]
      %v2426 = vld [vmem:[%s3 + $0xbc] sm:$0xf]
      %v2427 = vld [vmem:[%s3 + $0xc0] sm:$0xf]
      %v2428 = vld [vmem:[%s3 + $0xc4] sm:$0xf]
      %v2429 = vld [vmem:[%s3 + $0xc8] sm:$0xf]
      %v2430 = vld [vmem:[%s3 + $0xcc] sm:$0xf]
      %v2431 = vld [vmem:[%s3 + $0xd0] sm:$0xf]
      %v2432 = vld [vmem:[%s3 + $0xd4] sm:$0xf]
      %v2433 = vld [vmem:[%s3 + $0xd8] sm:$0xf]
      %v2434 = vld [vmem:[%s3 + $0xdc] sm:$0xf]
      %v2435 = vld [vmem:[%s3 + $0xe0] sm:$0xf]
      %v2436 = vld [vmem:[%s3 + $0xe4] sm:$0xf]
      %v2437 = vld [vmem:[%s3 + $0xe8] sm:$0xf]
      %v2438 = vld [vmem:[%s3 + $0xec] sm:$0xf]
      %v2439 = vld [vmem:[%s3 + $0xf0] sm:$0xf]
      %v2440 = vld [vmem:[%s3 + $0xf4] sm:$0xf]
      %v2441 = vld [vmem:[%s3 + $0xf8] sm:$0xf]
      %v2442 = vld [vmem:[%s3 + $0xfc] sm:$0xf]
      %v2443 = vld [vmem:[%s4] sm:$0x1]
      %v2445 = vlaneseq
      %v2446 = vshrl.u32 %v2445, 7
      %v2447 = vsub.s32 0, %v2446
      %v2448 = vrot.slane %v2443, %v2447
      %v2452 = vunpack.c.l.b16 %v2377
      %v2453 = vunpack.c.h.b16 %v2377
      %v2454 = vunpack.c.l.b16 %v2378
      %v2455 = vunpack.c.h.b16 %v2378
      %v2456 = vpack.c.b16 %v2452, %v2452
      %v2457 = vpack.c.b16 %v2453, %v2453
      %v2458 = vpack.c.b16 %v2454, %v2454
      %v2459 = vpack.c.b16 %v2455, %v2455
      %v2528 = vunpack.c.l.b16 %v2379
      %v2529 = vunpack.c.l.b16 %v2380
      %v2530 = vunpack.c.l.b16 %v2381
      %v2531 = vunpack.c.l.b16 %v2382
      %v2532 = vunpack.c.l.b16 %v2383
      %v2533 = vunpack.c.l.b16 %v2384
      %v2534 = vunpack.c.l.b16 %v2385
      %v2535 = vunpack.c.l.b16 %v2386
      %v2536 = vunpack.c.l.b16 %v2387
      %v2537 = vunpack.c.l.b16 %v2388
      %v2538 = vunpack.c.l.b16 %v2389
      %v2539 = vunpack.c.l.b16 %v2390
      %v2540 = vunpack.c.l.b16 %v2391
      %v2541 = vunpack.c.l.b16 %v2392
      %v2542 = vunpack.c.l.b16 %v2393
      %v2543 = vunpack.c.l.b16 %v2394
      %v2544 = vunpack.c.l.b16 %v2395
      %v2545 = vunpack.c.l.b16 %v2396
      %v2546 = vunpack.c.l.b16 %v2397
      %v2547 = vunpack.c.l.b16 %v2398
      %v2548 = vunpack.c.l.b16 %v2399
      %v2549 = vunpack.c.l.b16 %v2400
      %v2550 = vunpack.c.l.b16 %v2401
      %v2551 = vunpack.c.l.b16 %v2402
      %v2552 = vunpack.c.l.b16 %v2403
      %v2553 = vunpack.c.l.b16 %v2404
      %v2554 = vunpack.c.l.b16 %v2405
      %v2555 = vunpack.c.l.b16 %v2406
      %v2556 = vunpack.c.l.b16 %v2407
      %v2557 = vunpack.c.l.b16 %v2408
      %v2558 = vunpack.c.l.b16 %v2409
      %v2559 = vunpack.c.l.b16 %v2410
      %v2560 = vunpack.c.l.b16 %v2411
      %v2561 = vunpack.c.l.b16 %v2412
      %v2562 = vunpack.c.l.b16 %v2413
      %v2563 = vunpack.c.l.b16 %v2414
      %v2564 = vunpack.c.l.b16 %v2415
      %v2565 = vunpack.c.l.b16 %v2416
      %v2566 = vunpack.c.l.b16 %v2417
      %v2567 = vunpack.c.l.b16 %v2418
      %v2568 = vunpack.c.l.b16 %v2419
      %v2569 = vunpack.c.l.b16 %v2420
      %v2570 = vunpack.c.l.b16 %v2421
      %v2571 = vunpack.c.l.b16 %v2422
      %v2572 = vunpack.c.l.b16 %v2423
      %v2573 = vunpack.c.l.b16 %v2424
      %v2574 = vunpack.c.l.b16 %v2425
      %v2575 = vunpack.c.l.b16 %v2426
      %v2576 = vunpack.c.l.b16 %v2427
      %v2577 = vunpack.c.l.b16 %v2428
      %v2578 = vunpack.c.l.b16 %v2429
      %v2579 = vunpack.c.l.b16 %v2430
      %v2580 = vunpack.c.l.b16 %v2431
      %v2581 = vunpack.c.l.b16 %v2432
      %v2582 = vunpack.c.l.b16 %v2433
      %v2583 = vunpack.c.l.b16 %v2434
      %v2584 = vunpack.c.l.b16 %v2435
      %v2585 = vunpack.c.l.b16 %v2436
      %v2586 = vunpack.c.l.b16 %v2437
      %v2587 = vunpack.c.l.b16 %v2438
      %v2588 = vunpack.c.l.b16 %v2439
      %v2589 = vunpack.c.l.b16 %v2440
      %v2590 = vunpack.c.l.b16 %v2441
      %v2591 = vunpack.c.l.b16 %v2442
      %v2592 = vpack.c.b16 %v2529, %v2528
      %v2593 = vpack.c.b16 %v2531, %v2530
      %v2594 = vpack.c.b16 %v2533, %v2532
      %v2595 = vpack.c.b16 %v2535, %v2534
      %v2596 = vpack.c.b16 %v2537, %v2536
      %v2597 = vpack.c.b16 %v2539, %v2538
      %v2598 = vpack.c.b16 %v2541, %v2540
      %v2599 = vpack.c.b16 %v2543, %v2542
      %v2600 = vpack.c.b16 %v2545, %v2544
      %v2601 = vpack.c.b16 %v2547, %v2546
      %v2602 = vpack.c.b16 %v2549, %v2548
      %v2603 = vpack.c.b16 %v2551, %v2550
      %v2604 = vpack.c.b16 %v2553, %v2552
      %v2605 = vpack.c.b16 %v2555, %v2554
      %v2606 = vpack.c.b16 %v2557, %v2556
      %v2607 = vpack.c.b16 %v2559, %v2558
      %v2608 = vpack.c.b16 %v2561, %v2560
      %v2609 = vpack.c.b16 %v2563, %v2562
      %v2610 = vpack.c.b16 %v2565, %v2564
      %v2611 = vpack.c.b16 %v2567, %v2566
      %v2612 = vpack.c.b16 %v2569, %v2568
      %v2613 = vpack.c.b16 %v2571, %v2570
      %v2614 = vpack.c.b16 %v2573, %v2572
      %v2615 = vpack.c.b16 %v2575, %v2574
      %v2616 = vpack.c.b16 %v2577, %v2576
      %v2617 = vpack.c.b16 %v2579, %v2578
      %v2618 = vpack.c.b16 %v2581, %v2580
      %v2619 = vpack.c.b16 %v2583, %v2582
      %v2620 = vpack.c.b16 %v2585, %v2584
      %v2621 = vpack.c.b16 %v2587, %v2586
      %v2622 = vpack.c.b16 %v2589, %v2588
      %v2623 = vpack.c.b16 %v2591, %v2590
      %2656 = vmatprep.subr.bf16.mxu0 0
      %2657 = vmatpush1.bf16.msra.mxu0 %v2592
      %2658 = vmatprep.subr.bf16.mxu0 0
      %2659 = vmatpush1.bf16.msra.mxu0 %v2593
      %2660 = vmatprep.subr.bf16.mxu0 0
      %2661 = vmatpush1.bf16.msra.mxu0 %v2594
      %2662 = vmatprep.subr.bf16.mxu0 0
      %2663 = vmatpush1.bf16.msra.mxu0 %v2595
      %2664 = vmatprep.subr.bf16.mxu0 0
      %2665 = vmatpush1.bf16.msra.mxu0 %v2596
      %2666 = vmatprep.subr.bf16.mxu0 0
      %2667 = vmatpush1.bf16.msra.mxu0 %v2597
      %2668 = vmatprep.subr.bf16.mxu0 0
      %2669 = vmatpush1.bf16.msra.mxu0 %v2598
      %2670 = vmatprep.subr.bf16.mxu0 0
      %2671 = vmatpush1.bf16.msra.mxu0 %v2599
      %2672 = vmatprep.subr.bf16.mxu0 0
      %2673 = vmatpush1.bf16.msra.mxu0 %v2600
      %2674 = vmatprep.subr.bf16.mxu0 0
      %2675 = vmatpush1.bf16.msra.mxu0 %v2601
      %2676 = vmatprep.subr.bf16.mxu0 0
      %2677 = vmatpush1.bf16.msra.mxu0 %v2602
      %2678 = vmatprep.subr.bf16.mxu0 0
      %2679 = vmatpush1.bf16.msra.mxu0 %v2603
      %2680 = vmatprep.subr.bf16.mxu0 0
      %2681 = vmatpush1.bf16.msra.mxu0 %v2604
      %2682 = vmatprep.subr.bf16.mxu0 0
      %2683 = vmatpush1.bf16.msra.mxu0 %v2605
      %2684 = vmatprep.subr.bf16.mxu0 0
      %2685 = vmatpush1.bf16.msra.mxu0 %v2606
      %2686 = vmatprep.subr.bf16.mxu0 0
      %2687 = vmatpush1.bf16.msra.mxu0 %v2607
      %2688 = vmatprep.mubr.bf16.mxu0 %v2457
      %2689 = vmatmul.mubr.bf16.gmra.mrb[0].mxu0 %v2456
      %v2690 = vpop.f32.mrb[0].mxu0
      %v2691 = vadd.f32 %v2448, %v2690
      %v2692 = vpop.f32.mrb[0].mxu0
      %v2693 = vpop.f32.mrb[0].mxu0
      %v2694 = vpop.f32.mrb[0].mxu0
      %2695 = vdwg.mxu0
      %2696 = vmatprep.subr.bf16.mxu0 0
      %2697 = vmatpush1.bf16.msra.mxu0 %v2608
      %2698 = vmatprep.subr.bf16.mxu0 0
      %2699 = vmatpush1.bf16.msra.mxu0 %v2609
      %2700 = vmatprep.subr.bf16.mxu0 0
      %2701 = vmatpush1.bf16.msra.mxu0 %v2610
      %2702 = vmatprep.subr.bf16.mxu0 0
      %2703 = vmatpush1.bf16.msra.mxu0 %v2611
      %2704 = vmatprep.subr.bf16.mxu0 0
      %2705 = vmatpush1.bf16.msra.mxu0 %v2612
      %2706 = vmatprep.subr.bf16.mxu0 0
      %2707 = vmatpush1.bf16.msra.mxu0 %v2613
      %2708 = vmatprep.subr.bf16.mxu0 0
      %2709 = vmatpush1.bf16.msra.mxu0 %v2614
      %2710 = vmatprep.subr.bf16.mxu0 0
      %2711 = vmatpush1.bf16.msra.mxu0 %v2615
      %2712 = vmatprep.subr.bf16.mxu0 0
      %2713 = vmatpush1.bf16.msra.mxu0 %v2616
      %2714 = vmatprep.subr.bf16.mxu0 0
      %2715 = vmatpush1.bf16.msra.mxu0 %v2617
      %2716 = vmatprep.subr.bf16.mxu0 0
      %2717 = vmatpush1.bf16.msra.mxu0 %v2618
      %2718 = vmatprep.subr.bf16.mxu0 0
      %2719 = vmatpush1.bf16.msra.mxu0 %v2619
      %2720 = vmatprep.subr.bf16.mxu0 0
      %2721 = vmatpush1.bf16.msra.mxu0 %v2620
      %2722 = vmatprep.subr.bf16.mxu0 0
      %2723 = vmatpush1.bf16.msra.mxu0 %v2621
      %2724 = vmatprep.subr.bf16.mxu0 0
      %2725 = vmatpush1.bf16.msra.mxu0 %v2622
      %2726 = vmatprep.subr.bf16.mxu0 0
      %2727 = vmatpush1.bf16.msra.mxu0 %v2623
      %2728 = vmatprep.mubr.bf16.mxu0 %v2459
      %2729 = vmatmul.mubr.bf16.gmra.mrb[0].mxu0 %v2458
      %v2730 = vpop.f32.mrb[0].mxu0
      %v2731 = vadd.f32 %v2691, %v2730
      %v2732 = vpop.f32.mrb[0].mxu0
      %v2733 = vpop.f32.mrb[0].mxu0
      %v2734 = vpop.f32.mrb[0].mxu0
      %2735 = vdwg.mxu0
      %v2736 = vmax.f32 %v2731, 0.0
      %v2737 = vpack.c.bf16 %v2736, %v2736
      %2738 = vst.msk [vmem:[#allocation4 + $0x4] sm:$0xf] %vm1933, %v2737
      %v2739 = vld [vmem:[#allocation2 + $0x20] sm:$0xff]
      %v2740 = vpack.c.bf16 %v2739, %v2739
      %2741 = vst [vmem:[#allocation3] sm:$0xf] %v2740
      %v2742 = vld [vmem:[#allocation2 + $0x30] sm:$0xff]
      %v2743 = vpack.c.bf16 %v2742, %v2742
      %2744 = vst [vmem:[#allocation3 + $0x4] sm:$0xf] %v2743
      %v2745 = vld [vmem:[#allocation2 + $0x40] sm:$0xff]
      %v2746 = vpack.c.bf16 %v2745, %v2745
      %2747 = vst [vmem:[#allocation3 + $0x8] sm:$0xf] %v2746
      %v2748 = vld [vmem:[#allocation2 + $0x50] sm:$0xff]
      %v2749 = vpack.c.bf16 %v2748, %v2748
      %2750 = vst [vmem:[#allocation3 + $0xc] sm:$0xf] %v2749
      %v2751 = vld [vmem:[#allocation3] sm:$0xff]
      %v2752 = vld [vmem:[#allocation3 + $0x8] sm:$0xff]
      %v2753 = vld [vmem:[%s3] sm:$0xf]
      %v2754 = vld [vmem:[%s3 + $0x4] sm:$0xf]
      %v2755 = vld [vmem:[%s3 + $0x8] sm:$0xf]
      %v2756 = vld [vmem:[%s3 + $0xc] sm:$0xf]
      %v2757 = vld [vmem:[%s3 + $0x10] sm:$0xf]
      %v2758 = vld [vmem:[%s3 + $0x14] sm:$0xf]
      %v2759 = vld [vmem:[%s3 + $0x18] sm:$0xf]
      %v2760 = vld [vmem:[%s3 + $0x1c] sm:$0xf]
      %v2761 = vld [vmem:[%s3 + $0x20] sm:$0xf]
      %v2762 = vld [vmem:[%s3 + $0x24] sm:$0xf]
      %v2763 = vld [vmem:[%s3 + $0x28] sm:$0xf]
      %v2764 = vld [vmem:[%s3 + $0x2c] sm:$0xf]
      %v2765 = vld [vmem:[%s3 + $0x30] sm:$0xf]
      %v2766 = vld [vmem:[%s3 + $0x34] sm:$0xf]
      %v2767 = vld [vmem:[%s3 + $0x38] sm:$0xf]
      %v2768 = vld [vmem:[%s3 + $0x3c] sm:$0xf]
      %v2769 = vld [vmem:[%s3 + $0x40] sm:$0xf]
      %v2770 = vld [vmem:[%s3 + $0x44] sm:$0xf]
      %v2771 = vld [vmem:[%s3 + $0x48] sm:$0xf]
      %v2772 = vld [vmem:[%s3 + $0x4c] sm:$0xf]
      %v2773 = vld [vmem:[%s3 + $0x50] sm:$0xf]
      %v2774 = vld [vmem:[%s3 + $0x54] sm:$0xf]
      %v2775 = vld [vmem:[%s3 + $0x58] sm:$0xf]
      %v2776 = vld [vmem:[%s3 + $0x5c] sm:$0xf]
      %v2777 = vld [vmem:[%s3 + $0x60] sm:$0xf]
      %v2778 = vld [vmem:[%s3 + $0x64] sm:$0xf]
      %v2779 = vld [vmem:[%s3 + $0x68] sm:$0xf]
      %v2780 = vld [vmem:[%s3 + $0x6c] sm:$0xf]
      %v2781 = vld [vmem:[%s3 + $0x70] sm:$0xf]
      %v2782 = vld [vmem:[%s3 + $0x74] sm:$0xf]
      %v2783 = vld [vmem:[%s3 + $0x78] sm:$0xf]
      %v2784 = vld [vmem:[%s3 + $0x7c] sm:$0xf]
      %v2785 = vld [vmem:[%s3 + $0x80] sm:$0xf]
      %v2786 = vld [vmem:[%s3 + $0x84] sm:$0xf]
      %v2787 = vld [vmem:[%s3 + $0x88] sm:$0xf]
      %v2788 = vld [vmem:[%s3 + $0x8c] sm:$0xf]
      %v2789 = vld [vmem:[%s3 + $0x90] sm:$0xf]
      %v2790 = vld [vmem:[%s3 + $0x94] sm:$0xf]
      %v2791 = vld [vmem:[%s3 + $0x98] sm:$0xf]
      %v2792 = vld [vmem:[%s3 + $0x9c] sm:$0xf]
      %v2793 = vld [vmem:[%s3 + $0xa0] sm:$0xf]
      %v2794 = vld [vmem:[%s3 + $0xa4] sm:$0xf]
      %v2795 = vld [vmem:[%s3 + $0xa8] sm:$0xf]
      %v2796 = vld [vmem:[%s3 + $0xac] sm:$0xf]
      %v2797 = vld [vmem:[%s3 + $0xb0] sm:$0xf]
      %v2798 = vld [vmem:[%s3 + $0xb4] sm:$0xf]
      %v2799 = vld [vmem:[%s3 + $0xb8] sm:$0xf]
      %v2800 = vld [vmem:[%s3 + $0xbc] sm:$0xf]
      %v2801 = vld [vmem:[%s3 + $0xc0] sm:$0xf]
      %v2802 = vld [vmem:[%s3 + $0xc4] sm:$0xf]
      %v2803 = vld [vmem:[%s3 + $0xc8] sm:$0xf]
      %v2804 = vld [vmem:[%s3 + $0xcc] sm:$0xf]
      %v2805 = vld [vmem:[%s3 + $0xd0] sm:$0xf]
      %v2806 = vld [vmem:[%s3 + $0xd4] sm:$0xf]
      %v2807 = vld [vmem:[%s3 + $0xd8] sm:$0xf]
      %v2808 = vld [vmem:[%s3 + $0xdc] sm:$0xf]
      %v2809 = vld [vmem:[%s3 + $0xe0] sm:$0xf]
      %v2810 = vld [vmem:[%s3 + $0xe4] sm:$0xf]
      %v2811 = vld [vmem:[%s3 + $0xe8] sm:$0xf]
      %v2812 = vld [vmem:[%s3 + $0xec] sm:$0xf]
      %v2813 = vld [vmem:[%s3 + $0xf0] sm:$0xf]
      %v2814 = vld [vmem:[%s3 + $0xf4] sm:$0xf]
      %v2815 = vld [vmem:[%s3 + $0xf8] sm:$0xf]
      %v2816 = vld [vmem:[%s3 + $0xfc] sm:$0xf]
      %v2817 = vld [vmem:[%s4] sm:$0x1]
      %v2819 = vlaneseq
      %v2820 = vshrl.u32 %v2819, 7
      %v2821 = vsub.s32 0, %v2820
      %v2822 = vrot.slane %v2817, %v2821
      %v2826 = vunpack.c.l.b16 %v2751
      %v2827 = vunpack.c.h.b16 %v2751
      %v2828 = vunpack.c.l.b16 %v2752
      %v2829 = vunpack.c.h.b16 %v2752
      %v2830 = vpack.c.b16 %v2826, %v2826
      %v2831 = vpack.c.b16 %v2827, %v2827
      %v2832 = vpack.c.b16 %v2828, %v2828
      %v2833 = vpack.c.b16 %v2829, %v2829
      %v2902 = vunpack.c.l.b16 %v2753
      %v2903 = vunpack.c.l.b16 %v2754
      %v2904 = vunpack.c.l.b16 %v2755
      %v2905 = vunpack.c.l.b16 %v2756
      %v2906 = vunpack.c.l.b16 %v2757
      %v2907 = vunpack.c.l.b16 %v2758
      %v2908 = vunpack.c.l.b16 %v2759
      %v2909 = vunpack.c.l.b16 %v2760
      %v2910 = vunpack.c.l.b16 %v2761
      %v2911 = vunpack.c.l.b16 %v2762
      %v2912 = vunpack.c.l.b16 %v2763
      %v2913 = vunpack.c.l.b16 %v2764
      %v2914 = vunpack.c.l.b16 %v2765
      %v2915 = vunpack.c.l.b16 %v2766
      %v2916 = vunpack.c.l.b16 %v2767
      %v2917 = vunpack.c.l.b16 %v2768
      %v2918 = vunpack.c.l.b16 %v2769
      %v2919 = vunpack.c.l.b16 %v2770
      %v2920 = vunpack.c.l.b16 %v2771
      %v2921 = vunpack.c.l.b16 %v2772
      %v2922 = vunpack.c.l.b16 %v2773
      %v2923 = vunpack.c.l.b16 %v2774
      %v2924 = vunpack.c.l.b16 %v2775
      %v2925 = vunpack.c.l.b16 %v2776
      %v2926 = vunpack.c.l.b16 %v2777
      %v2927 = vunpack.c.l.b16 %v2778
      %v2928 = vunpack.c.l.b16 %v2779
      %v2929 = vunpack.c.l.b16 %v2780
      %v2930 = vunpack.c.l.b16 %v2781
      %v2931 = vunpack.c.l.b16 %v2782
      %v2932 = vunpack.c.l.b16 %v2783
      %v2933 = vunpack.c.l.b16 %v2784
      %v2934 = vunpack.c.l.b16 %v2785
      %v2935 = vunpack.c.l.b16 %v2786
      %v2936 = vunpack.c.l.b16 %v2787
      %v2937 = vunpack.c.l.b16 %v2788
      %v2938 = vunpack.c.l.b16 %v2789
      %v2939 = vunpack.c.l.b16 %v2790
      %v2940 = vunpack.c.l.b16 %v2791
      %v2941 = vunpack.c.l.b16 %v2792
      %v2942 = vunpack.c.l.b16 %v2793
      %v2943 = vunpack.c.l.b16 %v2794
      %v2944 = vunpack.c.l.b16 %v2795
      %v2945 = vunpack.c.l.b16 %v2796
      %v2946 = vunpack.c.l.b16 %v2797
      %v2947 = vunpack.c.l.b16 %v2798
      %v2948 = vunpack.c.l.b16 %v2799
      %v2949 = vunpack.c.l.b16 %v2800
      %v2950 = vunpack.c.l.b16 %v2801
      %v2951 = vunpack.c.l.b16 %v2802
      %v2952 = vunpack.c.l.b16 %v2803
      %v2953 = vunpack.c.l.b16 %v2804
      %v2954 = vunpack.c.l.b16 %v2805
      %v2955 = vunpack.c.l.b16 %v2806
      %v2956 = vunpack.c.l.b16 %v2807
      %v2957 = vunpack.c.l.b16 %v2808
      %v2958 = vunpack.c.l.b16 %v2809
      %v2959 = vunpack.c.l.b16 %v2810
      %v2960 = vunpack.c.l.b16 %v2811
      %v2961 = vunpack.c.l.b16 %v2812
      %v2962 = vunpack.c.l.b16 %v2813
      %v2963 = vunpack.c.l.b16 %v2814
      %v2964 = vunpack.c.l.b16 %v2815
      %v2965 = vunpack.c.l.b16 %v2816
      %v2966 = vpack.c.b16 %v2903, %v2902
      %v2967 = vpack.c.b16 %v2905, %v2904
      %v2968 = vpack.c.b16 %v2907, %v2906
      %v2969 = vpack.c.b16 %v2909, %v2908
      %v2970 = vpack.c.b16 %v2911, %v2910
      %v2971 = vpack.c.b16 %v2913, %v2912
      %v2972 = vpack.c.b16 %v2915, %v2914
      %v2973 = vpack.c.b16 %v2917, %v2916
      %v2974 = vpack.c.b16 %v2919, %v2918
      %v2975 = vpack.c.b16 %v2921, %v2920
      %v2976 = vpack.c.b16 %v2923, %v2922
      %v2977 = vpack.c.b16 %v2925, %v2924
      %v2978 = vpack.c.b16 %v2927, %v2926
      %v2979 = vpack.c.b16 %v2929, %v2928
      %v2980 = vpack.c.b16 %v2931, %v2930
      %v2981 = vpack.c.b16 %v2933, %v2932
      %v2982 = vpack.c.b16 %v2935, %v2934
      %v2983 = vpack.c.b16 %v2937, %v2936
      %v2984 = vpack.c.b16 %v2939, %v2938
      %v2985 = vpack.c.b16 %v2941, %v2940
      %v2986 = vpack.c.b16 %v2943, %v2942
      %v2987 = vpack.c.b16 %v2945, %v2944
      %v2988 = vpack.c.b16 %v2947, %v2946
      %v2989 = vpack.c.b16 %v2949, %v2948
      %v2990 = vpack.c.b16 %v2951, %v2950
      %v2991 = vpack.c.b16 %v2953, %v2952
      %v2992 = vpack.c.b16 %v2955, %v2954
      %v2993 = vpack.c.b16 %v2957, %v2956
      %v2994 = vpack.c.b16 %v2959, %v2958
      %v2995 = vpack.c.b16 %v2961, %v2960
      %v2996 = vpack.c.b16 %v2963, %v2962
      %v2997 = vpack.c.b16 %v2965, %v2964
      %3030 = vmatprep.subr.bf16.mxu0 0
      %3031 = vmatpush1.bf16.msra.mxu0 %v2966
      %3032 = vmatprep.subr.bf16.mxu0 0
      %3033 = vmatpush1.bf16.msra.mxu0 %v2967
      %3034 = vmatprep.subr.bf16.mxu0 0
      %3035 = vmatpush1.bf16.msra.mxu0 %v2968
      %3036 = vmatprep.subr.bf16.mxu0 0
      %3037 = vmatpush1.bf16.msra.mxu0 %v2969
      %3038 = vmatprep.subr.bf16.mxu0 0
      %3039 = vmatpush1.bf16.msra.mxu0 %v2970
      %3040 = vmatprep.subr.bf16.mxu0 0
      %3041 = vmatpush1.bf16.msra.mxu0 %v2971
      %3042 = vmatprep.subr.bf16.mxu0 0
      %3043 = vmatpush1.bf16.msra.mxu0 %v2972
      %3044 = vmatprep.subr.bf16.mxu0 0
      %3045 = vmatpush1.bf16.msra.mxu0 %v2973
      %3046 = vmatprep.subr.bf16.mxu0 0
      %3047 = vmatpush1.bf16.msra.mxu0 %v2974
      %3048 = vmatprep.subr.bf16.mxu0 0
      %3049 = vmatpush1.bf16.msra.mxu0 %v2975
      %3050 = vmatprep.subr.bf16.mxu0 0
      %3051 = vmatpush1.bf16.msra.mxu0 %v2976
      %3052 = vmatprep.subr.bf16.mxu0 0
      %3053 = vmatpush1.bf16.msra.mxu0 %v2977
      %3054 = vmatprep.subr.bf16.mxu0 0
      %3055 = vmatpush1.bf16.msra.mxu0 %v2978
      %3056 = vmatprep.subr.bf16.mxu0 0
      %3057 = vmatpush1.bf16.msra.mxu0 %v2979
      %3058 = vmatprep.subr.bf16.mxu0 0
      %3059 = vmatpush1.bf16.msra.mxu0 %v2980
      %3060 = vmatprep.subr.bf16.mxu0 0
      %3061 = vmatpush1.bf16.msra.mxu0 %v2981
      %3062 = vmatprep.mubr.bf16.mxu0 %v2831
      %3063 = vmatmul.mubr.bf16.gmra.mrb[0].mxu0 %v2830
      %v3064 = vpop.f32.mrb[0].mxu0
      %v3065 = vadd.f32 %v2822, %v3064
      %v3066 = vpop.f32.mrb[0].mxu0
      %v3067 = vpop.f32.mrb[0].mxu0
      %v3068 = vpop.f32.mrb[0].mxu0
      %3069 = vdwg.mxu0
      %3070 = vmatprep.subr.bf16.mxu0 0
      %3071 = vmatpush1.bf16.msra.mxu0 %v2982
      %3072 = vmatprep.subr.bf16.mxu0 0
      %3073 = vmatpush1.bf16.msra.mxu0 %v2983
      %3074 = vmatprep.subr.bf16.mxu0 0
      %3075 = vmatpush1.bf16.msra.mxu0 %v2984
      %3076 = vmatprep.subr.bf16.mxu0 0
      %3077 = vmatpush1.bf16.msra.mxu0 %v2985
      %3078 = vmatprep.subr.bf16.mxu0 0
      %3079 = vmatpush1.bf16.msra.mxu0 %v2986
      %3080 = vmatprep.subr.bf16.mxu0 0
      %3081 = vmatpush1.bf16.msra.mxu0 %v2987
      %3082 = vmatprep.subr.bf16.mxu0 0
      %3083 = vmatpush1.bf16.msra.mxu0 %v2988
      %3084 = vmatprep.subr.bf16.mxu0 0
      %3085 = vmatpush1.bf16.msra.mxu0 %v2989
      %3086 = vmatprep.subr.bf16.mxu0 0
      %3087 = vmatpush1.bf16.msra.mxu0 %v2990
      %3088 = vmatprep.subr.bf16.mxu0 0
      %3089 = vmatpush1.bf16.msra.mxu0 %v2991
      %3090 = vmatprep.subr.bf16.mxu0 0
      %3091 = vmatpush1.bf16.msra.mxu0 %v2992
      %3092 = vmatprep.subr.bf16.mxu0 0
      %3093 = vmatpush1.bf16.msra.mxu0 %v2993
      %3094 = vmatprep.subr.bf16.mxu0 0
      %3095 = vmatpush1.bf16.msra.mxu0 %v2994
      %3096 = vmatprep.subr.bf16.mxu0 0
      %3097 = vmatpush1.bf16.msra.mxu0 %v2995
      %3098 = vmatprep.subr.bf16.mxu0 0
      %3099 = vmatpush1.bf16.msra.mxu0 %v2996
      %3100 = vmatprep.subr.bf16.mxu0 0
      %3101 = vmatpush1.bf16.msra.mxu0 %v2997
      %3102 = vmatprep.mubr.bf16.mxu0 %v2833
      %3103 = vmatmul.mubr.bf16.gmra.mrb[0].mxu0 %v2832
      %v3104 = vpop.f32.mrb[0].mxu0
      %v3105 = vadd.f32 %v3065, %v3104
      %v3106 = vpop.f32.mrb[0].mxu0
      %v3107 = vpop.f32.mrb[0].mxu0
      %v3108 = vpop.f32.mrb[0].mxu0
      %3109 = vdwg.mxu0
      %v3110 = vmax.f32 %v3105, 0.0
      %v3111 = vpack.c.bf16 %v3110, %v3110
      %v3113 = vunpack.c.l.b16 %v3111
      %v3114 = vpack.c.b16 %v3113, %v3113
      %3115 = vrot.lane.b32.xlu0 %v3114, 64
      %v3116 = vpop.permute.xlu0 %3115
      %3118 = vst.msk [vmem:[#allocation4 + $0x4] sm:$0xf] %vm2363, %v3116
      %v3119 = vld [vmem:[#allocation2 + $0x20] sm:$0xff]
      %v3120 = vld [vmem:[#allocation2 + $0x28] sm:$0xff]
      %v3121 = vpack.c.bf16 %v3119, %v3119
      %v3122 = vpack.c.bf16 %v3120, %v3120
      %v3125 = vunpack.c.l.b16 %v3121
      %v3126 = vunpack.c.l.b16 %v3122
      %v3127 = vpack.c.b16 %v3126, %v3125
      %3128 = vrot.lane.b32.xlu0 %v3127, 64
      %v3129 = vpop.permute.xlu0 %3128
      %v3130 = vrot.slane %v3129, 4
      %v3131 = vsel %vm1947, %v3129, %v3130
      %3133 = vst [vmem:[#allocation3] sm:$0xf] %v3131
      %v3134 = vld [vmem:[#allocation2 + $0x30] sm:$0xff]
      %v3135 = vld [vmem:[#allocation2 + $0x38] sm:$0xff]
      %v3136 = vpack.c.bf16 %v3134, %v3134
      %v3137 = vpack.c.bf16 %v3135, %v3135
      %v3140 = vunpack.c.l.b16 %v3136
      %v3141 = vunpack.c.l.b16 %v3137
      %v3142 = vpack.c.b16 %v3141, %v3140
      %3143 = vrot.lane.b32.xlu0 %v3142, 64
      %v3144 = vpop.permute.xlu0 %3143
      %v3145 = vrot.slane %v3144, 4
      %v3146 = vsel %vm1947, %v3144, %v3145
      %3148 = vst [vmem:[#allocation3 + $0x4] sm:$0xf] %v3146
      %v3149 = vld [vmem:[#allocation2 + $0x40] sm:$0xff]
      %v3150 = vld [vmem:[#allocation2 + $0x48] sm:$0xff]
      %v3151 = vpack.c.bf16 %v3149, %v3149
      %v3152 = vpack.c.bf16 %v3150, %v3150
      %v3155 = vunpack.c.l.b16 %v3151
      %v3156 = vunpack.c.l.b16 %v3152
      %v3157 = vpack.c.b16 %v3156, %v3155
      %3158 = vrot.lane.b32.xlu0 %v3157, 64
      %v3159 = vpop.permute.xlu0 %3158
      %v3160 = vrot.slane %v3159, 4
      %v3161 = vsel %vm1947, %v3159, %v3160
      %3163 = vst [vmem:[#allocation3 + $0x8] sm:$0xf] %v3161
      %v3164 = vld [vmem:[#allocation2 + $0x50] sm:$0xff]
      %v3165 = vld [vmem:[#allocation2 + $0x58] sm:$0xff]
      %v3166 = vpack.c.bf16 %v3164, %v3164
      %v3167 = vpack.c.bf16 %v3165, %v3165
      %v3170 = vunpack.c.l.b16 %v3166
      %v3171 = vunpack.c.l.b16 %v3167
      %v3172 = vpack.c.b16 %v3171, %v3170
      %3173 = vrot.lane.b32.xlu0 %v3172, 64
      %v3174 = vpop.permute.xlu0 %3173
      %v3175 = vrot.slane %v3174, 4
      %v3176 = vsel %vm1947, %v3174, %v3175
      %3178 = vst [vmem:[#allocation3 + $0xc] sm:$0xf] %v3176
      %v3179 = vld [vmem:[#allocation3] sm:$0xff]
      %v3180 = vld [vmem:[#allocation3 + $0x8] sm:$0xff]
      %v3181 = vld [vmem:[%s3] sm:$0xf]
      %v3182 = vld [vmem:[%s3 + $0x4] sm:$0xf]
      %v3183 = vld [vmem:[%s3 + $0x8] sm:$0xf]
      %v3184 = vld [vmem:[%s3 + $0xc] sm:$0xf]
      %v3185 = vld [vmem:[%s3 + $0x10] sm:$0xf]
      %v3186 = vld [vmem:[%s3 + $0x14] sm:$0xf]
      %v3187 = vld [vmem:[%s3 + $0x18] sm:$0xf]
      %v3188 = vld [vmem:[%s3 + $0x1c] sm:$0xf]
      %v3189 = vld [vmem:[%s3 + $0x20] sm:$0xf]
      %v3190 = vld [vmem:[%s3 + $0x24] sm:$0xf]
      %v3191 = vld [vmem:[%s3 + $0x28] sm:$0xf]
      %v3192 = vld [vmem:[%s3 + $0x2c] sm:$0xf]
      %v3193 = vld [vmem:[%s3 + $0x30] sm:$0xf]
      %v3194 = vld [vmem:[%s3 + $0x34] sm:$0xf]
      %v3195 = vld [vmem:[%s3 + $0x38] sm:$0xf]
      %v3196 = vld [vmem:[%s3 + $0x3c] sm:$0xf]
      %v3197 = vld [vmem:[%s3 + $0x40] sm:$0xf]
      %v3198 = vld [vmem:[%s3 + $0x44] sm:$0xf]
      %v3199 = vld [vmem:[%s3 + $0x48] sm:$0xf]
      %v3200 = vld [vmem:[%s3 + $0x4c] sm:$0xf]
      %v3201 = vld [vmem:[%s3 + $0x50] sm:$0xf]
      %v3202 = vld [vmem:[%s3 + $0x54] sm:$0xf]
      %v3203 = vld [vmem:[%s3 + $0x58] sm:$0xf]
      %v3204 = vld [vmem:[%s3 + $0x5c] sm:$0xf]
      %v3205 = vld [vmem:[%s3 + $0x60] sm:$0xf]
      %v3206 = vld [vmem:[%s3 + $0x64] sm:$0xf]
      %v3207 = vld [vmem:[%s3 + $0x68] sm:$0xf]
      %v3208 = vld [vmem:[%s3 + $0x6c] sm:$0xf]
      %v3209 = vld [vmem:[%s3 + $0x70] sm:$0xf]
      %v3210 = vld [vmem:[%s3 + $0x74] sm:$0xf]
      %v3211 = vld [vmem:[%s3 + $0x78] sm:$0xf]
      %v3212 = vld [vmem:[%s3 + $0x7c] sm:$0xf]
      %v3213 = vld [vmem:[%s3 + $0x80] sm:$0xf]
      %v3214 = vld [vmem:[%s3 + $0x84] sm:$0xf]
      %v3215 = vld [vmem:[%s3 + $0x88] sm:$0xf]
      %v3216 = vld [vmem:[%s3 + $0x8c] sm:$0xf]
      %v3217 = vld [vmem:[%s3 + $0x90] sm:$0xf]
      %v3218 = vld [vmem:[%s3 + $0x94] sm:$0xf]
      %v3219 = vld [vmem:[%s3 + $0x98] sm:$0xf]
      %v3220 = vld [vmem:[%s3 + $0x9c] sm:$0xf]
      %v3221 = vld [vmem:[%s3 + $0xa0] sm:$0xf]
      %v3222 = vld [vmem:[%s3 + $0xa4] sm:$0xf]
      %v3223 = vld [vmem:[%s3 + $0xa8] sm:$0xf]
      %v3224 = vld [vmem:[%s3 + $0xac] sm:$0xf]
      %v3225 = vld [vmem:[%s3 + $0xb0] sm:$0xf]
      %v3226 = vld [vmem:[%s3 + $0xb4] sm:$0xf]
      %v3227 = vld [vmem:[%s3 + $0xb8] sm:$0xf]
      %v3228 = vld [vmem:[%s3 + $0xbc] sm:$0xf]
      %v3229 = vld [vmem:[%s3 + $0xc0] sm:$0xf]
      %v3230 = vld [vmem:[%s3 + $0xc4] sm:$0xf]
      %v3231 = vld [vmem:[%s3 + $0xc8] sm:$0xf]
      %v3232 = vld [vmem:[%s3 + $0xcc] sm:$0xf]
      %v3233 = vld [vmem:[%s3 + $0xd0] sm:$0xf]
      %v3234 = vld [vmem:[%s3 + $0xd4] sm:$0xf]
      %v3235 = vld [vmem:[%s3 + $0xd8] sm:$0xf]
      %v3236 = vld [vmem:[%s3 + $0xdc] sm:$0xf]
      %v3237 = vld [vmem:[%s3 + $0xe0] sm:$0xf]
      %v3238 = vld [vmem:[%s3 + $0xe4] sm:$0xf]
      %v3239 = vld [vmem:[%s3 + $0xe8] sm:$0xf]
      %v3240 = vld [vmem:[%s3 + $0xec] sm:$0xf]
      %v3241 = vld [vmem:[%s3 + $0xf0] sm:$0xf]
      %v3242 = vld [vmem:[%s3 + $0xf4] sm:$0xf]
      %v3243 = vld [vmem:[%s3 + $0xf8] sm:$0xf]
      %v3244 = vld [vmem:[%s3 + $0xfc] sm:$0xf]
      %v3245 = vld [vmem:[%s4] sm:$0x1]
      %v3247 = vlaneseq
      %v3248 = vshrl.u32 %v3247, 7
      %v3249 = vsub.s32 0, %v3248
      %v3250 = vrot.slane %v3245, %v3249
      %v3254 = vunpack.c.l.b16 %v3179
      %v3255 = vunpack.c.h.b16 %v3179
      %v3256 = vunpack.c.l.b16 %v3180
      %v3257 = vunpack.c.h.b16 %v3180
      %v3258 = vpack.c.b16 %v3254, %v3254
      %v3259 = vpack.c.b16 %v3255, %v3255
      %v3260 = vpack.c.b16 %v3256, %v3256
      %v3261 = vpack.c.b16 %v3257, %v3257
      %v3330 = vunpack.c.l.b16 %v3181
      %v3331 = vunpack.c.l.b16 %v3182
      %v3332 = vunpack.c.l.b16 %v3183
      %v3333 = vunpack.c.l.b16 %v3184
      %v3334 = vunpack.c.l.b16 %v3185
      %v3335 = vunpack.c.l.b16 %v3186
      %v3336 = vunpack.c.l.b16 %v3187
      %v3337 = vunpack.c.l.b16 %v3188
      %v3338 = vunpack.c.l.b16 %v3189
      %v3339 = vunpack.c.l.b16 %v3190
      %v3340 = vunpack.c.l.b16 %v3191
      %v3341 = vunpack.c.l.b16 %v3192
      %v3342 = vunpack.c.l.b16 %v3193
      %v3343 = vunpack.c.l.b16 %v3194
      %v3344 = vunpack.c.l.b16 %v3195
      %v3345 = vunpack.c.l.b16 %v3196
      %v3346 = vunpack.c.l.b16 %v3197
      %v3347 = vunpack.c.l.b16 %v3198
      %v3348 = vunpack.c.l.b16 %v3199
      %v3349 = vunpack.c.l.b16 %v3200
      %v3350 = vunpack.c.l.b16 %v3201
      %v3351 = vunpack.c.l.b16 %v3202
      %v3352 = vunpack.c.l.b16 %v3203
      %v3353 = vunpack.c.l.b16 %v3204
      %v3354 = vunpack.c.l.b16 %v3205
      %v3355 = vunpack.c.l.b16 %v3206
      %v3356 = vunpack.c.l.b16 %v3207
      %v3357 = vunpack.c.l.b16 %v3208
      %v3358 = vunpack.c.l.b16 %v3209
      %v3359 = vunpack.c.l.b16 %v3210
      %v3360 = vunpack.c.l.b16 %v3211
      %v3361 = vunpack.c.l.b16 %v3212
      %v3362 = vunpack.c.l.b16 %v3213
      %v3363 = vunpack.c.l.b16 %v3214
      %v3364 = vunpack.c.l.b16 %v3215
      %v3365 = vunpack.c.l.b16 %v3216
      %v3366 = vunpack.c.l.b16 %v3217
      %v3367 = vunpack.c.l.b16 %v3218
      %v3368 = vunpack.c.l.b16 %v3219
      %v3369 = vunpack.c.l.b16 %v3220
      %v3370 = vunpack.c.l.b16 %v3221
      %v3371 = vunpack.c.l.b16 %v3222
      %v3372 = vunpack.c.l.b16 %v3223
      %v3373 = vunpack.c.l.b16 %v3224
      %v3374 = vunpack.c.l.b16 %v3225
      %v3375 = vunpack.c.l.b16 %v3226
      %v3376 = vunpack.c.l.b16 %v3227
      %v3377 = vunpack.c.l.b16 %v3228
      %v3378 = vunpack.c.l.b16 %v3229
      %v3379 = vunpack.c.l.b16 %v3230
      %v3380 = vunpack.c.l.b16 %v3231
      %v3381 = vunpack.c.l.b16 %v3232
      %v3382 = vunpack.c.l.b16 %v3233
      %v3383 = vunpack.c.l.b16 %v3234
      %v3384 = vunpack.c.l.b16 %v3235
      %v3385 = vunpack.c.l.b16 %v3236
      %v3386 = vunpack.c.l.b16 %v3237
      %v3387 = vunpack.c.l.b16 %v3238
      %v3388 = vunpack.c.l.b16 %v3239
      %v3389 = vunpack.c.l.b16 %v3240
      %v3390 = vunpack.c.l.b16 %v3241
      %v3391 = vunpack.c.l.b16 %v3242
      %v3392 = vunpack.c.l.b16 %v3243
      %v3393 = vunpack.c.l.b16 %v3244
      %v3394 = vpack.c.b16 %v3331, %v3330
      %v3395 = vpack.c.b16 %v3333, %v3332
      %v3396 = vpack.c.b16 %v3335, %v3334
      %v3397 = vpack.c.b16 %v3337, %v3336
      %v3398 = vpack.c.b16 %v3339, %v3338
      %v3399 = vpack.c.b16 %v3341, %v3340
      %v3400 = vpack.c.b16 %v3343, %v3342
      %v3401 = vpack.c.b16 %v3345, %v3344
      %v3402 = vpack.c.b16 %v3347, %v3346
      %v3403 = vpack.c.b16 %v3349, %v3348
      %v3404 = vpack.c.b16 %v3351, %v3350
      %v3405 = vpack.c.b16 %v3353, %v3352
      %v3406 = vpack.c.b16 %v3355, %v3354
      %v3407 = vpack.c.b16 %v3357, %v3356
      %v3408 = vpack.c.b16 %v3359, %v3358
      %v3409 = vpack.c.b16 %v3361, %v3360
      %v3410 = vpack.c.b16 %v3363, %v3362
      %v3411 = vpack.c.b16 %v3365, %v3364
      %v3412 = vpack.c.b16 %v3367, %v3366
      %v3413 = vpack.c.b16 %v3369, %v3368
      %v3414 = vpack.c.b16 %v3371, %v3370
      %v3415 = vpack.c.b16 %v3373, %v3372
      %v3416 = vpack.c.b16 %v3375, %v3374
      %v3417 = vpack.c.b16 %v3377, %v3376
      %v3418 = vpack.c.b16 %v3379, %v3378
      %v3419 = vpack.c.b16 %v3381, %v3380
      %v3420 = vpack.c.b16 %v3383, %v3382
      %v3421 = vpack.c.b16 %v3385, %v3384
      %v3422 = vpack.c.b16 %v3387, %v3386
      %v3423 = vpack.c.b16 %v3389, %v3388
      %v3424 = vpack.c.b16 %v3391, %v3390
      %v3425 = vpack.c.b16 %v3393, %v3392
      %3458 = vmatprep.subr.bf16.mxu0 0
      %3459 = vmatpush1.bf16.msra.mxu0 %v3394
      %3460 = vmatprep.subr.bf16.mxu0 0
      %3461 = vmatpush1.bf16.msra.mxu0 %v3395
      %3462 = vmatprep.subr.bf16.mxu0 0
      %3463 = vmatpush1.bf16.msra.mxu0 %v3396
      %3464 = vmatprep.subr.bf16.mxu0 0
      %3465 = vmatpush1.bf16.msra.mxu0 %v3397
      %3466 = vmatprep.subr.bf16.mxu0 0
      %3467 = vmatpush1.bf16.msra.mxu0 %v3398
      %3468 = vmatprep.subr.bf16.mxu0 0
      %3469 = vmatpush1.bf16.msra.mxu0 %v3399
      %3470 = vmatprep.subr.bf16.mxu0 0
      %3471 = vmatpush1.bf16.msra.mxu0 %v3400
      %3472 = vmatprep.subr.bf16.mxu0 0
      %3473 = vmatpush1.bf16.msra.mxu0 %v3401
      %3474 = vmatprep.subr.bf16.mxu0 0
      %3475 = vmatpush1.bf16.msra.mxu0 %v3402
      %3476 = vmatprep.subr.bf16.mxu0 0
      %3477 = vmatpush1.bf16.msra.mxu0 %v3403
      %3478 = vmatprep.subr.bf16.mxu0 0
      %3479 = vmatpush1.bf16.msra.mxu0 %v3404
      %3480 = vmatprep.subr.bf16.mxu0 0
      %3481 = vmatpush1.bf16.msra.mxu0 %v3405
      %3482 = vmatprep.subr.bf16.mxu0 0
      %3483 = vmatpush1.bf16.msra.mxu0 %v3406
      %3484 = vmatprep.subr.bf16.mxu0 0
      %3485 = vmatpush1.bf16.msra.mxu0 %v3407
      %3486 = vmatprep.subr.bf16.mxu0 0
      %3487 = vmatpush1.bf16.msra.mxu0 %v3408
      %3488 = vmatprep.subr.bf16.mxu0 0
      %3489 = vmatpush1.bf16.msra.mxu0 %v3409
      %3490 = vmatprep.mubr.bf16.mxu0 %v3259
      %3491 = vmatmul.mubr.bf16.gmra.mrb[0].mxu0 %v3258
      %v3492 = vpop.f32.mrb[0].mxu0
      %v3493 = vadd.f32 %v3250, %v3492
      %v3494 = vpop.f32.mrb[0].mxu0
      %v3495 = vpop.f32.mrb[0].mxu0
      %v3496 = vpop.f32.mrb[0].mxu0
      %3497 = vdwg.mxu0
      %3498 = vmatprep.subr.bf16.mxu0 0
      %3499 = vmatpush1.bf16.msra.mxu0 %v3410
      %3500 = vmatprep.subr.bf16.mxu0 0
      %3501 = vmatpush1.bf16.msra.mxu0 %v3411
      %3502 = vmatprep.subr.bf16.mxu0 0
      %3503 = vmatpush1.bf16.msra.mxu0 %v3412
      %3504 = vmatprep.subr.bf16.mxu0 0
      %3505 = vmatpush1.bf16.msra.mxu0 %v3413
      %3506 = vmatprep.subr.bf16.mxu0 0
      %3507 = vmatpush1.bf16.msra.mxu0 %v3414
      %3508 = vmatprep.subr.bf16.mxu0 0
      %3509 = vmatpush1.bf16.msra.mxu0 %v3415
      %3510 = vmatprep.subr.bf16.mxu0 0
      %3511 = vmatpush1.bf16.msra.mxu0 %v3416
      %3512 = vmatprep.subr.bf16.mxu0 0
      %3513 = vmatpush1.bf16.msra.mxu0 %v3417
      %3514 = vmatprep.subr.bf16.mxu0 0
      %3515 = vmatpush1.bf16.msra.mxu0 %v3418
      %3516 = vmatprep.subr.bf16.mxu0 0
      %3517 = vmatpush1.bf16.msra.mxu0 %v3419
      %3518 = vmatprep.subr.bf16.mxu0 0
      %3519 = vmatpush1.bf16.msra.mxu0 %v3420
      %3520 = vmatprep.subr.bf16.mxu0 0
      %3521 = vmatpush1.bf16.msra.mxu0 %v3421
      %3522 = vmatprep.subr.bf16.mxu0 0
      %3523 = vmatpush1.bf16.msra.mxu0 %v3422
      %3524 = vmatprep.subr.bf16.mxu0 0
      %3525 = vmatpush1.bf16.msra.mxu0 %v3423
      %3526 = vmatprep.subr.bf16.mxu0 0
      %3527 = vmatpush1.bf16.msra.mxu0 %v3424
      %3528 = vmatprep.subr.bf16.mxu0 0
      %3529 = vmatpush1.bf16.msra.mxu0 %v3425
      %3530 = vmatprep.mubr.bf16.mxu0 %v3261
      %3531 = vmatmul.mubr.bf16.gmra.mrb[0].mxu0 %v3260
      %v3532 = vpop.f32.mrb[0].mxu0
      %v3533 = vadd.f32 %v3493, %v3532
      %v3534 = vpop.f32.mrb[0].mxu0
      %v3535 = vpop.f32.mrb[0].mxu0
      %v3536 = vpop.f32.mrb[0].mxu0
      %3537 = vdwg.mxu0
      %v3538 = vmax.f32 %v3533, 0.0
      %v3539 = vpack.c.bf16 %v3538, %v3538
      %3540 = vst.msk [vmem:[#allocation4 + $0x8] sm:$0xf] %vm1933, %v3539
      %v3541 = vld [vmem:[#allocation2 + $0x28] sm:$0xff]
      %v3542 = vpack.c.bf16 %v3541, %v3541
      %3543 = vst [vmem:[#allocation3] sm:$0xf] %v3542
      %v3544 = vld [vmem:[#allocation2 + $0x38] sm:$0xff]
      %v3545 = vpack.c.bf16 %v3544, %v3544
      %3546 = vst [vmem:[#allocation3 + $0x4] sm:$0xf] %v3545
      %v3547 = vld [vmem:[#allocation2 + $0x48] sm:$0xff]
      %v3548 = vpack.c.bf16 %v3547, %v3547
      %3549 = vst [vmem:[#allocation3 + $0x8] sm:$0xf] %v3548
      %v3550 = vld [vmem:[#allocation2 + $0x58] sm:$0xff]
      %v3551 = vpack.c.bf16 %v3550, %v3550
      %3552 = vst [vmem:[#allocation3 + $0xc] sm:$0xf] %v3551
      %v3553 = vld [vmem:[#allocation3] sm:$0xff]
      %v3554 = vld [vmem:[#allocation3 + $0x8] sm:$0xff]
      %v3555 = vld [vmem:[%s3] sm:$0xf]
      %v3556 = vld [vmem:[%s3 + $0x4] sm:$0xf]
      %v3557 = vld [vmem:[%s3 + $0x8] sm:$0xf]
      %v3558 = vld [vmem:[%s3 + $0xc] sm:$0xf]
      %v3559 = vld [vmem:[%s3 + $0x10] sm:$0xf]
      %v3560 = vld [vmem:[%s3 + $0x14] sm:$0xf]
      %v3561 = vld [vmem:[%s3 + $0x18] sm:$0xf]
      %v3562 = vld [vmem:[%s3 + $0x1c] sm:$0xf]
      %v3563 = vld [vmem:[%s3 + $0x20] sm:$0xf]
      %v3564 = vld [vmem:[%s3 + $0x24] sm:$0xf]
      %v3565 = vld [vmem:[%s3 + $0x28] sm:$0xf]
      %v3566 = vld [vmem:[%s3 + $0x2c] sm:$0xf]
      %v3567 = vld [vmem:[%s3 + $0x30] sm:$0xf]
      %v3568 = vld [vmem:[%s3 + $0x34] sm:$0xf]
      %v3569 = vld [vmem:[%s3 + $0x38] sm:$0xf]
      %v3570 = vld [vmem:[%s3 + $0x3c] sm:$0xf]
      %v3571 = vld [vmem:[%s3 + $0x40] sm:$0xf]
      %v3572 = vld [vmem:[%s3 + $0x44] sm:$0xf]
      %v3573 = vld [vmem:[%s3 + $0x48] sm:$0xf]
      %v3574 = vld [vmem:[%s3 + $0x4c] sm:$0xf]
      %v3575 = vld [vmem:[%s3 + $0x50] sm:$0xf]
      %v3576 = vld [vmem:[%s3 + $0x54] sm:$0xf]
      %v3577 = vld [vmem:[%s3 + $0x58] sm:$0xf]
      %v3578 = vld [vmem:[%s3 + $0x5c] sm:$0xf]
      %v3579 = vld [vmem:[%s3 + $0x60] sm:$0xf]
      %v3580 = vld [vmem:[%s3 + $0x64] sm:$0xf]
      %v3581 = vld [vmem:[%s3 + $0x68] sm:$0xf]
      %v3582 = vld [vmem:[%s3 + $0x6c] sm:$0xf]
      %v3583 = vld [vmem:[%s3 + $0x70] sm:$0xf]
      %v3584 = vld [vmem:[%s3 + $0x74] sm:$0xf]
      %v3585 = vld [vmem:[%s3 + $0x78] sm:$0xf]
      %v3586 = vld [vmem:[%s3 + $0x7c] sm:$0xf]
      %v3587 = vld [vmem:[%s3 + $0x80] sm:$0xf]
      %v3588 = vld [vmem:[%s3 + $0x84] sm:$0xf]
      %v3589 = vld [vmem:[%s3 + $0x88] sm:$0xf]
      %v3590 = vld [vmem:[%s3 + $0x8c] sm:$0xf]
      %v3591 = vld [vmem:[%s3 + $0x90] sm:$0xf]
      %v3592 = vld [vmem:[%s3 + $0x94] sm:$0xf]
      %v3593 = vld [vmem:[%s3 + $0x98] sm:$0xf]
      %v3594 = vld [vmem:[%s3 + $0x9c] sm:$0xf]
      %v3595 = vld [vmem:[%s3 + $0xa0] sm:$0xf]
      %v3596 = vld [vmem:[%s3 + $0xa4] sm:$0xf]
      %v3597 = vld [vmem:[%s3 + $0xa8] sm:$0xf]
      %v3598 = vld [vmem:[%s3 + $0xac] sm:$0xf]
      %v3599 = vld [vmem:[%s3 + $0xb0] sm:$0xf]
      %v3600 = vld [vmem:[%s3 + $0xb4] sm:$0xf]
      %v3601 = vld [vmem:[%s3 + $0xb8] sm:$0xf]
      %v3602 = vld [vmem:[%s3 + $0xbc] sm:$0xf]
      %v3603 = vld [vmem:[%s3 + $0xc0] sm:$0xf]
      %v3604 = vld [vmem:[%s3 + $0xc4] sm:$0xf]
      %v3605 = vld [vmem:[%s3 + $0xc8] sm:$0xf]
      %v3606 = vld [vmem:[%s3 + $0xcc] sm:$0xf]
      %v3607 = vld [vmem:[%s3 + $0xd0] sm:$0xf]
      %v3608 = vld [vmem:[%s3 + $0xd4] sm:$0xf]
      %v3609 = vld [vmem:[%s3 + $0xd8] sm:$0xf]
      %v3610 = vld [vmem:[%s3 + $0xdc] sm:$0xf]
      %v3611 = vld [vmem:[%s3 + $0xe0] sm:$0xf]
      %v3612 = vld [vmem:[%s3 + $0xe4] sm:$0xf]
      %v3613 = vld [vmem:[%s3 + $0xe8] sm:$0xf]
      %v3614 = vld [vmem:[%s3 + $0xec] sm:$0xf]
      %v3615 = vld [vmem:[%s3 + $0xf0] sm:$0xf]
      %v3616 = vld [vmem:[%s3 + $0xf4] sm:$0xf]
      %v3617 = vld [vmem:[%s3 + $0xf8] sm:$0xf]
      %v3618 = vld [vmem:[%s3 + $0xfc] sm:$0xf]
      %v3619 = vld [vmem:[%s4] sm:$0x1]
      %v3621 = vlaneseq
      %v3622 = vshrl.u32 %v3621, 7
      %v3623 = vsub.s32 0, %v3622
      %v3624 = vrot.slane %v3619, %v3623
      %v3628 = vunpack.c.l.b16 %v3553
      %v3629 = vunpack.c.h.b16 %v3553
      %v3630 = vunpack.c.l.b16 %v3554
      %v3631 = vunpack.c.h.b16 %v3554
      %v3632 = vpack.c.b16 %v3628, %v3628
      %v3633 = vpack.c.b16 %v3629, %v3629
      %v3634 = vpack.c.b16 %v3630, %v3630
      %v3635 = vpack.c.b16 %v3631, %v3631
      %v3704 = vunpack.c.l.b16 %v3555
      %v3705 = vunpack.c.l.b16 %v3556
      %v3706 = vunpack.c.l.b16 %v3557
      %v3707 = vunpack.c.l.b16 %v3558
      %v3708 = vunpack.c.l.b16 %v3559
      %v3709 = vunpack.c.l.b16 %v3560
      %v3710 = vunpack.c.l.b16 %v3561
      %v3711 = vunpack.c.l.b16 %v3562
      %v3712 = vunpack.c.l.b16 %v3563
      %v3713 = vunpack.c.l.b16 %v3564
      %v3714 = vunpack.c.l.b16 %v3565
      %v3715 = vunpack.c.l.b16 %v3566
      %v3716 = vunpack.c.l.b16 %v3567
      %v3717 = vunpack.c.l.b16 %v3568
      %v3718 = vunpack.c.l.b16 %v3569
      %v3719 = vunpack.c.l.b16 %v3570
      %v3720 = vunpack.c.l.b16 %v3571
      %v3721 = vunpack.c.l.b16 %v3572
      %v3722 = vunpack.c.l.b16 %v3573
      %v3723 = vunpack.c.l.b16 %v3574
      %v3724 = vunpack.c.l.b16 %v3575
      %v3725 = vunpack.c.l.b16 %v3576
      %v3726 = vunpack.c.l.b16 %v3577
      %v3727 = vunpack.c.l.b16 %v3578
      %v3728 = vunpack.c.l.b16 %v3579
      %v3729 = vunpack.c.l.b16 %v3580
      %v3730 = vunpack.c.l.b16 %v3581
      %v3731 = vunpack.c.l.b16 %v3582
      %v3732 = vunpack.c.l.b16 %v3583
      %v3733 = vunpack.c.l.b16 %v3584
      %v3734 = vunpack.c.l.b16 %v3585
      %v3735 = vunpack.c.l.b16 %v3586
      %v3736 = vunpack.c.l.b16 %v3587
      %v3737 = vunpack.c.l.b16 %v3588
      %v3738 = vunpack.c.l.b16 %v3589
      %v3739 = vunpack.c.l.b16 %v3590
      %v3740 = vunpack.c.l.b16 %v3591
      %v3741 = vunpack.c.l.b16 %v3592
      %v3742 = vunpack.c.l.b16 %v3593
      %v3743 = vunpack.c.l.b16 %v3594
      %v3744 = vunpack.c.l.b16 %v3595
      %v3745 = vunpack.c.l.b16 %v3596
      %v3746 = vunpack.c.l.b16 %v3597
      %v3747 = vunpack.c.l.b16 %v3598
      %v3748 = vunpack.c.l.b16 %v3599
      %v3749 = vunpack.c.l.b16 %v3600
      %v3750 = vunpack.c.l.b16 %v3601
      %v3751 = vunpack.c.l.b16 %v3602
      %v3752 = vunpack.c.l.b16 %v3603
      %v3753 = vunpack.c.l.b16 %v3604
      %v3754 = vunpack.c.l.b16 %v3605
      %v3755 = vunpack.c.l.b16 %v3606
      %v3756 = vunpack.c.l.b16 %v3607
      %v3757 = vunpack.c.l.b16 %v3608
      %v3758 = vunpack.c.l.b16 %v3609
      %v3759 = vunpack.c.l.b16 %v3610
      %v3760 = vunpack.c.l.b16 %v3611
      %v3761 = vunpack.c.l.b16 %v3612
      %v3762 = vunpack.c.l.b16 %v3613
      %v3763 = vunpack.c.l.b16 %v3614
      %v3764 = vunpack.c.l.b16 %v3615
      %v3765 = vunpack.c.l.b16 %v3616
      %v3766 = vunpack.c.l.b16 %v3617
      %v3767 = vunpack.c.l.b16 %v3618
      %v3768 = vpack.c.b16 %v3705, %v3704
      %v3769 = vpack.c.b16 %v3707, %v3706
      %v3770 = vpack.c.b16 %v3709, %v3708
      %v3771 = vpack.c.b16 %v3711, %v3710
      %v3772 = vpack.c.b16 %v3713, %v3712
      %v3773 = vpack.c.b16 %v3715, %v3714
      %v3774 = vpack.c.b16 %v3717, %v3716
      %v3775 = vpack.c.b16 %v3719, %v3718
      %v3776 = vpack.c.b16 %v3721, %v3720
      %v3777 = vpack.c.b16 %v3723, %v3722
      %v3778 = vpack.c.b16 %v3725, %v3724
      %v3779 = vpack.c.b16 %v3727, %v3726
      %v3780 = vpack.c.b16 %v3729, %v3728
      %v3781 = vpack.c.b16 %v3731, %v3730
      %v3782 = vpack.c.b16 %v3733, %v3732
      %v3783 = vpack.c.b16 %v3735, %v3734
      %v3784 = vpack.c.b16 %v3737, %v3736
      %v3785 = vpack.c.b16 %v3739, %v3738
      %v3786 = vpack.c.b16 %v3741, %v3740
      %v3787 = vpack.c.b16 %v3743, %v3742
      %v3788 = vpack.c.b16 %v3745, %v3744
      %v3789 = vpack.c.b16 %v3747, %v3746
      %v3790 = vpack.c.b16 %v3749, %v3748
      %v3791 = vpack.c.b16 %v3751, %v3750
      %v3792 = vpack.c.b16 %v3753, %v3752
      %v3793 = vpack.c.b16 %v3755, %v3754
      %v3794 = vpack.c.b16 %v3757, %v3756
      %v3795 = vpack.c.b16 %v3759, %v3758
      %v3796 = vpack.c.b16 %v3761, %v3760
      %v3797 = vpack.c.b16 %v3763, %v3762
      %v3798 = vpack.c.b16 %v3765, %v3764
      %v3799 = vpack.c.b16 %v3767, %v3766
      %3832 = vmatprep.subr.bf16.mxu0 0
      %3833 = vmatpush1.bf16.msra.mxu0 %v3768
      %3834 = vmatprep.subr.bf16.mxu0 0
      %3835 = vmatpush1.bf16.msra.mxu0 %v3769
      %3836 = vmatprep.subr.bf16.mxu0 0
      %3837 = vmatpush1.bf16.msra.mxu0 %v3770
      %3838 = vmatprep.subr.bf16.mxu0 0
      %3839 = vmatpush1.bf16.msra.mxu0 %v3771
      %3840 = vmatprep.subr.bf16.mxu0 0
      %3841 = vmatpush1.bf16.msra.mxu0 %v3772
      %3842 = vmatprep.subr.bf16.mxu0 0
      %3843 = vmatpush1.bf16.msra.mxu0 %v3773
      %3844 = vmatprep.subr.bf16.mxu0 0
      %3845 = vmatpush1.bf16.msra.mxu0 %v3774
      %3846 = vmatprep.subr.bf16.mxu0 0
      %3847 = vmatpush1.bf16.msra.mxu0 %v3775
      %3848 = vmatprep.subr.bf16.mxu0 0
      %3849 = vmatpush1.bf16.msra.mxu0 %v3776
      %3850 = vmatprep.subr.bf16.mxu0 0
      %3851 = vmatpush1.bf16.msra.mxu0 %v3777
      %3852 = vmatprep.subr.bf16.mxu0 0
      %3853 = vmatpush1.bf16.msra.mxu0 %v3778
      %3854 = vmatprep.subr.bf16.mxu0 0
      %3855 = vmatpush1.bf16.msra.mxu0 %v3779
      %3856 = vmatprep.subr.bf16.mxu0 0
      %3857 = vmatpush1.bf16.msra.mxu0 %v3780
      %3858 = vmatprep.subr.bf16.mxu0 0
      %3859 = vmatpush1.bf16.msra.mxu0 %v3781
      %3860 = vmatprep.subr.bf16.mxu0 0
      %3861 = vmatpush1.bf16.msra.mxu0 %v3782
      %3862 = vmatprep.subr.bf16.mxu0 0
      %3863 = vmatpush1.bf16.msra.mxu0 %v3783
      %3864 = vmatprep.mubr.bf16.mxu0 %v3633
      %3865 = vmatmul.mubr.bf16.gmra.mrb[0].mxu0 %v3632
      %v3866 = vpop.f32.mrb[0].mxu0
      %v3867 = vadd.f32 %v3624, %v3866
      %v3868 = vpop.f32.mrb[0].mxu0
      %v3869 = vpop.f32.mrb[0].mxu0
      %v3870 = vpop.f32.mrb[0].mxu0
      %3871 = vdwg.mxu0
      %3872 = vmatprep.subr.bf16.mxu0 0
      %3873 = vmatpush1.bf16.msra.mxu0 %v3784
      %3874 = vmatprep.subr.bf16.mxu0 0
      %3875 = vmatpush1.bf16.msra.mxu0 %v3785
      %3876 = vmatprep.subr.bf16.mxu0 0
      %3877 = vmatpush1.bf16.msra.mxu0 %v3786
      %3878 = vmatprep.subr.bf16.mxu0 0
      %3879 = vmatpush1.bf16.msra.mxu0 %v3787
      %3880 = vmatprep.subr.bf16.mxu0 0
      %3881 = vmatpush1.bf16.msra.mxu0 %v3788
      %3882 = vmatprep.subr.bf16.mxu0 0
      %3883 = vmatpush1.bf16.msra.mxu0 %v3789
      %3884 = vmatprep.subr.bf16.mxu0 0
      %3885 = vmatpush1.bf16.msra.mxu0 %v3790
      %3886 = vmatprep.subr.bf16.mxu0 0
      %3887 = vmatpush1.bf16.msra.mxu0 %v3791
      %3888 = vmatprep.subr.bf16.mxu0 0
      %3889 = vmatpush1.bf16.msra.mxu0 %v3792
      %3890 = vmatprep.subr.bf16.mxu0 0
      %3891 = vmatpush1.bf16.msra.mxu0 %v3793
      %3892 = vmatprep.subr.bf16.mxu0 0
      %3893 = vmatpush1.bf16.msra.mxu0 %v3794
      %3894 = vmatprep.subr.bf16.mxu0 0
      %3895 = vmatpush1.bf16.msra.mxu0 %v3795
      %3896 = vmatprep.subr.bf16.mxu0 0
      %3897 = vmatpush1.bf16.msra.mxu0 %v3796
      %3898 = vmatprep.subr.bf16.mxu0 0
      %3899 = vmatpush1.bf16.msra.mxu0 %v3797
      %3900 = vmatprep.subr.bf16.mxu0 0
      %3901 = vmatpush1.bf16.msra.mxu0 %v3798
      %3902 = vmatprep.subr.bf16.mxu0 0
      %3903 = vmatpush1.bf16.msra.mxu0 %v3799
      %3904 = vmatprep.mubr.bf16.mxu0 %v3635
      %3905 = vmatmul.mubr.bf16.gmra.mrb[0].mxu0 %v3634
      %v3906 = vpop.f32.mrb[0].mxu0
      %v3907 = vadd.f32 %v3867, %v3906
      %v3908 = vpop.f32.mrb[0].mxu0
      %v3909 = vpop.f32.mrb[0].mxu0
      %v3910 = vpop.f32.mrb[0].mxu0
      %3911 = vdwg.mxu0
      %v3912 = vmax.f32 %v3907, 0.0
      %v3913 = vpack.c.bf16 %v3912, %v3912
      %v3915 = vunpack.c.l.b16 %v3913
      %v3916 = vpack.c.b16 %v3915, %v3915
      %3917 = vrot.lane.b32.xlu0 %v3916, 64
      %v3918 = vpop.permute.xlu0 %3917
      %3920 = vst.msk [vmem:[#allocation4 + $0x8] sm:$0xf] %vm2363, %v3918
      %v3921 = vld [vmem:[#allocation2 + $0x40] sm:$0xff]
      %v3922 = vpack.c.bf16 %v3921, %v3921
      %3923 = vst [vmem:[#allocation3] sm:$0xf] %v3922
      %v3924 = vld [vmem:[#allocation2 + $0x50] sm:$0xff]
      %v3925 = vpack.c.bf16 %v3924, %v3924
      %3926 = vst [vmem:[#allocation3 + $0x4] sm:$0xf] %v3925
      %v3927 = vld [vmem:[#allocation2 + $0x60] sm:$0xff]
      %v3928 = vpack.c.bf16 %v3927, %v3927
      %3929 = vst [vmem:[#allocation3 + $0x8] sm:$0xf] %v3928
      %v3930 = vld [vmem:[#allocation2 + $0x70] sm:$0xff]
      %v3931 = vpack.c.bf16 %v3930, %v3930
      %3932 = vst [vmem:[#allocation3 + $0xc] sm:$0xf] %v3931
      %v3933 = vld [vmem:[#allocation3] sm:$0xff]
      %v3934 = vld [vmem:[#allocation3 + $0x8] sm:$0xff]
      %v3935 = vld [vmem:[%s3] sm:$0xf]
      %v3936 = vld [vmem:[%s3 + $0x4] sm:$0xf]
      %v3937 = vld [vmem:[%s3 + $0x8] sm:$0xf]
      %v3938 = vld [vmem:[%s3 + $0xc] sm:$0xf]
      %v3939 = vld [vmem:[%s3 + $0x10] sm:$0xf]
      %v3940 = vld [vmem:[%s3 + $0x14] sm:$0xf]
      %v3941 = vld [vmem:[%s3 + $0x18] sm:$0xf]
      %v3942 = vld [vmem:[%s3 + $0x1c] sm:$0xf]
      %v3943 = vld [vmem:[%s3 + $0x20] sm:$0xf]
      %v3944 = vld [vmem:[%s3 + $0x24] sm:$0xf]
      %v3945 = vld [vmem:[%s3 + $0x28] sm:$0xf]
      %v3946 = vld [vmem:[%s3 + $0x2c] sm:$0xf]
      %v3947 = vld [vmem:[%s3 + $0x30] sm:$0xf]
      %v3948 = vld [vmem:[%s3 + $0x34] sm:$0xf]
      %v3949 = vld [vmem:[%s3 + $0x38] sm:$0xf]
      %v3950 = vld [vmem:[%s3 + $0x3c] sm:$0xf]
      %v3951 = vld [vmem:[%s3 + $0x40] sm:$0xf]
      %v3952 = vld [vmem:[%s3 + $0x44] sm:$0xf]
      %v3953 = vld [vmem:[%s3 + $0x48] sm:$0xf]
      %v3954 = vld [vmem:[%s3 + $0x4c] sm:$0xf]
      %v3955 = vld [vmem:[%s3 + $0x50] sm:$0xf]
      %v3956 = vld [vmem:[%s3 + $0x54] sm:$0xf]
      %v3957 = vld [vmem:[%s3 + $0x58] sm:$0xf]
      %v3958 = vld [vmem:[%s3 + $0x5c] sm:$0xf]
      %v3959 = vld [vmem:[%s3 + $0x60] sm:$0xf]
      %v3960 = vld [vmem:[%s3 + $0x64] sm:$0xf]
      %v3961 = vld [vmem:[%s3 + $0x68] sm:$0xf]
      %v3962 = vld [vmem:[%s3 + $0x6c] sm:$0xf]
      %v3963 = vld [vmem:[%s3 + $0x70] sm:$0xf]
      %v3964 = vld [vmem:[%s3 + $0x74] sm:$0xf]
      %v3965 = vld [vmem:[%s3 + $0x78] sm:$0xf]
      %v3966 = vld [vmem:[%s3 + $0x7c] sm:$0xf]
      %v3967 = vld [vmem:[%s3 + $0x80] sm:$0xf]
      %v3968 = vld [vmem:[%s3 + $0x84] sm:$0xf]
      %v3969 = vld [vmem:[%s3 + $0x88] sm:$0xf]
      %v3970 = vld [vmem:[%s3 + $0x8c] sm:$0xf]
      %v3971 = vld [vmem:[%s3 + $0x90] sm:$0xf]
      %v3972 = vld [vmem:[%s3 + $0x94] sm:$0xf]
      %v3973 = vld [vmem:[%s3 + $0x98] sm:$0xf]
      %v3974 = vld [vmem:[%s3 + $0x9c] sm:$0xf]
      %v3975 = vld [vmem:[%s3 + $0xa0] sm:$0xf]
      %v3976 = vld [vmem:[%s3 + $0xa4] sm:$0xf]
      %v3977 = vld [vmem:[%s3 + $0xa8] sm:$0xf]
      %v3978 = vld [vmem:[%s3 + $0xac] sm:$0xf]
      %v3979 = vld [vmem:[%s3 + $0xb0] sm:$0xf]
      %v3980 = vld [vmem:[%s3 + $0xb4] sm:$0xf]
      %v3981 = vld [vmem:[%s3 + $0xb8] sm:$0xf]
      %v3982 = vld [vmem:[%s3 + $0xbc] sm:$0xf]
      %v3983 = vld [vmem:[%s3 + $0xc0] sm:$0xf]
      %v3984 = vld [vmem:[%s3 + $0xc4] sm:$0xf]
      %v3985 = vld [vmem:[%s3 + $0xc8] sm:$0xf]
      %v3986 = vld [vmem:[%s3 + $0xcc] sm:$0xf]
      %v3987 = vld [vmem:[%s3 + $0xd0] sm:$0xf]
      %v3988 = vld [vmem:[%s3 + $0xd4] sm:$0xf]
      %v3989 = vld [vmem:[%s3 + $0xd8] sm:$0xf]
      %v3990 = vld [vmem:[%s3 + $0xdc] sm:$0xf]
      %v3991 = vld [vmem:[%s3 + $0xe0] sm:$0xf]
      %v3992 = vld [vmem:[%s3 + $0xe4] sm:$0xf]
      %v3993 = vld [vmem:[%s3 + $0xe8] sm:$0xf]
      %v3994 = vld [vmem:[%s3 + $0xec] sm:$0xf]
      %v3995 = vld [vmem:[%s3 + $0xf0] sm:$0xf]
      %v3996 = vld [vmem:[%s3 + $0xf4] sm:$0xf]
      %v3997 = vld [vmem:[%s3 + $0xf8] sm:$0xf]
      %v3998 = vld [vmem:[%s3 + $0xfc] sm:$0xf]
      %v3999 = vld [vmem:[%s4] sm:$0x1]
      %v4001 = vlaneseq
      %v4002 = vshrl.u32 %v4001, 7
      %v4003 = vsub.s32 0, %v4002
      %v4004 = vrot.slane %v3999, %v4003
      %v4008 = vunpack.c.l.b16 %v3933
      %v4009 = vunpack.c.h.b16 %v3933
      %v4010 = vunpack.c.l.b16 %v3934
      %v4011 = vunpack.c.h.b16 %v3934
      %v4012 = vpack.c.b16 %v4008, %v4008
      %v4013 = vpack.c.b16 %v4009, %v4009
      %v4014 = vpack.c.b16 %v4010, %v4010
      %v4015 = vpack.c.b16 %v4011, %v4011
      %v4084 = vunpack.c.l.b16 %v3935
      %v4085 = vunpack.c.l.b16 %v3936
      %v4086 = vunpack.c.l.b16 %v3937
      %v4087 = vunpack.c.l.b16 %v3938
      %v4088 = vunpack.c.l.b16 %v3939
      %v4089 = vunpack.c.l.b16 %v3940
      %v4090 = vunpack.c.l.b16 %v3941
      %v4091 = vunpack.c.l.b16 %v3942
      %v4092 = vunpack.c.l.b16 %v3943
      %v4093 = vunpack.c.l.b16 %v3944
      %v4094 = vunpack.c.l.b16 %v3945
      %v4095 = vunpack.c.l.b16 %v3946
      %v4096 = vunpack.c.l.b16 %v3947
      %v4097 = vunpack.c.l.b16 %v3948
      %v4098 = vunpack.c.l.b16 %v3949
      %v4099 = vunpack.c.l.b16 %v3950
      %v4100 = vunpack.c.l.b16 %v3951
      %v4101 = vunpack.c.l.b16 %v3952
      %v4102 = vunpack.c.l.b16 %v3953
      %v4103 = vunpack.c.l.b16 %v3954
      %v4104 = vunpack.c.l.b16 %v3955
      %v4105 = vunpack.c.l.b16 %v3956
      %v4106 = vunpack.c.l.b16 %v3957
      %v4107 = vunpack.c.l.b16 %v3958
      %v4108 = vunpack.c.l.b16 %v3959
      %v4109 = vunpack.c.l.b16 %v3960
      %v4110 = vunpack.c.l.b16 %v3961
      %v4111 = vunpack.c.l.b16 %v3962
      %v4112 = vunpack.c.l.b16 %v3963
      %v4113 = vunpack.c.l.b16 %v3964
      %v4114 = vunpack.c.l.b16 %v3965
      %v4115 = vunpack.c.l.b16 %v3966
      %v4116 = vunpack.c.l.b16 %v3967
      %v4117 = vunpack.c.l.b16 %v3968
      %v4118 = vunpack.c.l.b16 %v3969
      %v4119 = vunpack.c.l.b16 %v3970
      %v4120 = vunpack.c.l.b16 %v3971
      %v4121 = vunpack.c.l.b16 %v3972
      %v4122 = vunpack.c.l.b16 %v3973
      %v4123 = vunpack.c.l.b16 %v3974
      %v4124 = vunpack.c.l.b16 %v3975
      %v4125 = vunpack.c.l.b16 %v3976
      %v4126 = vunpack.c.l.b16 %v3977
      %v4127 = vunpack.c.l.b16 %v3978
      %v4128 = vunpack.c.l.b16 %v3979
      %v4129 = vunpack.c.l.b16 %v3980
      %v4130 = vunpack.c.l.b16 %v3981
      %v4131 = vunpack.c.l.b16 %v3982
      %v4132 = vunpack.c.l.b16 %v3983
      %v4133 = vunpack.c.l.b16 %v3984
      %v4134 = vunpack.c.l.b16 %v3985
      %v4135 = vunpack.c.l.b16 %v3986
      %v4136 = vunpack.c.l.b16 %v3987
      %v4137 = vunpack.c.l.b16 %v3988
      %v4138 = vunpack.c.l.b16 %v3989
      %v4139 = vunpack.c.l.b16 %v3990
      %v4140 = vunpack.c.l.b16 %v3991
      %v4141 = vunpack.c.l.b16 %v3992
      %v4142 = vunpack.c.l.b16 %v3993
      %v4143 = vunpack.c.l.b16 %v3994
      %v4144 = vunpack.c.l.b16 %v3995
      %v4145 = vunpack.c.l.b16 %v3996
      %v4146 = vunpack.c.l.b16 %v3997
      %v4147 = vunpack.c.l.b16 %v3998
      %v4148 = vpack.c.b16 %v4085, %v4084
      %v4149 = vpack.c.b16 %v4087, %v4086
      %v4150 = vpack.c.b16 %v4089, %v4088
      %v4151 = vpack.c.b16 %v4091, %v4090
      %v4152 = vpack.c.b16 %v4093, %v4092
      %v4153 = vpack.c.b16 %v4095, %v4094
      %v4154 = vpack.c.b16 %v4097, %v4096
      %v4155 = vpack.c.b16 %v4099, %v4098
      %v4156 = vpack.c.b16 %v4101, %v4100
      %v4157 = vpack.c.b16 %v4103, %v4102
      %v4158 = vpack.c.b16 %v4105, %v4104
      %v4159 = vpack.c.b16 %v4107, %v4106
      %v4160 = vpack.c.b16 %v4109, %v4108
      %v4161 = vpack.c.b16 %v4111, %v4110
      %v4162 = vpack.c.b16 %v4113, %v4112
      %v4163 = vpack.c.b16 %v4115, %v4114
      %v4164 = vpack.c.b16 %v4117, %v4116
      %v4165 = vpack.c.b16 %v4119, %v4118
      %v4166 = vpack.c.b16 %v4121, %v4120
      %v4167 = vpack.c.b16 %v4123, %v4122
      %v4168 = vpack.c.b16 %v4125, %v4124
      %v4169 = vpack.c.b16 %v4127, %v4126
      %v4170 = vpack.c.b16 %v4129, %v4128
      %v4171 = vpack.c.b16 %v4131, %v4130
      %v4172 = vpack.c.b16 %v4133, %v4132
      %v4173 = vpack.c.b16 %v4135, %v4134
      %v4174 = vpack.c.b16 %v4137, %v4136
      %v4175 = vpack.c.b16 %v4139, %v4138
      %v4176 = vpack.c.b16 %v4141, %v4140
      %v4177 = vpack.c.b16 %v4143, %v4142
      %v4178 = vpack.c.b16 %v4145, %v4144
      %v4179 = vpack.c.b16 %v4147, %v4146
      %4212 = vmatprep.subr.bf16.mxu0 0
      %4213 = vmatpush1.bf16.msra.mxu0 %v4148
      %4214 = vmatprep.subr.bf16.mxu0 0
      %4215 = vmatpush1.bf16.msra.mxu0 %v4149
      %4216 = vmatprep.subr.bf16.mxu0 0
      %4217 = vmatpush1.bf16.msra.mxu0 %v4150
      %4218 = vmatprep.subr.bf16.mxu0 0
      %4219 = vmatpush1.bf16.msra.mxu0 %v4151
      %4220 = vmatprep.subr.bf16.mxu0 0
      %4221 = vmatpush1.bf16.msra.mxu0 %v4152
      %4222 = vmatprep.subr.bf16.mxu0 0
      %4223 = vmatpush1.bf16.msra.mxu0 %v4153
      %4224 = vmatprep.subr.bf16.mxu0 0
      %4225 = vmatpush1.bf16.msra.mxu0 %v4154
      %4226 = vmatprep.subr.bf16.mxu0 0
      %4227 = vmatpush1.bf16.msra.mxu0 %v4155
      %4228 = vmatprep.subr.bf16.mxu0 0
      %4229 = vmatpush1.bf16.msra.mxu0 %v4156
      %4230 = vmatprep.subr.bf16.mxu0 0
      %4231 = vmatpush1.bf16.msra.mxu0 %v4157
      %4232 = vmatprep.subr.bf16.mxu0 0
      %4233 = vmatpush1.bf16.msra.mxu0 %v4158
      %4234 = vmatprep.subr.bf16.mxu0 0
      %4235 = vmatpush1.bf16.msra.mxu0 %v4159
      %4236 = vmatprep.subr.bf16.mxu0 0
      %4237 = vmatpush1.bf16.msra.mxu0 %v4160
      %4238 = vmatprep.subr.bf16.mxu0 0
      %4239 = vmatpush1.bf16.msra.mxu0 %v4161
      %4240 = vmatprep.subr.bf16.mxu0 0
      %4241 = vmatpush1.bf16.msra.mxu0 %v4162
      %4242 = vmatprep.subr.bf16.mxu0 0
      %4243 = vmatpush1.bf16.msra.mxu0 %v4163
      %4244 = vmatprep.mubr.bf16.mxu0 %v4013
      %4245 = vmatmul.mubr.bf16.gmra.mrb[0].mxu0 %v4012
      %v4246 = vpop.f32.mrb[0].mxu0
      %v4247 = vadd.f32 %v4004, %v4246
      %v4248 = vpop.f32.mrb[0].mxu0
      %v4249 = vpop.f32.mrb[0].mxu0
      %v4250 = vpop.f32.mrb[0].mxu0
      %4251 = vdwg.mxu0
      %4252 = vmatprep.subr.bf16.mxu0 0
      %4253 = vmatpush1.bf16.msra.mxu0 %v4164
      %4254 = vmatprep.subr.bf16.mxu0 0
      %4255 = vmatpush1.bf16.msra.mxu0 %v4165
      %4256 = vmatprep.subr.bf16.mxu0 0
      %4257 = vmatpush1.bf16.msra.mxu0 %v4166
      %4258 = vmatprep.subr.bf16.mxu0 0
      %4259 = vmatpush1.bf16.msra.mxu0 %v4167
      %4260 = vmatprep.subr.bf16.mxu0 0
      %4261 = vmatpush1.bf16.msra.mxu0 %v4168
      %4262 = vmatprep.subr.bf16.mxu0 0
      %4263 = vmatpush1.bf16.msra.mxu0 %v4169
      %4264 = vmatprep.subr.bf16.mxu0 0
      %4265 = vmatpush1.bf16.msra.mxu0 %v4170
      %4266 = vmatprep.subr.bf16.mxu0 0
      %4267 = vmatpush1.bf16.msra.mxu0 %v4171
      %4268 = vmatprep.subr.bf16.mxu0 0
      %4269 = vmatpush1.bf16.msra.mxu0 %v4172
      %4270 = vmatprep.subr.bf16.mxu0 0
      %4271 = vmatpush1.bf16.msra.mxu0 %v4173
      %4272 = vmatprep.subr.bf16.mxu0 0
      %4273 = vmatpush1.bf16.msra.mxu0 %v4174
      %4274 = vmatprep.subr.bf16.mxu0 0
      %4275 = vmatpush1.bf16.msra.mxu0 %v4175
      %4276 = vmatprep.subr.bf16.mxu0 0
      %4277 = vmatpush1.bf16.msra.mxu0 %v4176
      %4278 = vmatprep.subr.bf16.mxu0 0
      %4279 = vmatpush1.bf16.msra.mxu0 %v4177
      %4280 = vmatprep.subr.bf16.mxu0 0
      %4281 = vmatpush1.bf16.msra.mxu0 %v4178
      %4282 = vmatprep.subr.bf16.mxu0 0
      %4283 = vmatpush1.bf16.msra.mxu0 %v4179
      %4284 = vmatprep.mubr.bf16.mxu0 %v4015
      %4285 = vmatmul.mubr.bf16.gmra.mrb[0].mxu0 %v4014
      %v4286 = vpop.f32.mrb[0].mxu0
      %v4287 = vadd.f32 %v4247, %v4286
      %v4288 = vpop.f32.mrb[0].mxu0
      %v4289 = vpop.f32.mrb[0].mxu0
      %v4290 = vpop.f32.mrb[0].mxu0
      %4291 = vdwg.mxu0
      %v4292 = vmax.f32 %v4287, 0.0
      %v4293 = vpack.c.bf16 %v4292, %v4292
      %4294 = vst.msk [vmem:[#allocation4 + $0xc] sm:$0xf] %vm1933, %v4293
      %v4295 = vld [vmem:[#allocation2 + $0x40] sm:$0xff]
      %v4296 = vld [vmem:[#allocation2 + $0x48] sm:$0xff]
      %v4297 = vpack.c.bf16 %v4295, %v4295
      %v4298 = vpack.c.bf16 %v4296, %v4296
      %v4301 = vunpack.c.l.b16 %v4297
      %v4302 = vunpack.c.l.b16 %v4298
      %v4303 = vpack.c.b16 %v4302, %v4301
      %4304 = vrot.lane.b32.xlu0 %v4303, 64
      %v4305 = vpop.permute.xlu0 %4304
      %v4306 = vrot.slane %v4305, 4
      %v4307 = vsel %vm1947, %v4305, %v4306
      %4309 = vst [vmem:[#allocation3] sm:$0xf] %v4307
      %v4310 = vld [vmem:[#allocation2 + $0x50] sm:$0xff]
      %v4311 = vld [vmem:[#allocation2 + $0x58] sm:$0xff]
      %v4312 = vpack.c.bf16 %v4310, %v4310
      %v4313 = vpack.c.bf16 %v4311, %v4311
      %v4316 = vunpack.c.l.b16 %v4312
      %v4317 = vunpack.c.l.b16 %v4313
      %v4318 = vpack.c.b16 %v4317, %v4316
      %4319 = vrot.lane.b32.xlu0 %v4318, 64
      %v4320 = vpop.permute.xlu0 %4319
      %v4321 = vrot.slane %v4320, 4
      %v4322 = vsel %vm1947, %v4320, %v4321
      %4324 = vst [vmem:[#allocation3 + $0x4] sm:$0xf] %v4322
      %v4325 = vld [vmem:[#allocation2 + $0x60] sm:$0xff]
      %v4326 = vld [vmem:[#allocation2 + $0x68] sm:$0xff]
      %v4327 = vpack.c.bf16 %v4325, %v4325
      %v4328 = vpack.c.bf16 %v4326, %v4326
      %v4331 = vunpack.c.l.b16 %v4327
      %v4332 = vunpack.c.l.b16 %v4328
      %v4333 = vpack.c.b16 %v4332, %v4331
      %4334 = vrot.lane.b32.xlu0 %v4333, 64
      %v4335 = vpop.permute.xlu0 %4334
      %v4336 = vrot.slane %v4335, 4
      %v4337 = vsel %vm1947, %v4335, %v4336
      %4339 = vst [vmem:[#allocation3 + $0x8] sm:$0xf] %v4337
      %v4340 = vld [vmem:[#allocation2 + $0x70] sm:$0xff]
      %v4341 = vld [vmem:[#allocation2 + $0x78] sm:$0xff]
      %v4342 = vpack.c.bf16 %v4340, %v4340
      %v4343 = vpack.c.bf16 %v4341, %v4341
      %v4346 = vunpack.c.l.b16 %v4342
      %v4347 = vunpack.c.l.b16 %v4343
      %v4348 = vpack.c.b16 %v4347, %v4346
      %4349 = vrot.lane.b32.xlu0 %v4348, 64
      %v4350 = vpop.permute.xlu0 %4349
      %v4351 = vrot.slane %v4350, 4
      %v4352 = vsel %vm1947, %v4350, %v4351
      %4354 = vst [vmem:[#allocation3 + $0xc] sm:$0xf] %v4352
      %v4355 = vld [vmem:[#allocation3] sm:$0xff]
      %v4356 = vld [vmem:[#allocation3 + $0x8] sm:$0xff]
      %v4357 = vld [vmem:[%s3] sm:$0xf]
      %v4358 = vld [vmem:[%s3 + $0x4] sm:$0xf]
      %v4359 = vld [vmem:[%s3 + $0x8] sm:$0xf]
      %v4360 = vld [vmem:[%s3 + $0xc] sm:$0xf]
      %v4361 = vld [vmem:[%s3 + $0x10] sm:$0xf]
      %v4362 = vld [vmem:[%s3 + $0x14] sm:$0xf]
      %v4363 = vld [vmem:[%s3 + $0x18] sm:$0xf]
      %v4364 = vld [vmem:[%s3 + $0x1c] sm:$0xf]
      %v4365 = vld [vmem:[%s3 + $0x20] sm:$0xf]
      %v4366 = vld [vmem:[%s3 + $0x24] sm:$0xf]
      %v4367 = vld [vmem:[%s3 + $0x28] sm:$0xf]
      %v4368 = vld [vmem:[%s3 + $0x2c] sm:$0xf]
      %v4369 = vld [vmem:[%s3 + $0x30] sm:$0xf]
      %v4370 = vld [vmem:[%s3 + $0x34] sm:$0xf]
      %v4371 = vld [vmem:[%s3 + $0x38] sm:$0xf]
      %v4372 = vld [vmem:[%s3 + $0x3c] sm:$0xf]
      %v4373 = vld [vmem:[%s3 + $0x40] sm:$0xf]
      %v4374 = vld [vmem:[%s3 + $0x44] sm:$0xf]
      %v4375 = vld [vmem:[%s3 + $0x48] sm:$0xf]
      %v4376 = vld [vmem:[%s3 + $0x4c] sm:$0xf]
      %v4377 = vld [vmem:[%s3 + $0x50] sm:$0xf]
      %v4378 = vld [vmem:[%s3 + $0x54] sm:$0xf]
      %v4379 = vld [vmem:[%s3 + $0x58] sm:$0xf]
      %v4380 = vld [vmem:[%s3 + $0x5c] sm:$0xf]
      %v4381 = vld [vmem:[%s3 + $0x60] sm:$0xf]
      %v4382 = vld [vmem:[%s3 + $0x64] sm:$0xf]
      %v4383 = vld [vmem:[%s3 + $0x68] sm:$0xf]
      %v4384 = vld [vmem:[%s3 + $0x6c] sm:$0xf]
      %v4385 = vld [vmem:[%s3 + $0x70] sm:$0xf]
      %v4386 = vld [vmem:[%s3 + $0x74] sm:$0xf]
      %v4387 = vld [vmem:[%s3 + $0x78] sm:$0xf]
      %v4388 = vld [vmem:[%s3 + $0x7c] sm:$0xf]
      %v4389 = vld [vmem:[%s3 + $0x80] sm:$0xf]
      %v4390 = vld [vmem:[%s3 + $0x84] sm:$0xf]
      %v4391 = vld [vmem:[%s3 + $0x88] sm:$0xf]
      %v4392 = vld [vmem:[%s3 + $0x8c] sm:$0xf]
      %v4393 = vld [vmem:[%s3 + $0x90] sm:$0xf]
      %v4394 = vld [vmem:[%s3 + $0x94] sm:$0xf]
      %v4395 = vld [vmem:[%s3 + $0x98] sm:$0xf]
      %v4396 = vld [vmem:[%s3 + $0x9c] sm:$0xf]
      %v4397 = vld [vmem:[%s3 + $0xa0] sm:$0xf]
      %v4398 = vld [vmem:[%s3 + $0xa4] sm:$0xf]
      %v4399 = vld [vmem:[%s3 + $0xa8] sm:$0xf]
      %v4400 = vld [vmem:[%s3 + $0xac] sm:$0xf]
      %v4401 = vld [vmem:[%s3 + $0xb0] sm:$0xf]
      %v4402 = vld [vmem:[%s3 + $0xb4] sm:$0xf]
      %v4403 = vld [vmem:[%s3 + $0xb8] sm:$0xf]
      %v4404 = vld [vmem:[%s3 + $0xbc] sm:$0xf]
      %v4405 = vld [vmem:[%s3 + $0xc0] sm:$0xf]
      %v4406 = vld [vmem:[%s3 + $0xc4] sm:$0xf]
      %v4407 = vld [vmem:[%s3 + $0xc8] sm:$0xf]
      %v4408 = vld [vmem:[%s3 + $0xcc] sm:$0xf]
      %v4409 = vld [vmem:[%s3 + $0xd0] sm:$0xf]
      %v4410 = vld [vmem:[%s3 + $0xd4] sm:$0xf]
      %v4411 = vld [vmem:[%s3 + $0xd8] sm:$0xf]
      %v4412 = vld [vmem:[%s3 + $0xdc] sm:$0xf]
      %v4413 = vld [vmem:[%s3 + $0xe0] sm:$0xf]
      %v4414 = vld [vmem:[%s3 + $0xe4] sm:$0xf]
      %v4415 = vld [vmem:[%s3 + $0xe8] sm:$0xf]
      %v4416 = vld [vmem:[%s3 + $0xec] sm:$0xf]
      %v4417 = vld [vmem:[%s3 + $0xf0] sm:$0xf]
      %v4418 = vld [vmem:[%s3 + $0xf4] sm:$0xf]
      %v4419 = vld [vmem:[%s3 + $0xf8] sm:$0xf]
      %v4420 = vld [vmem:[%s3 + $0xfc] sm:$0xf]
      %v4421 = vld [vmem:[%s4] sm:$0x1]
      %v4423 = vlaneseq
      %v4424 = vshrl.u32 %v4423, 7
      %v4425 = vsub.s32 0, %v4424
      %v4426 = vrot.slane %v4421, %v4425
      %v4430 = vunpack.c.l.b16 %v4355
      %v4431 = vunpack.c.h.b16 %v4355
      %v4432 = vunpack.c.l.b16 %v4356
      %v4433 = vunpack.c.h.b16 %v4356
      %v4434 = vpack.c.b16 %v4430, %v4430
      %v4435 = vpack.c.b16 %v4431, %v4431
      %v4436 = vpack.c.b16 %v4432, %v4432
      %v4437 = vpack.c.b16 %v4433, %v4433
      %v4506 = vunpack.c.l.b16 %v4357
      %v4507 = vunpack.c.l.b16 %v4358
      %v4508 = vunpack.c.l.b16 %v4359
      %v4509 = vunpack.c.l.b16 %v4360
      %v4510 = vunpack.c.l.b16 %v4361
      %v4511 = vunpack.c.l.b16 %v4362
      %v4512 = vunpack.c.l.b16 %v4363
      %v4513 = vunpack.c.l.b16 %v4364
      %v4514 = vunpack.c.l.b16 %v4365
      %v4515 = vunpack.c.l.b16 %v4366
      %v4516 = vunpack.c.l.b16 %v4367
      %v4517 = vunpack.c.l.b16 %v4368
      %v4518 = vunpack.c.l.b16 %v4369
      %v4519 = vunpack.c.l.b16 %v4370
      %v4520 = vunpack.c.l.b16 %v4371
      %v4521 = vunpack.c.l.b16 %v4372
      %v4522 = vunpack.c.l.b16 %v4373
      %v4523 = vunpack.c.l.b16 %v4374
      %v4524 = vunpack.c.l.b16 %v4375
      %v4525 = vunpack.c.l.b16 %v4376
      %v4526 = vunpack.c.l.b16 %v4377
      %v4527 = vunpack.c.l.b16 %v4378
      %v4528 = vunpack.c.l.b16 %v4379
      %v4529 = vunpack.c.l.b16 %v4380
      %v4530 = vunpack.c.l.b16 %v4381
      %v4531 = vunpack.c.l.b16 %v4382
      %v4532 = vunpack.c.l.b16 %v4383
      %v4533 = vunpack.c.l.b16 %v4384
      %v4534 = vunpack.c.l.b16 %v4385
      %v4535 = vunpack.c.l.b16 %v4386
      %v4536 = vunpack.c.l.b16 %v4387
      %v4537 = vunpack.c.l.b16 %v4388
      %v4538 = vunpack.c.l.b16 %v4389
      %v4539 = vunpack.c.l.b16 %v4390
      %v4540 = vunpack.c.l.b16 %v4391
      %v4541 = vunpack.c.l.b16 %v4392
      %v4542 = vunpack.c.l.b16 %v4393
      %v4543 = vunpack.c.l.b16 %v4394
      %v4544 = vunpack.c.l.b16 %v4395
      %v4545 = vunpack.c.l.b16 %v4396
      %v4546 = vunpack.c.l.b16 %v4397
      %v4547 = vunpack.c.l.b16 %v4398
      %v4548 = vunpack.c.l.b16 %v4399
      %v4549 = vunpack.c.l.b16 %v4400
      %v4550 = vunpack.c.l.b16 %v4401
      %v4551 = vunpack.c.l.b16 %v4402
      %v4552 = vunpack.c.l.b16 %v4403
      %v4553 = vunpack.c.l.b16 %v4404
      %v4554 = vunpack.c.l.b16 %v4405
      %v4555 = vunpack.c.l.b16 %v4406
      %v4556 = vunpack.c.l.b16 %v4407
      %v4557 = vunpack.c.l.b16 %v4408
      %v4558 = vunpack.c.l.b16 %v4409
      %v4559 = vunpack.c.l.b16 %v4410
      %v4560 = vunpack.c.l.b16 %v4411
      %v4561 = vunpack.c.l.b16 %v4412
      %v4562 = vunpack.c.l.b16 %v4413
      %v4563 = vunpack.c.l.b16 %v4414
      %v4564 = vunpack.c.l.b16 %v4415
      %v4565 = vunpack.c.l.b16 %v4416
      %v4566 = vunpack.c.l.b16 %v4417
      %v4567 = vunpack.c.l.b16 %v4418
      %v4568 = vunpack.c.l.b16 %v4419
      %v4569 = vunpack.c.l.b16 %v4420
      %v4570 = vpack.c.b16 %v4507, %v4506
      %v4571 = vpack.c.b16 %v4509, %v4508
      %v4572 = vpack.c.b16 %v4511, %v4510
      %v4573 = vpack.c.b16 %v4513, %v4512
      %v4574 = vpack.c.b16 %v4515, %v4514
      %v4575 = vpack.c.b16 %v4517, %v4516
      %v4576 = vpack.c.b16 %v4519, %v4518
      %v4577 = vpack.c.b16 %v4521, %v4520
      %v4578 = vpack.c.b16 %v4523, %v4522
      %v4579 = vpack.c.b16 %v4525, %v4524
      %v4580 = vpack.c.b16 %v4527, %v4526
      %v4581 = vpack.c.b16 %v4529, %v4528
      %v4582 = vpack.c.b16 %v4531, %v4530
      %v4583 = vpack.c.b16 %v4533, %v4532
      %v4584 = vpack.c.b16 %v4535, %v4534
      %v4585 = vpack.c.b16 %v4537, %v4536
      %v4586 = vpack.c.b16 %v4539, %v4538
      %v4587 = vpack.c.b16 %v4541, %v4540
      %v4588 = vpack.c.b16 %v4543, %v4542
      %v4589 = vpack.c.b16 %v4545, %v4544
      %v4590 = vpack.c.b16 %v4547, %v4546
      %v4591 = vpack.c.b16 %v4549, %v4548
      %v4592 = vpack.c.b16 %v4551, %v4550
      %v4593 = vpack.c.b16 %v4553, %v4552
      %v4594 = vpack.c.b16 %v4555, %v4554
      %v4595 = vpack.c.b16 %v4557, %v4556
      %v4596 = vpack.c.b16 %v4559, %v4558
      %v4597 = vpack.c.b16 %v4561, %v4560
      %v4598 = vpack.c.b16 %v4563, %v4562
      %v4599 = vpack.c.b16 %v4565, %v4564
      %v4600 = vpack.c.b16 %v4567, %v4566
      %v4601 = vpack.c.b16 %v4569, %v4568
      %4634 = vmatprep.subr.bf16.mxu0 0
      %4635 = vmatpush1.bf16.msra.mxu0 %v4570
      %4636 = vmatprep.subr.bf16.mxu0 0
      %4637 = vmatpush1.bf16.msra.mxu0 %v4571
      %4638 = vmatprep.subr.bf16.mxu0 0
      %4639 = vmatpush1.bf16.msra.mxu0 %v4572
      %4640 = vmatprep.subr.bf16.mxu0 0
      %4641 = vmatpush1.bf16.msra.mxu0 %v4573
      %4642 = vmatprep.subr.bf16.mxu0 0
      %4643 = vmatpush1.bf16.msra.mxu0 %v4574
      %4644 = vmatprep.subr.bf16.mxu0 0
      %4645 = vmatpush1.bf16.msra.mxu0 %v4575
      %4646 = vmatprep.subr.bf16.mxu0 0
      %4647 = vmatpush1.bf16.msra.mxu0 %v4576
      %4648 = vmatprep.subr.bf16.mxu0 0
      %4649 = vmatpush1.bf16.msra.mxu0 %v4577
      %4650 = vmatprep.subr.bf16.mxu0 0
      %4651 = vmatpush1.bf16.msra.mxu0 %v4578
      %4652 = vmatprep.subr.bf16.mxu0 0
      %4653 = vmatpush1.bf16.msra.mxu0 %v4579
      %4654 = vmatprep.subr.bf16.mxu0 0
      %4655 = vmatpush1.bf16.msra.mxu0 %v4580
      %4656 = vmatprep.subr.bf16.mxu0 0
      %4657 = vmatpush1.bf16.msra.mxu0 %v4581
      %4658 = vmatprep.subr.bf16.mxu0 0
      %4659 = vmatpush1.bf16.msra.mxu0 %v4582
      %4660 = vmatprep.subr.bf16.mxu0 0
      %4661 = vmatpush1.bf16.msra.mxu0 %v4583
      %4662 = vmatprep.subr.bf16.mxu0 0
      %4663 = vmatpush1.bf16.msra.mxu0 %v4584
      %4664 = vmatprep.subr.bf16.mxu0 0
      %4665 = vmatpush1.bf16.msra.mxu0 %v4585
      %4666 = vmatprep.mubr.bf16.mxu0 %v4435
      %4667 = vmatmul.mubr.bf16.gmra.mrb[0].mxu0 %v4434
      %v4668 = vpop.f32.mrb[0].mxu0
      %v4669 = vadd.f32 %v4426, %v4668
      %v4670 = vpop.f32.mrb[0].mxu0
      %v4671 = vpop.f32.mrb[0].mxu0
      %v4672 = vpop.f32.mrb[0].mxu0
      %4673 = vdwg.mxu0
      %4674 = vmatprep.subr.bf16.mxu0 0
      %4675 = vmatpush1.bf16.msra.mxu0 %v4586
      %4676 = vmatprep.subr.bf16.mxu0 0
      %4677 = vmatpush1.bf16.msra.mxu0 %v4587
      %4678 = vmatprep.subr.bf16.mxu0 0
      %4679 = vmatpush1.bf16.msra.mxu0 %v4588
      %4680 = vmatprep.subr.bf16.mxu0 0
      %4681 = vmatpush1.bf16.msra.mxu0 %v4589
      %4682 = vmatprep.subr.bf16.mxu0 0
      %4683 = vmatpush1.bf16.msra.mxu0 %v4590
      %4684 = vmatprep.subr.bf16.mxu0 0
      %4685 = vmatpush1.bf16.msra.mxu0 %v4591
      %4686 = vmatprep.subr.bf16.mxu0 0
      %4687 = vmatpush1.bf16.msra.mxu0 %v4592
      %4688 = vmatprep.subr.bf16.mxu0 0
      %4689 = vmatpush1.bf16.msra.mxu0 %v4593
      %4690 = vmatprep.subr.bf16.mxu0 0
      %4691 = vmatpush1.bf16.msra.mxu0 %v4594
      %4692 = vmatprep.subr.bf16.mxu0 0
      %4693 = vmatpush1.bf16.msra.mxu0 %v4595
      %4694 = vmatprep.subr.bf16.mxu0 0
      %4695 = vmatpush1.bf16.msra.mxu0 %v4596
      %4696 = vmatprep.subr.bf16.mxu0 0
      %4697 = vmatpush1.bf16.msra.mxu0 %v4597
      %4698 = vmatprep.subr.bf16.mxu0 0
      %4699 = vmatpush1.bf16.msra.mxu0 %v4598
      %4700 = vmatprep.subr.bf16.mxu0 0
      %4701 = vmatpush1.bf16.msra.mxu0 %v4599
      %4702 = vmatprep.subr.bf16.mxu0 0
      %4703 = vmatpush1.bf16.msra.mxu0 %v4600
      %4704 = vmatprep.subr.bf16.mxu0 0
      %4705 = vmatpush1.bf16.msra.mxu0 %v4601
      %4706 = vmatprep.mubr.bf16.mxu0 %v4437
      %4707 = vmatmul.mubr.bf16.gmra.mrb[0].mxu0 %v4436
      %v4708 = vpop.f32.mrb[0].mxu0
      %v4709 = vadd.f32 %v4669, %v4708
      %v4710 = vpop.f32.mrb[0].mxu0
      %v4711 = vpop.f32.mrb[0].mxu0
      %v4712 = vpop.f32.mrb[0].mxu0
      %4713 = vdwg.mxu0
      %v4714 = vmax.f32 %v4709, 0.0
      %v4715 = vpack.c.bf16 %v4714, %v4714
      %v4717 = vunpack.c.l.b16 %v4715
      %v4718 = vpack.c.b16 %v4717, %v4717
      %4719 = vrot.lane.b32.xlu0 %v4718, 64
      %v4720 = vpop.permute.xlu0 %4719
      %4722 = vst.msk [vmem:[#allocation4 + $0xc] sm:$0xf] %vm2363, %v4720
      %v4723 = vld [vmem:[#allocation2 + $0x48] sm:$0xff]
      %v4724 = vpack.c.bf16 %v4723, %v4723
      %4725 = vst [vmem:[#allocation3] sm:$0xf] %v4724
      %v4726 = vld [vmem:[#allocation2 + $0x58] sm:$0xff]
      %v4727 = vpack.c.bf16 %v4726, %v4726
      %4728 = vst [vmem:[#allocation3 + $0x4] sm:$0xf] %v4727
      %v4729 = vld [vmem:[#allocation2 + $0x68] sm:$0xff]
      %v4730 = vpack.c.bf16 %v4729, %v4729
      %4731 = vst [vmem:[#allocation3 + $0x8] sm:$0xf] %v4730
      %v4732 = vld [vmem:[#allocation2 + $0x78] sm:$0xff]
      %v4733 = vpack.c.bf16 %v4732, %v4732
      %4734 = vst [vmem:[#allocation3 + $0xc] sm:$0xf] %v4733
      %v4735 = vld [vmem:[#allocation3] sm:$0xff]
      %v4736 = vld [vmem:[#allocation3 + $0x8] sm:$0xff]
      %v4737 = vld [vmem:[%s3] sm:$0xf]
      %v4738 = vld [vmem:[%s3 + $0x4] sm:$0xf]
      %v4739 = vld [vmem:[%s3 + $0x8] sm:$0xf]
      %v4740 = vld [vmem:[%s3 + $0xc] sm:$0xf]
      %v4741 = vld [vmem:[%s3 + $0x10] sm:$0xf]
      %v4742 = vld [vmem:[%s3 + $0x14] sm:$0xf]
      %v4743 = vld [vmem:[%s3 + $0x18] sm:$0xf]
      %v4744 = vld [vmem:[%s3 + $0x1c] sm:$0xf]
      %v4745 = vld [vmem:[%s3 + $0x20] sm:$0xf]
      %v4746 = vld [vmem:[%s3 + $0x24] sm:$0xf]
      %v4747 = vld [vmem:[%s3 + $0x28] sm:$0xf]
      %v4748 = vld [vmem:[%s3 + $0x2c] sm:$0xf]
      %v4749 = vld [vmem:[%s3 + $0x30] sm:$0xf]
      %v4750 = vld [vmem:[%s3 + $0x34] sm:$0xf]
      %v4751 = vld [vmem:[%s3 + $0x38] sm:$0xf]
      %v4752 = vld [vmem:[%s3 + $0x3c] sm:$0xf]
      %v4753 = vld [vmem:[%s3 + $0x40] sm:$0xf]
      %v4754 = vld [vmem:[%s3 + $0x44] sm:$0xf]
      %v4755 = vld [vmem:[%s3 + $0x48] sm:$0xf]
      %v4756 = vld [vmem:[%s3 + $0x4c] sm:$0xf]
      %v4757 = vld [vmem:[%s3 + $0x50] sm:$0xf]
      %v4758 = vld [vmem:[%s3 + $0x54] sm:$0xf]
      %v4759 = vld [vmem:[%s3 + $0x58] sm:$0xf]
      %v4760 = vld [vmem:[%s3 + $0x5c] sm:$0xf]
      %v4761 = vld [vmem:[%s3 + $0x60] sm:$0xf]
      %v4762 = vld [vmem:[%s3 + $0x64] sm:$0xf]
      %v4763 = vld [vmem:[%s3 + $0x68] sm:$0xf]
      %v4764 = vld [vmem:[%s3 + $0x6c] sm:$0xf]
      %v4765 = vld [vmem:[%s3 + $0x70] sm:$0xf]
      %v4766 = vld [vmem:[%s3 + $0x74] sm:$0xf]
      %v4767 = vld [vmem:[%s3 + $0x78] sm:$0xf]
      %v4768 = vld [vmem:[%s3 + $0x7c] sm:$0xf]
      %v4769 = vld [vmem:[%s3 + $0x80] sm:$0xf]
      %v4770 = vld [vmem:[%s3 + $0x84] sm:$0xf]
      %v4771 = vld [vmem:[%s3 + $0x88] sm:$0xf]
      %v4772 = vld [vmem:[%s3 + $0x8c] sm:$0xf]
      %v4773 = vld [vmem:[%s3 + $0x90] sm:$0xf]
      %v4774 = vld [vmem:[%s3 + $0x94] sm:$0xf]
      %v4775 = vld [vmem:[%s3 + $0x98] sm:$0xf]
      %v4776 = vld [vmem:[%s3 + $0x9c] sm:$0xf]
      %v4777 = vld [vmem:[%s3 + $0xa0] sm:$0xf]
      %v4778 = vld [vmem:[%s3 + $0xa4] sm:$0xf]
      %v4779 = vld [vmem:[%s3 + $0xa8] sm:$0xf]
      %v4780 = vld [vmem:[%s3 + $0xac] sm:$0xf]
      %v4781 = vld [vmem:[%s3 + $0xb0] sm:$0xf]
      %v4782 = vld [vmem:[%s3 + $0xb4] sm:$0xf]
      %v4783 = vld [vmem:[%s3 + $0xb8] sm:$0xf]
      %v4784 = vld [vmem:[%s3 + $0xbc] sm:$0xf]
      %v4785 = vld [vmem:[%s3 + $0xc0] sm:$0xf]
      %v4786 = vld [vmem:[%s3 + $0xc4] sm:$0xf]
      %v4787 = vld [vmem:[%s3 + $0xc8] sm:$0xf]
      %v4788 = vld [vmem:[%s3 + $0xcc] sm:$0xf]
      %v4789 = vld [vmem:[%s3 + $0xd0] sm:$0xf]
      %v4790 = vld [vmem:[%s3 + $0xd4] sm:$0xf]
      %v4791 = vld [vmem:[%s3 + $0xd8] sm:$0xf]
      %v4792 = vld [vmem:[%s3 + $0xdc] sm:$0xf]
      %v4793 = vld [vmem:[%s3 + $0xe0] sm:$0xf]
      %v4794 = vld [vmem:[%s3 + $0xe4] sm:$0xf]
      %v4795 = vld [vmem:[%s3 + $0xe8] sm:$0xf]
      %v4796 = vld [vmem:[%s3 + $0xec] sm:$0xf]
      %v4797 = vld [vmem:[%s3 + $0xf0] sm:$0xf]
      %v4798 = vld [vmem:[%s3 + $0xf4] sm:$0xf]
      %v4799 = vld [vmem:[%s3 + $0xf8] sm:$0xf]
      %v4800 = vld [vmem:[%s3 + $0xfc] sm:$0xf]
      %v4801 = vld [vmem:[%s4] sm:$0x1]
      %v4803 = vlaneseq
      %v4804 = vshrl.u32 %v4803, 7
      %v4805 = vsub.s32 0, %v4804
      %v4806 = vrot.slane %v4801, %v4805
      %v4810 = vunpack.c.l.b16 %v4735
      %v4811 = vunpack.c.h.b16 %v4735
      %v4812 = vunpack.c.l.b16 %v4736
      %v4813 = vunpack.c.h.b16 %v4736
      %v4814 = vpack.c.b16 %v4810, %v4810
      %v4815 = vpack.c.b16 %v4811, %v4811
      %v4816 = vpack.c.b16 %v4812, %v4812
      %v4817 = vpack.c.b16 %v4813, %v4813
      %v4886 = vunpack.c.l.b16 %v4737
      %v4887 = vunpack.c.l.b16 %v4738
      %v4888 = vunpack.c.l.b16 %v4739
      %v4889 = vunpack.c.l.b16 %v4740
      %v4890 = vunpack.c.l.b16 %v4741
      %v4891 = vunpack.c.l.b16 %v4742
      %v4892 = vunpack.c.l.b16 %v4743
      %v4893 = vunpack.c.l.b16 %v4744
      %v4894 = vunpack.c.l.b16 %v4745
      %v4895 = vunpack.c.l.b16 %v4746
      %v4896 = vunpack.c.l.b16 %v4747
      %v4897 = vunpack.c.l.b16 %v4748
      %v4898 = vunpack.c.l.b16 %v4749
      %v4899 = vunpack.c.l.b16 %v4750
      %v4900 = vunpack.c.l.b16 %v4751
      %v4901 = vunpack.c.l.b16 %v4752
      %v4902 = vunpack.c.l.b16 %v4753
      %v4903 = vunpack.c.l.b16 %v4754
      %v4904 = vunpack.c.l.b16 %v4755
      %v4905 = vunpack.c.l.b16 %v4756
      %v4906 = vunpack.c.l.b16 %v4757
      %v4907 = vunpack.c.l.b16 %v4758
      %v4908 = vunpack.c.l.b16 %v4759
      %v4909 = vunpack.c.l.b16 %v4760
      %v4910 = vunpack.c.l.b16 %v4761
      %v4911 = vunpack.c.l.b16 %v4762
      %v4912 = vunpack.c.l.b16 %v4763
      %v4913 = vunpack.c.l.b16 %v4764
      %v4914 = vunpack.c.l.b16 %v4765
      %v4915 = vunpack.c.l.b16 %v4766
      %v4916 = vunpack.c.l.b16 %v4767
      %v4917 = vunpack.c.l.b16 %v4768
      %v4918 = vunpack.c.l.b16 %v4769
      %v4919 = vunpack.c.l.b16 %v4770
      %v4920 = vunpack.c.l.b16 %v4771
      %v4921 = vunpack.c.l.b16 %v4772
      %v4922 = vunpack.c.l.b16 %v4773
      %v4923 = vunpack.c.l.b16 %v4774
      %v4924 = vunpack.c.l.b16 %v4775
      %v4925 = vunpack.c.l.b16 %v4776
      %v4926 = vunpack.c.l.b16 %v4777
      %v4927 = vunpack.c.l.b16 %v4778
      %v4928 = vunpack.c.l.b16 %v4779
      %v4929 = vunpack.c.l.b16 %v4780
      %v4930 = vunpack.c.l.b16 %v4781
      %v4931 = vunpack.c.l.b16 %v4782
      %v4932 = vunpack.c.l.b16 %v4783
      %v4933 = vunpack.c.l.b16 %v4784
      %v4934 = vunpack.c.l.b16 %v4785
      %v4935 = vunpack.c.l.b16 %v4786
      %v4936 = vunpack.c.l.b16 %v4787
      %v4937 = vunpack.c.l.b16 %v4788
      %v4938 = vunpack.c.l.b16 %v4789
      %v4939 = vunpack.c.l.b16 %v4790
      %v4940 = vunpack.c.l.b16 %v4791
      %v4941 = vunpack.c.l.b16 %v4792
      %v4942 = vunpack.c.l.b16 %v4793
      %v4943 = vunpack.c.l.b16 %v4794
      %v4944 = vunpack.c.l.b16 %v4795
      %v4945 = vunpack.c.l.b16 %v4796
      %v4946 = vunpack.c.l.b16 %v4797
      %v4947 = vunpack.c.l.b16 %v4798
      %v4948 = vunpack.c.l.b16 %v4799
      %v4949 = vunpack.c.l.b16 %v4800
      %v4950 = vpack.c.b16 %v4887, %v4886
      %v4951 = vpack.c.b16 %v4889, %v4888
      %v4952 = vpack.c.b16 %v4891, %v4890
      %v4953 = vpack.c.b16 %v4893, %v4892
      %v4954 = vpack.c.b16 %v4895, %v4894
      %v4955 = vpack.c.b16 %v4897, %v4896
      %v4956 = vpack.c.b16 %v4899, %v4898
      %v4957 = vpack.c.b16 %v4901, %v4900
      %v4958 = vpack.c.b16 %v4903, %v4902
      %v4959 = vpack.c.b16 %v4905, %v4904
      %v4960 = vpack.c.b16 %v4907, %v4906
      %v4961 = vpack.c.b16 %v4909, %v4908
      %v4962 = vpack.c.b16 %v4911, %v4910
      %v4963 = vpack.c.b16 %v4913, %v4912
      %v4964 = vpack.c.b16 %v4915, %v4914
      %v4965 = vpack.c.b16 %v4917, %v4916
      %v4966 = vpack.c.b16 %v4919, %v4918
      %v4967 = vpack.c.b16 %v4921, %v4920
      %v4968 = vpack.c.b16 %v4923, %v4922
      %v4969 = vpack.c.b16 %v4925, %v4924
      %v4970 = vpack.c.b16 %v4927, %v4926
      %v4971 = vpack.c.b16 %v4929, %v4928
      %v4972 = vpack.c.b16 %v4931, %v4930
      %v4973 = vpack.c.b16 %v4933, %v4932
      %v4974 = vpack.c.b16 %v4935, %v4934
      %v4975 = vpack.c.b16 %v4937, %v4936
      %v4976 = vpack.c.b16 %v4939, %v4938
      %v4977 = vpack.c.b16 %v4941, %v4940
      %v4978 = vpack.c.b16 %v4943, %v4942
      %v4979 = vpack.c.b16 %v4945, %v4944
      %v4980 = vpack.c.b16 %v4947, %v4946
      %v4981 = vpack.c.b16 %v4949, %v4948
      %5014 = vmatprep.subr.bf16.mxu0 0
      %5015 = vmatpush1.bf16.msra.mxu0 %v4950
      %5016 = vmatprep.subr.bf16.mxu0 0
      %5017 = vmatpush1.bf16.msra.mxu0 %v4951
      %5018 = vmatprep.subr.bf16.mxu0 0
      %5019 = vmatpush1.bf16.msra.mxu0 %v4952
      %5020 = vmatprep.subr.bf16.mxu0 0
      %5021 = vmatpush1.bf16.msra.mxu0 %v4953
      %5022 = vmatprep.subr.bf16.mxu0 0
      %5023 = vmatpush1.bf16.msra.mxu0 %v4954
      %5024 = vmatprep.subr.bf16.mxu0 0
      %5025 = vmatpush1.bf16.msra.mxu0 %v4955
      %5026 = vmatprep.subr.bf16.mxu0 0
      %5027 = vmatpush1.bf16.msra.mxu0 %v4956
      %5028 = vmatprep.subr.bf16.mxu0 0
      %5029 = vmatpush1.bf16.msra.mxu0 %v4957
      %5030 = vmatprep.subr.bf16.mxu0 0
      %5031 = vmatpush1.bf16.msra.mxu0 %v4958
      %5032 = vmatprep.subr.bf16.mxu0 0
      %5033 = vmatpush1.bf16.msra.mxu0 %v4959
      %5034 = vmatprep.subr.bf16.mxu0 0
      %5035 = vmatpush1.bf16.msra.mxu0 %v4960
      %5036 = vmatprep.subr.bf16.mxu0 0
      %5037 = vmatpush1.bf16.msra.mxu0 %v4961
      %5038 = vmatprep.subr.bf16.mxu0 0
      %5039 = vmatpush1.bf16.msra.mxu0 %v4962
      %5040 = vmatprep.subr.bf16.mxu0 0
      %5041 = vmatpush1.bf16.msra.mxu0 %v4963
      %5042 = vmatprep.subr.bf16.mxu0 0
      %5043 = vmatpush1.bf16.msra.mxu0 %v4964
      %5044 = vmatprep.subr.bf16.mxu0 0
      %5045 = vmatpush1.bf16.msra.mxu0 %v4965
      %5046 = vmatprep.mubr.bf16.mxu0 %v4815
      %5047 = vmatmul.mubr.bf16.gmra.mrb[0].mxu0 %v4814
      %v5048 = vpop.f32.mrb[0].mxu0
      %v5049 = vadd.f32 %v4806, %v5048
      %v5050 = vpop.f32.mrb[0].mxu0
      %v5051 = vpop.f32.mrb[0].mxu0
      %v5052 = vpop.f32.mrb[0].mxu0
      %5053 = vdwg.mxu0
      %5054 = vmatprep.subr.bf16.mxu0 0
      %5055 = vmatpush1.bf16.msra.mxu0 %v4966
      %5056 = vmatprep.subr.bf16.mxu0 0
      %5057 = vmatpush1.bf16.msra.mxu0 %v4967
      %5058 = vmatprep.subr.bf16.mxu0 0
      %5059 = vmatpush1.bf16.msra.mxu0 %v4968
      %5060 = vmatprep.subr.bf16.mxu0 0
      %5061 = vmatpush1.bf16.msra.mxu0 %v4969
      %5062 = vmatprep.subr.bf16.mxu0 0
      %5063 = vmatpush1.bf16.msra.mxu0 %v4970
      %5064 = vmatprep.subr.bf16.mxu0 0
      %5065 = vmatpush1.bf16.msra.mxu0 %v4971
      %5066 = vmatprep.subr.bf16.mxu0 0
      %5067 = vmatpush1.bf16.msra.mxu0 %v4972
      %5068 = vmatprep.subr.bf16.mxu0 0
      %5069 = vmatpush1.bf16.msra.mxu0 %v4973
      %5070 = vmatprep.subr.bf16.mxu0 0
      %5071 = vmatpush1.bf16.msra.mxu0 %v4974
      %5072 = vmatprep.subr.bf16.mxu0 0
      %5073 = vmatpush1.bf16.msra.mxu0 %v4975
      %5074 = vmatprep.subr.bf16.mxu0 0
      %5075 = vmatpush1.bf16.msra.mxu0 %v4976
      %5076 = vmatprep.subr.bf16.mxu0 0
      %5077 = vmatpush1.bf16.msra.mxu0 %v4977
      %5078 = vmatprep.subr.bf16.mxu0 0
      %5079 = vmatpush1.bf16.msra.mxu0 %v4978
      %5080 = vmatprep.subr.bf16.mxu0 0
      %5081 = vmatpush1.bf16.msra.mxu0 %v4979
      %5082 = vmatprep.subr.bf16.mxu0 0
      %5083 = vmatpush1.bf16.msra.mxu0 %v4980
      %5084 = vmatprep.subr.bf16.mxu0 0
      %5085 = vmatpush1.bf16.msra.mxu0 %v4981
      %5086 = vmatprep.mubr.bf16.mxu0 %v4817
      %5087 = vmatmul.mubr.bf16.gmra.mrb[0].mxu0 %v4816
      %v5088 = vpop.f32.mrb[0].mxu0
      %v5089 = vadd.f32 %v5049, %v5088
      %v5090 = vpop.f32.mrb[0].mxu0
      %v5091 = vpop.f32.mrb[0].mxu0
      %v5092 = vpop.f32.mrb[0].mxu0
      %5093 = vdwg.mxu0
      %v5094 = vmax.f32 %v5089, 0.0
      %v5095 = vpack.c.bf16 %v5094, %v5094
      %5096 = vst.msk [vmem:[#allocation4 + $0x10] sm:$0xf] %vm1933, %v5095
      %v5097 = vld [vmem:[#allocation4] sm:$0xff]
      %v5098 = vld [vmem:[#allocation4 + $0x8] sm:$0xff]
      %v5099 = vld [vmem:[#allocation4 + $0x10] sm:$0xf]
      %v5100 = vld [vmem:[%s5] sm:$0xf]
      %v5101 = vld [vmem:[%s5 + $0x4] sm:$0xf]
      %v5102 = vld [vmem:[%s5 + $0x8] sm:$0xf]
      %v5103 = vld [vmem:[%s5 + $0xc] sm:$0xf]
      %v5104 = vld [vmem:[%s5 + $0x10] sm:$0xf]
      %v5105 = vld [vmem:[%s5 + $0x14] sm:$0xf]
      %v5106 = vld [vmem:[%s5 + $0x18] sm:$0xf]
      %v5107 = vld [vmem:[%s5 + $0x1c] sm:$0xf]
      %v5108 = vld [vmem:[%s5 + $0x20] sm:$0xf]
      %v5109 = vld [vmem:[%s5 + $0x24] sm:$0xf]
      %v5110 = vld [vmem:[%s5 + $0x28] sm:$0xf]
      %v5111 = vld [vmem:[%s5 + $0x2c] sm:$0xf]
      %v5112 = vld [vmem:[%s5 + $0x30] sm:$0xf]
      %v5113 = vld [vmem:[%s5 + $0x34] sm:$0xf]
      %v5114 = vld [vmem:[%s5 + $0x38] sm:$0xf]
      %v5115 = vld [vmem:[%s5 + $0x3c] sm:$0xf]
      %v5116 = vld [vmem:[%s5 + $0x40] sm:$0xf]
      %v5117 = vld [vmem:[%s5 + $0x44] sm:$0xf]
      %v5118 = vld [vmem:[%s5 + $0x48] sm:$0xf]
      %v5119 = vld [vmem:[%s5 + $0x4c] sm:$0xf]
      %v5120 = vld [vmem:[%s5 + $0x50] sm:$0xf]
      %v5121 = vld [vmem:[%s5 + $0x54] sm:$0xf]
      %v5122 = vld [vmem:[%s5 + $0x58] sm:$0xf]
      %v5123 = vld [vmem:[%s5 + $0x5c] sm:$0xf]
      %v5124 = vld [vmem:[%s5 + $0x60] sm:$0xf]
      %v5125 = vld [vmem:[%s5 + $0x64] sm:$0xf]
      %v5126 = vld [vmem:[%s5 + $0x68] sm:$0xf]
      %v5127 = vld [vmem:[%s5 + $0x6c] sm:$0xf]
      %v5128 = vld [vmem:[%s5 + $0x70] sm:$0xf]
      %v5129 = vld [vmem:[%s5 + $0x74] sm:$0xf]
      %v5130 = vld [vmem:[%s5 + $0x78] sm:$0xf]
      %v5131 = vld [vmem:[%s5 + $0x7c] sm:$0xf]
      %v5132 = vld [vmem:[%s5 + $0x80] sm:$0xf]
      %v5133 = vld [vmem:[%s5 + $0x84] sm:$0xf]
      %v5134 = vld [vmem:[%s5 + $0x88] sm:$0xf]
      %v5135 = vld [vmem:[%s5 + $0x8c] sm:$0xf]
      %v5136 = vld [vmem:[%s5 + $0x90] sm:$0xf]
      %v5137 = vld [vmem:[%s5 + $0x94] sm:$0xf]
      %v5138 = vld [vmem:[%s5 + $0x98] sm:$0xf]
      %v5139 = vld [vmem:[%s5 + $0x9c] sm:$0xf]
      %v5140 = vld [vmem:[%s5 + $0xa0] sm:$0xf]
      %v5141 = vld [vmem:[%s5 + $0xa4] sm:$0xf]
      %v5142 = vld [vmem:[%s5 + $0xa8] sm:$0xf]
      %v5143 = vld [vmem:[%s5 + $0xac] sm:$0xf]
      %v5144 = vld [vmem:[%s5 + $0xb0] sm:$0xf]
      %v5145 = vld [vmem:[%s5 + $0xb4] sm:$0xf]
      %v5146 = vld [vmem:[%s5 + $0xb8] sm:$0xf]
      %v5147 = vld [vmem:[%s5 + $0xbc] sm:$0xf]
      %v5148 = vld [vmem:[%s5 + $0xc0] sm:$0xf]
      %v5149 = vld [vmem:[%s5 + $0xc4] sm:$0xf]
      %v5150 = vld [vmem:[%s5 + $0xc8] sm:$0xf]
      %v5151 = vld [vmem:[%s5 + $0xcc] sm:$0xf]
      %v5152 = vld [vmem:[%s5 + $0xd0] sm:$0xf]
      %v5153 = vld [vmem:[%s5 + $0xd4] sm:$0xf]
      %v5154 = vld [vmem:[%s5 + $0xd8] sm:$0xf]
      %v5155 = vld [vmem:[%s5 + $0xdc] sm:$0xf]
      %v5156 = vld [vmem:[%s5 + $0xe0] sm:$0xf]
      %v5157 = vld [vmem:[%s5 + $0xe4] sm:$0xf]
      %v5158 = vld [vmem:[%s5 + $0xe8] sm:$0xf]
      %v5159 = vld [vmem:[%s5 + $0xec] sm:$0xf]
      %v5160 = vld [vmem:[%s5 + $0xf0] sm:$0xf]
      %v5161 = vld [vmem:[%s5 + $0xf4] sm:$0xf]
      %v5162 = vld [vmem:[%s5 + $0xf8] sm:$0xf]
      %v5163 = vld [vmem:[%s5 + $0xfc] sm:$0xf]
      %v5164 = vld [vmem:[%s5 + $0x100] sm:$0xf]
      %v5165 = vld [vmem:[%s5 + $0x104] sm:$0xf]
      %v5166 = vld [vmem:[%s5 + $0x108] sm:$0xf]
      %v5167 = vld [vmem:[%s5 + $0x10c] sm:$0xf]
      %v5168 = vld [vmem:[%s5 + $0x110] sm:$0xf]
      %v5169 = vld [vmem:[%s5 + $0x114] sm:$0xf]
      %v5170 = vld [vmem:[%s5 + $0x118] sm:$0xf]
      %v5171 = vld [vmem:[%s5 + $0x11c] sm:$0xf]
      %v5172 = vld [vmem:[%s6] sm:$0x1]
      %v5174 = vlaneseq
      %v5175 = vshrl.u32 %v5174, 7
      %v5176 = vsub.s32 0, %v5175
      %v5177 = vrot.slane %v5172, %v5176
      %v5182 = vunpack.c.l.b16 %v5097
      %v5183 = vunpack.c.h.b16 %v5097
      %v5184 = vunpack.c.l.b16 %v5098
      %v5185 = vunpack.c.h.b16 %v5098
      %v5186 = vunpack.c.l.b16 %v5099
      %v5187 = vpack.c.b16 %v5182, %v5182
      %v5188 = vpack.c.b16 %v5183, %v5183
      %v5189 = vpack.c.b16 %v5184, %v5184
      %v5190 = vpack.c.b16 %v5185, %v5185
      %v5191 = vpack.c.b16 %v5186, %v5186
      %v5268 = vunpack.c.l.b16 %v5100
      %v5269 = vunpack.c.l.b16 %v5101
      %v5270 = vunpack.c.l.b16 %v5102
      %v5271 = vunpack.c.l.b16 %v5103
      %v5272 = vunpack.c.l.b16 %v5104
      %v5273 = vunpack.c.l.b16 %v5105
      %v5274 = vunpack.c.l.b16 %v5106
      %v5275 = vunpack.c.l.b16 %v5107
      %v5276 = vunpack.c.l.b16 %v5108
      %v5277 = vunpack.c.l.b16 %v5109
      %v5278 = vunpack.c.l.b16 %v5110
      %v5279 = vunpack.c.l.b16 %v5111
      %v5280 = vunpack.c.l.b16 %v5112
      %v5281 = vunpack.c.l.b16 %v5113
      %v5282 = vunpack.c.l.b16 %v5114
      %v5283 = vunpack.c.l.b16 %v5115
      %v5284 = vunpack.c.l.b16 %v5116
      %v5285 = vunpack.c.l.b16 %v5117
      %v5286 = vunpack.c.l.b16 %v5118
      %v5287 = vunpack.c.l.b16 %v5119
      %v5288 = vunpack.c.l.b16 %v5120
      %v5289 = vunpack.c.l.b16 %v5121
      %v5290 = vunpack.c.l.b16 %v5122
      %v5291 = vunpack.c.l.b16 %v5123
      %v5292 = vunpack.c.l.b16 %v5124
      %v5293 = vunpack.c.l.b16 %v5125
      %v5294 = vunpack.c.l.b16 %v5126
      %v5295 = vunpack.c.l.b16 %v5127
      %v5296 = vunpack.c.l.b16 %v5128
      %v5297 = vunpack.c.l.b16 %v5129
      %v5298 = vunpack.c.l.b16 %v5130
      %v5299 = vunpack.c.l.b16 %v5131
      %v5300 = vunpack.c.l.b16 %v5132
      %v5301 = vunpack.c.l.b16 %v5133
      %v5302 = vunpack.c.l.b16 %v5134
      %v5303 = vunpack.c.l.b16 %v5135
      %v5304 = vunpack.c.l.b16 %v5136
      %v5305 = vunpack.c.l.b16 %v5137
      %v5306 = vunpack.c.l.b16 %v5138
      %v5307 = vunpack.c.l.b16 %v5139
      %v5308 = vunpack.c.l.b16 %v5140
      %v5309 = vunpack.c.l.b16 %v5141
      %v5310 = vunpack.c.l.b16 %v5142
      %v5311 = vunpack.c.l.b16 %v5143
      %v5312 = vunpack.c.l.b16 %v5144
      %v5313 = vunpack.c.l.b16 %v5145
      %v5314 = vunpack.c.l.b16 %v5146
      %v5315 = vunpack.c.l.b16 %v5147
      %v5316 = vunpack.c.l.b16 %v5148
      %v5317 = vunpack.c.l.b16 %v5149
      %v5318 = vunpack.c.l.b16 %v5150
      %v5319 = vunpack.c.l.b16 %v5151
      %v5320 = vunpack.c.l.b16 %v5152
      %v5321 = vunpack.c.l.b16 %v5153
      %v5322 = vunpack.c.l.b16 %v5154
      %v5323 = vunpack.c.l.b16 %v5155
      %v5324 = vunpack.c.l.b16 %v5156
      %v5325 = vunpack.c.l.b16 %v5157
      %v5326 = vunpack.c.l.b16 %v5158
      %v5327 = vunpack.c.l.b16 %v5159
      %v5328 = vunpack.c.l.b16 %v5160
      %v5329 = vunpack.c.l.b16 %v5161
      %v5330 = vunpack.c.l.b16 %v5162
      %v5331 = vunpack.c.l.b16 %v5163
      %v5332 = vunpack.c.l.b16 %v5164
      %v5333 = vunpack.c.l.b16 %v5165
      %v5334 = vunpack.c.l.b16 %v5166
      %v5335 = vunpack.c.l.b16 %v5167
      %v5336 = vunpack.c.l.b16 %v5168
      %v5337 = vunpack.c.l.b16 %v5169
      %v5338 = vunpack.c.l.b16 %v5170
      %v5339 = vunpack.c.l.b16 %v5171
      %v5340 = vpack.c.b16 %v5269, %v5268
      %v5341 = vpack.c.b16 %v5271, %v5270
      %v5342 = vpack.c.b16 %v5273, %v5272
      %v5343 = vpack.c.b16 %v5275, %v5274
      %v5344 = vpack.c.b16 %v5277, %v5276
      %v5345 = vpack.c.b16 %v5279, %v5278
      %v5346 = vpack.c.b16 %v5281, %v5280
      %v5347 = vpack.c.b16 %v5283, %v5282
      %v5348 = vpack.c.b16 %v5285, %v5284
      %v5349 = vpack.c.b16 %v5287, %v5286
      %v5350 = vpack.c.b16 %v5289, %v5288
      %v5351 = vpack.c.b16 %v5291, %v5290
      %v5352 = vpack.c.b16 %v5293, %v5292
      %v5353 = vpack.c.b16 %v5295, %v5294
      %v5354 = vpack.c.b16 %v5297, %v5296
      %v5355 = vpack.c.b16 %v5299, %v5298
      %v5356 = vpack.c.b16 %v5301, %v5300
      %v5357 = vpack.c.b16 %v5303, %v5302
      %v5358 = vpack.c.b16 %v5305, %v5304
      %v5359 = vpack.c.b16 %v5307, %v5306
      %v5360 = vpack.c.b16 %v5309, %v5308
      %v5361 = vpack.c.b16 %v5311, %v5310
      %v5362 = vpack.c.b16 %v5313, %v5312
      %v5363 = vpack.c.b16 %v5315, %v5314
      %v5364 = vpack.c.b16 %v5317, %v5316
      %v5365 = vpack.c.b16 %v5319, %v5318
      %v5366 = vpack.c.b16 %v5321, %v5320
      %v5367 = vpack.c.b16 %v5323, %v5322
      %v5368 = vpack.c.b16 %v5325, %v5324
      %v5369 = vpack.c.b16 %v5327, %v5326
      %v5370 = vpack.c.b16 %v5329, %v5328
      %v5371 = vpack.c.b16 %v5331, %v5330
      %v5372 = vpack.c.b16 %v5333, %v5332
      %v5373 = vpack.c.b16 %v5335, %v5334
      %v5374 = vpack.c.b16 %v5337, %v5336
      %v5375 = vpack.c.b16 %v5339, %v5338
      %vm5412 = vcmask 523264
      %v5414 = vsel %vm5412, %v5191, 0
      %5416 = vmatprep.subr.bf16.mxu0 0
      %5417 = vmatpush1.bf16.msra.mxu0 %v5340
      %5418 = vmatprep.subr.bf16.mxu0 0
      %5419 = vmatpush1.bf16.msra.mxu0 %v5341
      %5420 = vmatprep.subr.bf16.mxu0 0
      %5421 = vmatpush1.bf16.msra.mxu0 %v5342
      %5422 = vmatprep.subr.bf16.mxu0 0
      %5423 = vmatpush1.bf16.msra.mxu0 %v5343
      %5424 = vmatprep.subr.bf16.mxu0 0
      %5425 = vmatpush1.bf16.msra.mxu0 %v5344
      %5426 = vmatprep.subr.bf16.mxu0 0
      %5427 = vmatpush1.bf16.msra.mxu0 %v5345
      %5428 = vmatprep.subr.bf16.mxu0 0
      %5429 = vmatpush1.bf16.msra.mxu0 %v5346
      %5430 = vmatprep.subr.bf16.mxu0 0
      %5431 = vmatpush1.bf16.msra.mxu0 %v5347
      %5432 = vmatprep.subr.bf16.mxu0 0
      %5433 = vmatpush1.bf16.msra.mxu0 %v5348
      %5434 = vmatprep.subr.bf16.mxu0 0
      %5435 = vmatpush1.bf16.msra.mxu0 %v5349
      %5436 = vmatprep.subr.bf16.mxu0 0
      %5437 = vmatpush1.bf16.msra.mxu0 %v5350
      %5438 = vmatprep.subr.bf16.mxu0 0
      %5439 = vmatpush1.bf16.msra.mxu0 %v5351
      %5440 = vmatprep.subr.bf16.mxu0 0
      %5441 = vmatpush1.bf16.msra.mxu0 %v5352
      %5442 = vmatprep.subr.bf16.mxu0 0
      %5443 = vmatpush1.bf16.msra.mxu0 %v5353
      %5444 = vmatprep.subr.bf16.mxu0 0
      %5445 = vmatpush1.bf16.msra.mxu0 %v5354
      %5446 = vmatprep.subr.bf16.mxu0 0
      %5447 = vmatpush1.bf16.msra.mxu0 %v5355
      %5448 = vmatprep.mubr.bf16.mxu0 %v5188
      %5449 = vmatmul.mubr.bf16.gmra.mrb[0].mxu0 %v5187
      %v5450 = vpop.f32.mrb[0].mxu0
      %v5451 = vadd.f32 %v5177, %v5450
      %v5452 = vpop.f32.mrb[0].mxu0
      %v5453 = vpop.f32.mrb[0].mxu0
      %v5454 = vpop.f32.mrb[0].mxu0
      %5455 = vdwg.mxu0
      %5456 = vmatprep.subr.bf16.mxu0 0
      %5457 = vmatpush1.bf16.msra.mxu0 %v5356
      %5458 = vmatprep.subr.bf16.mxu0 0
      %5459 = vmatpush1.bf16.msra.mxu0 %v5357
      %5460 = vmatprep.subr.bf16.mxu0 0
      %5461 = vmatpush1.bf16.msra.mxu0 %v5358
      %5462 = vmatprep.subr.bf16.mxu0 0
      %5463 = vmatpush1.bf16.msra.mxu0 %v5359
      %5464 = vmatprep.subr.bf16.mxu0 0
      %5465 = vmatpush1.bf16.msra.mxu0 %v5360
      %5466 = vmatprep.subr.bf16.mxu0 0
      %5467 = vmatpush1.bf16.msra.mxu0 %v5361
      %5468 = vmatprep.subr.bf16.mxu0 0
      %5469 = vmatpush1.bf16.msra.mxu0 %v5362
      %5470 = vmatprep.subr.bf16.mxu0 0
      %5471 = vmatpush1.bf16.msra.mxu0 %v5363
      %5472 = vmatprep.subr.bf16.mxu0 0
      %5473 = vmatpush1.bf16.msra.mxu0 %v5364
      %5474 = vmatprep.subr.bf16.mxu0 0
      %5475 = vmatpush1.bf16.msra.mxu0 %v5365
      %5476 = vmatprep.subr.bf16.mxu0 0
      %5477 = vmatpush1.bf16.msra.mxu0 %v5366
      %5478 = vmatprep.subr.bf16.mxu0 0
      %5479 = vmatpush1.bf16.msra.mxu0 %v5367
      %5480 = vmatprep.subr.bf16.mxu0 0
      %5481 = vmatpush1.bf16.msra.mxu0 %v5368
      %5482 = vmatprep.subr.bf16.mxu0 0
      %5483 = vmatpush1.bf16.msra.mxu0 %v5369
      %5484 = vmatprep.subr.bf16.mxu0 0
      %5485 = vmatpush1.bf16.msra.mxu0 %v5370
      %5486 = vmatprep.subr.bf16.mxu0 0
      %5487 = vmatpush1.bf16.msra.mxu0 %v5371
      %5488 = vmatprep.mubr.bf16.mxu0 %v5190
      %5489 = vmatmul.mubr.bf16.gmra.mrb[0].mxu0 %v5189
      %v5490 = vpop.f32.mrb[0].mxu0
      %v5491 = vadd.f32 %v5451, %v5490
      %v5492 = vpop.f32.mrb[0].mxu0
      %v5493 = vpop.f32.mrb[0].mxu0
      %v5494 = vpop.f32.mrb[0].mxu0
      %5495 = vdwg.mxu0
      %5496 = vmatprep.subr.bf16.mxu0 0
      %5497 = vmatpush1.bf16.msra.mxu0 %v5372
      %5498 = vmatprep.subr.bf16.mxu0 0
      %5499 = vmatpush1.bf16.msra.mxu0 %v5373
      %5500 = vmatprep.subr.bf16.mxu0 0
      %5501 = vmatpush1.bf16.msra.mxu0 %v5374
      %5502 = vmatprep.subr.bf16.mxu0 0
      %5503 = vmatpush1.bf16.msra.mxu0 %v5375
      %5504 = vmatprep.subr.bf16.mxu0 0
      %5505 = vmatpush1.bf16.msra.mxu0 0
      %5506 = vmatprep.subr.bf16.mxu0 0
      %5507 = vmatpush1.bf16.msra.mxu0 0
      %5508 = vmatprep.subr.bf16.mxu0 0
      %5509 = vmatpush1.bf16.msra.mxu0 0
      %5510 = vmatprep.subr.bf16.mxu0 0
      %5511 = vmatpush1.bf16.msra.mxu0 0
      %5512 = vmatprep.subr.bf16.mxu0 0
      %5513 = vmatpush1.bf16.msra.mxu0 0
      %5514 = vmatprep.subr.bf16.mxu0 0
      %5515 = vmatpush1.bf16.msra.mxu0 0
      %5516 = vmatprep.subr.bf16.mxu0 0
      %5517 = vmatpush1.bf16.msra.mxu0 0
      %5518 = vmatprep.subr.bf16.mxu0 0
      %5519 = vmatpush1.bf16.msra.mxu0 0
      %5520 = vmatprep.subr.bf16.mxu0 0
      %5521 = vmatpush1.bf16.msra.mxu0 0
      %5522 = vmatprep.subr.bf16.mxu0 0
      %5523 = vmatpush1.bf16.msra.mxu0 0
      %5524 = vmatprep.subr.bf16.mxu0 0
      %5525 = vmatpush1.bf16.msra.mxu0 0
      %5526 = vmatprep.subr.bf16.mxu0 0
      %5527 = vmatpush1.bf16.msra.mxu0 0
      %5528 = vmatprep.mubr.bf16.mxu0 0
      %5529 = vmatmul.mubr.bf16.gmra.mrb[0].mxu0 %v5414
      %v5530 = vpop.f32.mrb[0].mxu0
      %v5531 = vadd.f32 %v5491, %v5530
      %v5532 = vpop.f32.mrb[0].mxu0
      %v5533 = vpop.f32.mrb[0].mxu0
      %v5534 = vpop.f32.mrb[0].mxu0
      %5535 = vdwg.mxu0
      %v5536 = vmax.f32 %v5531, 0.0
      %v5537 = vpack.c.bf16 %v5536, %v5536
      %v5538 = vld [vmem:[%s7] sm:$0xff]
      %v5539 = vld [vmem:[%s7 + $0x8] sm:$0xff]
      %v5540 = vld [vmem:[%s7 + $0x10] sm:$0xff]
      %v5541 = vld [vmem:[%s7 + $0x18] sm:$0xff]
      %v5542 = vld [vmem:[%s7 + $0x20] sm:$0xff]
      %v5543 = vld [vmem:[%s7 + $0x28] sm:$0xff]
      %v5544 = vld [vmem:[%s7 + $0x30] sm:$0xff]
      %v5545 = vld [vmem:[%s7 + $0x38] sm:$0xff]
      %v5546 = vld [vmem:[%s7 + $0x40] sm:$0xff]
      %v5547 = vld [vmem:[%s7 + $0x48] sm:$0xff]
      %v5548 = vld [vmem:[%s7 + $0x50] sm:$0xff]
      %v5549 = vld [vmem:[%s7 + $0x58] sm:$0xff]
      %v5550 = vld [vmem:[%s7 + $0x60] sm:$0xff]
      %v5551 = vld [vmem:[%s7 + $0x68] sm:$0xff]
      %v5552 = vld [vmem:[%s7 + $0x70] sm:$0xff]
      %v5553 = vld [vmem:[%s7 + $0x78] sm:$0xff]
      %v5554 = vld [vmem:[%s8] sm:$0xf]
      %v5556 = vlaneseq
      %v5557 = vshrl.u32 %v5556, 7
      %v5558 = vsub.s32 0, %v5557
      %v5559 = vrot.slane %v5554, %v5558
      %v5560 = vlaneseq
      %v5561 = vshrl.u32 %v5560, 7
      %v5562 = vsub.s32 1, %v5561
      %v5563 = vrot.slane %v5554, %v5562
      %v5564 = vlaneseq
      %v5565 = vshrl.u32 %v5564, 7
      %v5566 = vsub.s32 2, %v5565
      %v5567 = vrot.slane %v5554, %v5566
      %v5568 = vlaneseq
      %v5569 = vshrl.u32 %v5568, 7
      %v5570 = vsub.s32 3, %v5569
      %v5571 = vrot.slane %v5554, %v5570
      %v5592 = vunpack.c.l.b16 %v5538
      %v5593 = vunpack.c.h.b16 %v5538
      %v5594 = vunpack.c.l.b16 %v5539
      %v5595 = vunpack.c.h.b16 %v5539
      %v5596 = vunpack.c.l.b16 %v5540
      %v5597 = vunpack.c.h.b16 %v5540
      %v5598 = vunpack.c.l.b16 %v5541
      %v5599 = vunpack.c.h.b16 %v5541
      %v5600 = vunpack.c.l.b16 %v5542
      %v5601 = vunpack.c.h.b16 %v5542
      %v5602 = vunpack.c.l.b16 %v5543
      %v5603 = vunpack.c.h.b16 %v5543
      %v5604 = vunpack.c.l.b16 %v5544
      %v5605 = vunpack.c.h.b16 %v5544
      %v5606 = vunpack.c.l.b16 %v5545
      %v5607 = vunpack.c.h.b16 %v5545
      %v5608 = vunpack.c.l.b16 %v5546
      %v5609 = vunpack.c.h.b16 %v5546
      %v5610 = vunpack.c.l.b16 %v5547
      %v5611 = vunpack.c.h.b16 %v5547
      %v5612 = vunpack.c.l.b16 %v5548
      %v5613 = vunpack.c.h.b16 %v5548
      %v5614 = vunpack.c.l.b16 %v5549
      %v5615 = vunpack.c.h.b16 %v5549
      %v5616 = vunpack.c.l.b16 %v5550
      %v5617 = vunpack.c.h.b16 %v5550
      %v5618 = vunpack.c.l.b16 %v5551
      %v5619 = vunpack.c.h.b16 %v5551
      %v5620 = vunpack.c.l.b16 %v5552
      %v5621 = vunpack.c.h.b16 %v5552
      %v5622 = vunpack.c.l.b16 %v5553
      %v5623 = vunpack.c.h.b16 %v5553
      %v5624 = vpack.c.b16 %v5596, %v5592
      %v5625 = vpack.c.b16 %v5597, %v5593
      %v5626 = vpack.c.b16 %v5598, %v5594
      %v5627 = vpack.c.b16 %v5599, %v5595
      %v5628 = vpack.c.b16 %v5604, %v5600
      %v5629 = vpack.c.b16 %v5605, %v5601
      %v5630 = vpack.c.b16 %v5606, %v5602
      %v5631 = vpack.c.b16 %v5607, %v5603
      %v5632 = vpack.c.b16 %v5612, %v5608
      %v5633 = vpack.c.b16 %v5613, %v5609
      %v5634 = vpack.c.b16 %v5614, %v5610
      %v5635 = vpack.c.b16 %v5615, %v5611
      %v5636 = vpack.c.b16 %v5620, %v5616
      %v5637 = vpack.c.b16 %v5621, %v5617
      %v5638 = vpack.c.b16 %v5622, %v5618
      %v5639 = vpack.c.b16 %v5623, %v5619
      %v5657 = vsel %vm5412, %v5537, 0
      %5659 = vmatprep.subr.bf16.mxu0 %v5625
      %5660 = vmatpush1.bf16.msra.mxu0 %v5624
      %5661 = vmatprep.subr.bf16.mxu0 %v5629
      %5662 = vmatpush1.bf16.msra.mxu0 %v5628
      %5663 = vmatprep.subr.bf16.mxu0 %v5633
      %5664 = vmatpush1.bf16.msra.mxu0 %v5632
      %5665 = vmatprep.subr.bf16.mxu0 %v5637
      %5666 = vmatpush1.bf16.msra.mxu0 %v5636
      %5667 = vmatprep.subr.bf16.mxu0 0
      %5668 = vmatpush1.bf16.msra.mxu0 0
      %5669 = vmatprep.subr.bf16.mxu0 0
      %5670 = vmatpush1.bf16.msra.mxu0 0
      %5671 = vmatprep.subr.bf16.mxu0 0
      %5672 = vmatpush1.bf16.msra.mxu0 0
      %5673 = vmatprep.subr.bf16.mxu0 0
      %5674 = vmatpush1.bf16.msra.mxu0 0
      %5675 = vmatprep.subr.bf16.mxu0 0
      %5676 = vmatpush1.bf16.msra.mxu0 0
      %5677 = vmatprep.subr.bf16.mxu0 0
      %5678 = vmatpush1.bf16.msra.mxu0 0
      %5679 = vmatprep.subr.bf16.mxu0 0
      %5680 = vmatpush1.bf16.msra.mxu0 0
      %5681 = vmatprep.subr.bf16.mxu0 0
      %5682 = vmatpush1.bf16.msra.mxu0 0
      %5683 = vmatprep.subr.bf16.mxu0 0
      %5684 = vmatpush1.bf16.msra.mxu0 0
      %5685 = vmatprep.subr.bf16.mxu0 0
      %5686 = vmatpush1.bf16.msra.mxu0 0
      %5687 = vmatprep.subr.bf16.mxu0 0
      %5688 = vmatpush1.bf16.msra.mxu0 0
      %5689 = vmatprep.subr.bf16.mxu0 0
      %5690 = vmatpush1.bf16.msra.mxu0 0
      %5691 = vmatprep.mubr.bf16.mxu0 0
      %5692 = vmatmul.mubr.bf16.gmra.mrb[0].mxu0 %v5657
      %v5693 = vpop.f32.mrb[0].mxu0
      %v5694 = vadd.f32 %v5559, %v5693
      %v5695 = vpop.f32.mrb[0].mxu0
      %v5696 = vadd.f32 %v5563, %v5695
      %v5697 = vpop.f32.mrb[0].mxu0
      %v5698 = vpop.f32.mrb[0].mxu0
      %5699 = vdwg.mxu0
      %5700 = vmatprep.subr.bf16.mxu0 %v5627
      %5701 = vmatpush1.bf16.msra.mxu0 %v5626
      %5702 = vmatprep.subr.bf16.mxu0 %v5631
      %5703 = vmatpush1.bf16.msra.mxu0 %v5630
      %5704 = vmatprep.subr.bf16.mxu0 %v5635
      %5705 = vmatpush1.bf16.msra.mxu0 %v5634
      %5706 = vmatprep.subr.bf16.mxu0 %v5639
      %5707 = vmatpush1.bf16.msra.mxu0 %v5638
      %5708 = vmatprep.subr.bf16.mxu0 0
      %5709 = vmatpush1.bf16.msra.mxu0 0
      %5710 = vmatprep.subr.bf16.mxu0 0
      %5711 = vmatpush1.bf16.msra.mxu0 0
      %5712 = vmatprep.subr.bf16.mxu0 0
      %5713 = vmatpush1.bf16.msra.mxu0 0
      %5714 = vmatprep.subr.bf16.mxu0 0
      %5715 = vmatpush1.bf16.msra.mxu0 0
      %5716 = vmatprep.subr.bf16.mxu0 0
      %5717 = vmatpush1.bf16.msra.mxu0 0
      %5718 = vmatprep.subr.bf16.mxu0 0
      %5719 = vmatpush1.bf16.msra.mxu0 0
      %5720 = vmatprep.subr.bf16.mxu0 0
      %5721 = vmatpush1.bf16.msra.mxu0 0
      %5722 = vmatprep.subr.bf16.mxu0 0
      %5723 = vmatpush1.bf16.msra.mxu0 0
      %5724 = vmatprep.subr.bf16.mxu0 0
      %5725 = vmatpush1.bf16.msra.mxu0 0
      %5726 = vmatprep.subr.bf16.mxu0 0
      %5727 = vmatpush1.bf16.msra.mxu0 0
      %5728 = vmatprep.subr.bf16.mxu0 0
      %5729 = vmatpush1.bf16.msra.mxu0 0
      %5730 = vmatprep.subr.bf16.mxu0 0
      %5731 = vmatpush1.bf16.msra.mxu0 0
      %5732 = vmatprep.mubr.bf16.mxu0 0
      %5733 = vmatmul.mubr.bf16.gmra.mrb[0].mxu0 %v5657
      %v5734 = vpop.f32.mrb[0].mxu0
      %v5735 = vadd.f32 %v5567, %v5734
      %v5736 = vpop.f32.mrb[0].mxu0
      %v5737 = vadd.f32 %v5571, %v5736
      %v5738 = vpop.f32.mrb[0].mxu0
      %v5739 = vpop.f32.mrb[0].mxu0
      %5740 = vdwg.mxu0
      %v5741 = vmax.f32 %v5694, 0.0
      %v5742 = vmax.f32 %v5696, 0.0
      %v5743 = vmax.f32 %v5735, 0.0
      %v5744 = vmax.f32 %v5737, 0.0
      %v5745 = vpack.c.bf16 %v5741, %v5741
      %v5746 = vpack.c.bf16 %v5742, %v5742
      %v5747 = vpack.c.bf16 %v5743, %v5743
      %v5748 = vpack.c.bf16 %v5744, %v5744
      %v5749 = vld [vmem:[%s9] sm:$0xf]
      %v5750 = vld [vmem:[%s9 + $0x4] sm:$0xf]
      %v5751 = vld [vmem:[%s9 + $0x8] sm:$0xf]
      %v5752 = vld [vmem:[%s9 + $0xc] sm:$0xf]
      %v5753 = vld [vmem:[%s9 + $0x10] sm:$0xf]
      %v5754 = vld [vmem:[%s9 + $0x14] sm:$0xf]
      %v5755 = vld [vmem:[%s9 + $0x18] sm:$0xf]
      %v5756 = vld [vmem:[%s9 + $0x1c] sm:$0xf]
      %v5757 = vld [vmem:[%s9 + $0x20] sm:$0xf]
      %v5758 = vld [vmem:[%s9 + $0x24] sm:$0xf]
      %v5759 = vld [vmem:[%s9 + $0x28] sm:$0xf]
      %v5760 = vld [vmem:[%s9 + $0x2c] sm:$0xf]
      %v5761 = vld [vmem:[%s9 + $0x30] sm:$0xf]
      %v5762 = vld [vmem:[%s9 + $0x34] sm:$0xf]
      %v5763 = vld [vmem:[%s9 + $0x38] sm:$0xf]
      %v5764 = vld [vmem:[%s9 + $0x3c] sm:$0xf]
      %v5765 = vld [vmem:[%s9 + $0x40] sm:$0xf]
      %v5766 = vld [vmem:[%s9 + $0x44] sm:$0xf]
      %v5767 = vld [vmem:[%s9 + $0x48] sm:$0xf]
      %v5768 = vld [vmem:[%s9 + $0x4c] sm:$0xf]
      %v5769 = vld [vmem:[%s9 + $0x50] sm:$0xf]
      %v5770 = vld [vmem:[%s9 + $0x54] sm:$0xf]
      %v5771 = vld [vmem:[%s9 + $0x58] sm:$0xf]
      %v5772 = vld [vmem:[%s9 + $0x5c] sm:$0xf]
      %v5773 = vld [vmem:[%s9 + $0x60] sm:$0xf]
      %v5774 = vld [vmem:[%s9 + $0x64] sm:$0xf]
      %v5775 = vld [vmem:[%s9 + $0x68] sm:$0xf]
      %v5776 = vld [vmem:[%s9 + $0x6c] sm:$0xf]
      %v5777 = vld [vmem:[%s9 + $0x70] sm:$0xf]
      %v5778 = vld [vmem:[%s9 + $0x74] sm:$0xf]
      %v5779 = vld [vmem:[%s9 + $0x78] sm:$0xf]
      %v5780 = vld [vmem:[%s9 + $0x7c] sm:$0xf]
      %v5781 = vld [vmem:[%s9 + $0x80] sm:$0xf]
      %v5782 = vld [vmem:[%s9 + $0x84] sm:$0xf]
      %v5783 = vld [vmem:[%s9 + $0x88] sm:$0xf]
      %v5784 = vld [vmem:[%s9 + $0x8c] sm:$0xf]
      %v5785 = vld [vmem:[%s9 + $0x90] sm:$0xf]
      %v5786 = vld [vmem:[%s9 + $0x94] sm:$0xf]
      %v5787 = vld [vmem:[%s9 + $0x98] sm:$0xf]
      %v5788 = vld [vmem:[%s9 + $0x9c] sm:$0xf]
      %v5789 = vld [vmem:[%s9 + $0xa0] sm:$0xf]
      %v5790 = vld [vmem:[%s9 + $0xa4] sm:$0xf]
      %v5791 = vld [vmem:[%s9 + $0xa8] sm:$0xf]
      %v5792 = vld [vmem:[%s9 + $0xac] sm:$0xf]
      %v5793 = vld [vmem:[%s9 + $0xb0] sm:$0xf]
      %v5794 = vld [vmem:[%s9 + $0xb4] sm:$0xf]
      %v5795 = vld [vmem:[%s9 + $0xb8] sm:$0xf]
      %v5796 = vld [vmem:[%s9 + $0xbc] sm:$0xf]
      %v5797 = vld [vmem:[%s9 + $0xc0] sm:$0xf]
      %v5798 = vld [vmem:[%s9 + $0xc4] sm:$0xf]
      %v5799 = vld [vmem:[%s9 + $0xc8] sm:$0xf]
      %v5800 = vld [vmem:[%s9 + $0xcc] sm:$0xf]
      %v5801 = vld [vmem:[%s9 + $0xd0] sm:$0xf]
      %v5802 = vld [vmem:[%s9 + $0xd4] sm:$0xf]
      %v5803 = vld [vmem:[%s9 + $0xd8] sm:$0xf]
      %v5804 = vld [vmem:[%s9 + $0xdc] sm:$0xf]
      %v5805 = vld [vmem:[%s9 + $0xe0] sm:$0xf]
      %v5806 = vld [vmem:[%s9 + $0xe4] sm:$0xf]
      %v5807 = vld [vmem:[%s9 + $0xe8] sm:$0xf]
      %v5808 = vld [vmem:[%s9 + $0xec] sm:$0xf]
      %v5809 = vld [vmem:[%s9 + $0xf0] sm:$0xf]
      %v5810 = vld [vmem:[%s9 + $0xf4] sm:$0xf]
      %v5811 = vld [vmem:[%s9 + $0xf8] sm:$0xf]
      %v5812 = vld [vmem:[%s9 + $0xfc] sm:$0xf]
      %v5813 = vld [vmem:[%s10] sm:$0x1]
      %v5815 = vlaneseq
      %v5816 = vshrl.u32 %v5815, 7
      %v5817 = vsub.s32 0, %v5816
      %v5818 = vrot.slane %v5813, %v5817
      %v5884 = vunpack.c.l.b16 %v5749
      %v5885 = vunpack.c.l.b16 %v5750
      %v5886 = vunpack.c.l.b16 %v5751
      %v5887 = vunpack.c.l.b16 %v5752
      %v5888 = vunpack.c.l.b16 %v5753
      %v5889 = vunpack.c.l.b16 %v5754
      %v5890 = vunpack.c.l.b16 %v5755
      %v5891 = vunpack.c.l.b16 %v5756
      %v5892 = vunpack.c.l.b16 %v5757
      %v5893 = vunpack.c.l.b16 %v5758
      %v5894 = vunpack.c.l.b16 %v5759
      %v5895 = vunpack.c.l.b16 %v5760
      %v5896 = vunpack.c.l.b16 %v5761
      %v5897 = vunpack.c.l.b16 %v5762
      %v5898 = vunpack.c.l.b16 %v5763
      %v5899 = vunpack.c.l.b16 %v5764
      %v5900 = vunpack.c.l.b16 %v5765
      %v5901 = vunpack.c.l.b16 %v5766
      %v5902 = vunpack.c.l.b16 %v5767
      %v5903 = vunpack.c.l.b16 %v5768
      %v5904 = vunpack.c.l.b16 %v5769
      %v5905 = vunpack.c.l.b16 %v5770
      %v5906 = vunpack.c.l.b16 %v5771
      %v5907 = vunpack.c.l.b16 %v5772
      %v5908 = vunpack.c.l.b16 %v5773
      %v5909 = vunpack.c.l.b16 %v5774
      %v5910 = vunpack.c.l.b16 %v5775
      %v5911 = vunpack.c.l.b16 %v5776
      %v5912 = vunpack.c.l.b16 %v5777
      %v5913 = vunpack.c.l.b16 %v5778
      %v5914 = vunpack.c.l.b16 %v5779
      %v5915 = vunpack.c.l.b16 %v5780
      %v5916 = vunpack.c.l.b16 %v5781
      %v5917 = vunpack.c.l.b16 %v5782
      %v5918 = vunpack.c.l.b16 %v5783
      %v5919 = vunpack.c.l.b16 %v5784
      %v5920 = vunpack.c.l.b16 %v5785
      %v5921 = vunpack.c.l.b16 %v5786
      %v5922 = vunpack.c.l.b16 %v5787
      %v5923 = vunpack.c.l.b16 %v5788
      %v5924 = vunpack.c.l.b16 %v5789
      %v5925 = vunpack.c.l.b16 %v5790
      %v5926 = vunpack.c.l.b16 %v5791
      %v5927 = vunpack.c.l.b16 %v5792
      %v5928 = vunpack.c.l.b16 %v5793
      %v5929 = vunpack.c.l.b16 %v5794
      %v5930 = vunpack.c.l.b16 %v5795
      %v5931 = vunpack.c.l.b16 %v5796
      %v5932 = vunpack.c.l.b16 %v5797
      %v5933 = vunpack.c.l.b16 %v5798
      %v5934 = vunpack.c.l.b16 %v5799
      %v5935 = vunpack.c.l.b16 %v5800
      %v5936 = vunpack.c.l.b16 %v5801
      %v5937 = vunpack.c.l.b16 %v5802
      %v5938 = vunpack.c.l.b16 %v5803
      %v5939 = vunpack.c.l.b16 %v5804
      %v5940 = vunpack.c.l.b16 %v5805
      %v5941 = vunpack.c.l.b16 %v5806
      %v5942 = vunpack.c.l.b16 %v5807
      %v5943 = vunpack.c.l.b16 %v5808
      %v5944 = vunpack.c.l.b16 %v5809
      %v5945 = vunpack.c.l.b16 %v5810
      %v5946 = vunpack.c.l.b16 %v5811
      %v5947 = vunpack.c.l.b16 %v5812
      %v5948 = vpack.c.b16 %v5885, %v5884
      %v5949 = vpack.c.b16 %v5887, %v5886
      %v5950 = vpack.c.b16 %v5889, %v5888
      %v5951 = vpack.c.b16 %v5891, %v5890
      %v5952 = vpack.c.b16 %v5893, %v5892
      %v5953 = vpack.c.b16 %v5895, %v5894
      %v5954 = vpack.c.b16 %v5897, %v5896
      %v5955 = vpack.c.b16 %v5899, %v5898
      %v5956 = vpack.c.b16 %v5901, %v5900
      %v5957 = vpack.c.b16 %v5903, %v5902
      %v5958 = vpack.c.b16 %v5905, %v5904
      %v5959 = vpack.c.b16 %v5907, %v5906
      %v5960 = vpack.c.b16 %v5909, %v5908
      %v5961 = vpack.c.b16 %v5911, %v5910
      %v5962 = vpack.c.b16 %v5913, %v5912
      %v5963 = vpack.c.b16 %v5915, %v5914
      %v5964 = vpack.c.b16 %v5917, %v5916
      %v5965 = vpack.c.b16 %v5919, %v5918
      %v5966 = vpack.c.b16 %v5921, %v5920
      %v5967 = vpack.c.b16 %v5923, %v5922
      %v5968 = vpack.c.b16 %v5925, %v5924
      %v5969 = vpack.c.b16 %v5927, %v5926
      %v5970 = vpack.c.b16 %v5929, %v5928
      %v5971 = vpack.c.b16 %v5931, %v5930
      %v5972 = vpack.c.b16 %v5933, %v5932
      %v5973 = vpack.c.b16 %v5935, %v5934
      %v5974 = vpack.c.b16 %v5937, %v5936
      %v5975 = vpack.c.b16 %v5939, %v5938
      %v5976 = vpack.c.b16 %v5941, %v5940
      %v5977 = vpack.c.b16 %v5943, %v5942
      %v5978 = vpack.c.b16 %v5945, %v5944
      %v5979 = vpack.c.b16 %v5947, %v5946
      %6012 = vmatprep.subr.bf16.mxu0 0
      %6013 = vmatpush1.bf16.msra.mxu0 %v5948
      %6014 = vmatprep.subr.bf16.mxu0 0
      %6015 = vmatpush1.bf16.msra.mxu0 %v5949
      %6016 = vmatprep.subr.bf16.mxu0 0
      %6017 = vmatpush1.bf16.msra.mxu0 %v5950
      %6018 = vmatprep.subr.bf16.mxu0 0
      %6019 = vmatpush1.bf16.msra.mxu0 %v5951
      %6020 = vmatprep.subr.bf16.mxu0 0
      %6021 = vmatpush1.bf16.msra.mxu0 %v5952
      %6022 = vmatprep.subr.bf16.mxu0 0
      %6023 = vmatpush1.bf16.msra.mxu0 %v5953
      %6024 = vmatprep.subr.bf16.mxu0 0
      %6025 = vmatpush1.bf16.msra.mxu0 %v5954
      %6026 = vmatprep.subr.bf16.mxu0 0
      %6027 = vmatpush1.bf16.msra.mxu0 %v5955
      %6028 = vmatprep.subr.bf16.mxu0 0
      %6029 = vmatpush1.bf16.msra.mxu0 %v5956
      %6030 = vmatprep.subr.bf16.mxu0 0
      %6031 = vmatpush1.bf16.msra.mxu0 %v5957
      %6032 = vmatprep.subr.bf16.mxu0 0
      %6033 = vmatpush1.bf16.msra.mxu0 %v5958
      %6034 = vmatprep.subr.bf16.mxu0 0
      %6035 = vmatpush1.bf16.msra.mxu0 %v5959
      %6036 = vmatprep.subr.bf16.mxu0 0
      %6037 = vmatpush1.bf16.msra.mxu0 %v5960
      %6038 = vmatprep.subr.bf16.mxu0 0
      %6039 = vmatpush1.bf16.msra.mxu0 %v5961
      %6040 = vmatprep.subr.bf16.mxu0 0
      %6041 = vmatpush1.bf16.msra.mxu0 %v5962
      %6042 = vmatprep.subr.bf16.mxu0 0
      %6043 = vmatpush1.bf16.msra.mxu0 %v5963
      %6044 = vmatprep.mubr.bf16.mxu0 %v5746
      %6045 = vmatmul.mubr.bf16.gmra.mrb[0].mxu0 %v5745
      %v6046 = vpop.f32.mrb[0].mxu0
      %v6047 = vadd.f32 %v5818, %v6046
      %v6048 = vpop.f32.mrb[0].mxu0
      %v6049 = vpop.f32.mrb[0].mxu0
      %v6050 = vpop.f32.mrb[0].mxu0
      %6051 = vdwg.mxu0
      %6052 = vmatprep.subr.bf16.mxu0 0
      %6053 = vmatpush1.bf16.msra.mxu0 %v5964
      %6054 = vmatprep.subr.bf16.mxu0 0
      %6055 = vmatpush1.bf16.msra.mxu0 %v5965
      %6056 = vmatprep.subr.bf16.mxu0 0
      %6057 = vmatpush1.bf16.msra.mxu0 %v5966
      %6058 = vmatprep.subr.bf16.mxu0 0
      %6059 = vmatpush1.bf16.msra.mxu0 %v5967
      %6060 = vmatprep.subr.bf16.mxu0 0
      %6061 = vmatpush1.bf16.msra.mxu0 %v5968
      %6062 = vmatprep.subr.bf16.mxu0 0
      %6063 = vmatpush1.bf16.msra.mxu0 %v5969
      %6064 = vmatprep.subr.bf16.mxu0 0
      %6065 = vmatpush1.bf16.msra.mxu0 %v5970
      %6066 = vmatprep.subr.bf16.mxu0 0
      %6067 = vmatpush1.bf16.msra.mxu0 %v5971
      %6068 = vmatprep.subr.bf16.mxu0 0
      %6069 = vmatpush1.bf16.msra.mxu0 %v5972
      %6070 = vmatprep.subr.bf16.mxu0 0
      %6071 = vmatpush1.bf16.msra.mxu0 %v5973
      %6072 = vmatprep.subr.bf16.mxu0 0
      %6073 = vmatpush1.bf16.msra.mxu0 %v5974
      %6074 = vmatprep.subr.bf16.mxu0 0
      %6075 = vmatpush1.bf16.msra.mxu0 %v5975
      %6076 = vmatprep.subr.bf16.mxu0 0
      %6077 = vmatpush1.bf16.msra.mxu0 %v5976
      %6078 = vmatprep.subr.bf16.mxu0 0
      %6079 = vmatpush1.bf16.msra.mxu0 %v5977
      %6080 = vmatprep.subr.bf16.mxu0 0
      %6081 = vmatpush1.bf16.msra.mxu0 %v5978
      %6082 = vmatprep.subr.bf16.mxu0 0
      %6083 = vmatpush1.bf16.msra.mxu0 %v5979
      %6084 = vmatprep.mubr.bf16.mxu0 %v5748
      %6085 = vmatmul.mubr.bf16.gmra.mrb[0].mxu0 %v5747
      %v6086 = vpop.f32.mrb[0].mxu0
      %v6087 = vadd.f32 %v6047, %v6086
      %v6088 = vpop.f32.mrb[0].mxu0
      %v6089 = vpop.f32.mrb[0].mxu0
      %v6090 = vpop.f32.mrb[0].mxu0
      %6091 = vdwg.mxu0
      %v6092 = vlaneseq
      %v6093 = vand.u32 %v6092, 127
      %vm6094 = vcmp.lt.s32.totalorder %v6093, 16
      %v6095 = vsel %vm6094, %v6087, -inf
      %6096 = vmax.xlane.f32.xlu0 %v6095
      %v6097 = vpop.xlane.xlu0 %6096
      %v6098 = vsub.f32 %v6095, %v6097
      %v6099 = vmul.f32 %v6098, 1.442695
      %v6100 = vpow.pop %v6099
      %6101 = vadd.xlane.f32.xlu0 %v6100
      %v6102 = vpop.xlane.xlu0 %6101
      %v6103 = vrcp.pop %v6102
      %v6104 = vmul.f32 %v6100, %v6103
      %vm6105 = vcmp.eq.s32.totalorder %v6093, 16
      %v6106 = vsel %vm6105, %v6087, 0.0
      %v6107 = vsel %vm6094, %v6104, %v6106
      %6108 = vst [vmem:[%s389] sm:$0xff] %v6107
      %p6109 = scmp.lt.s32.totalorder %s22, 1
      %s6110 = scalar_select %p6109, %s22, 1
      %s6111 = smul.addr %s6110, 8
      %s6112 = scalar_lea.vmem %s11, %s6111
      // Predicated region
      $region65: #{treechop_forward.1} parent=63 // pred_check
        %p6113 = pneg %p276
      $region66: #{treechop_forward.1} parent=63 // pred_check_branch
        %6115 = sbr.rel (%p6113) target = $region68
      $region67: #{treechop_forward.1} parent=63 // pred_region
        _
      $region68: #{treechop_forward.1} parent=63 // pred_fallthru
        _
    $region64: #{treechop_forward.1} parent=5 // pred_fallthru
      _
    %p6116 = scmp.le.s32.totalorder 2, %s17
    // Predicated region
    $region69: #{treechop_forward.1} parent=5 // pred_check
      %p6117 = pneg %p6116
    $region70: #{treechop_forward.1} parent=5 // pred_check_branch
      %6119 = sbr.rel (%p6117) target = $region72
    $region71: #{treechop_forward.1} parent=5 // pred_region
      %s6120 = ssub.s32 %s17, 2
      // Predicated region
      $region73: #{treechop_forward.1} parent=71 // pred_check
        %p6121 = pneg %p282
      $region74: #{treechop_forward.1} parent=71 // pred_check_branch
        %6123 = sbr.rel (%p6121) target = $region76
      $region75: #{treechop_forward.1} parent=71 // pred_region
        %p6124 = scmp.lt.s32.totalorder %s23, 1
        %s6125 = scalar_select %p6124, %s23, 1
        %s6126 = smul.addr %s6125, 8
        %s6127 = scalar_lea.vmem %s11, %s6126
      $region76: #{treechop_forward.1} parent=71 // pred_fallthru
        _
    $region72: #{treechop_forward.1} parent=5 // pred_fallthru
      _
  $region6: #{treechop_forward.1} parent=0 // loop_footer
    %s21 = sadd.s32 1, %s17
  $region7: #{treechop_forward.1} parent=0 // loop_footer_branch
    %16 = sbr.rel target = $region3
  $region8: #{treechop_forward.1} parent=0 // loop_exit
    _

</llo_original>
